<compile_context>
chip_gen: v5e
topology: v5e:2x2
jax: 0.10.0
libtpu: 0.0.40
codegen_flags: <defaults>
</compile_context>

<pallas_src>
import functools

import jax
import jax.numpy as jnp
from jax.experimental import pallas as pl
from jax.experimental.pallas import tpu as pltpu


IN_CH = 4
C1 = 64
FEATURE_SIZE = 512
NUM_CLASSES = 100
NUM_CLASSES_PAD = 128          # lane-dense classifier output
BN_EPS = 1e-5
VMEM_LIMIT = 32 * 1024 * 1024  # explicit scoped-VMEM budget (safe on v5e/v6e/v7x)


# ----------------------------------------------------------------------------
# Single fused kernel: conv1 -> conv2 -> global-avg-pool -> classifier
# (one grid step == one batch element; all intermediates stay on-chip)
# ----------------------------------------------------------------------------
def _fused_forward_kernel(x_ref, w1_ref, b1_ref, w2_ref, b2_ref, wc_ref, bc_ref,
                          o_ref, pad_ref, *, h, w):
    oh, ow = h // 2, w // 2

    # ---- conv1: 3x3, stride 1, pad 1 (input pre-padded in wrapper),
    #      folded-BN bias + ReLU.  In-kernel tap accumulation: 9 small GEMMs.
    x = x_ref[0]                                            # (h+2, w+2, IN_CH) f32
    acc1 = jnp.zeros((h * w, C1), jnp.float32)
    t = 0
    for ki in range(3):
        for kj in range(3):
            tap = x[ki:ki + h, kj:kj + w, :].reshape(h * w, IN_CH)
            acc1 = acc1 + jnp.dot(tap.astype(jnp.bfloat16), w1_ref[t],
                                  preferred_element_type=jnp.float32)
            t += 1
    a1 = jnp.maximum(acc1 + b1_ref[...], 0.0)               # (h*w, C1) f32
    a1 = a1.reshape(h, w, C1)

    # ---- zero-pad the conv1 activation into a VMEM scratch (never hits HBM)
    pad_ref[...] = jnp.zeros_like(pad_ref)
    pad_ref[1:h + 1, 1:w + 1, :] = a1
    x2 = pad_ref[...]                                        # (h+2, w+2, C1) f32

    # ---- conv2: 3x3, stride 2, pad 1, folded-BN bias + ReLU.
    #      Stride-2 selection via parity split (static reshapes/slices only):
    #      quad[pr][pc][i, j, :] == x2[2*i + pr, 2*j + pc, :]
    hb, wb = (h + 2) // 2, (w + 2) // 2
    xr = x2.reshape(hb, 2, w + 2, C1)                        # split rows by parity
    quad = []
    for pr in range(2):
        xc = xr[:, pr].reshape(hb, wb, 2, C1)                # split cols by parity
        quad.append([xc[:, :, 0], xc[:, :, 1]])              # (hb, wb, C1) each

    acc2 = jnp.zeros((oh * ow, FEATURE_SIZE), jnp.float32)
    t = 0
    for ki in range(3):
        for kj in range(3):
            q = quad[ki % 2][kj % 2]
            tap = q[ki // 2:ki // 2 + oh, kj // 2:kj // 2 + ow, :]
            acc2 = acc2 + jnp.dot(tap.reshape(oh * ow, C1).astype(jnp.bfloat16),
                                  w2_ref[t], preferred_element_type=jnp.float32)
            t += 1
    a2 = jnp.maximum(acc2 + b2_ref[...], 0.0)                # (oh*ow, FEAT) f32

    # ---- global average pool (features_2 output) + classifier_3 linear head
    pooled = jnp.sum(a2, axis=0, keepdims=True) * (1.0 / (oh * ow))  # (1, FEAT)
    logits = jnp.dot(pooled.astype(jnp.bfloat16), wc_ref[...],
                     preferred_element_type=jnp.float32) + bc_ref[...]
    o_ref[0] = logits                                        # lane-dense (1, 128)


def wideresnet_forward(params, x_nchw):
    # TODO(synk): `features_2` is an externally injected backbone in the PyTorch
    # module; a representative small WideResNet-style extractor is used here.
    B, _, H, W = x_nchw.shape
    assert H % 2 == 0 and W % 2 == 0, "even spatial dims expected"

    x = jnp.transpose(x_nchw, (0, 2, 3, 1)).astype(jnp.float32)   # NCHW -> NHWC
    x = jnp.pad(x, ((0, 0), (1, 1), (1, 1), (0, 0)))              # spatial pad=1

    kernel = functools.partial(_fused_forward_kernel, h=H, w=W)
    out = pl.pallas_call(
        kernel,
        out_shape=jax.ShapeDtypeStruct((B, 1, NUM_CLASSES_PAD), jnp.float32),
        grid=(B,),
        in_specs=[
            pl.BlockSpec((1, H + 2, W + 2, IN_CH), lambda b: (b, 0, 0, 0)),
            pl.BlockSpec((9, IN_CH, C1), lambda b: (0, 0, 0)),            # w1
            pl.BlockSpec((1, C1), lambda b: (0, 0)),                      # b1
            pl.BlockSpec((9, C1, FEATURE_SIZE), lambda b: (0, 0, 0)),     # w2
            pl.BlockSpec((1, FEATURE_SIZE), lambda b: (0, 0)),            # b2
            pl.BlockSpec((FEATURE_SIZE, NUM_CLASSES_PAD), lambda b: (0, 0)),  # wc
            pl.BlockSpec((1, NUM_CLASSES_PAD), lambda b: (0, 0)),         # bc
        ],
        out_specs=pl.BlockSpec((1, 1, NUM_CLASSES_PAD), lambda b: (b, 0, 0)),
        scratch_shapes=[pltpu.VMEM((H + 2, W + 2, C1), jnp.float32)],
        compiler_params=pltpu.CompilerParams(
            dimension_semantics=("parallel",),       # batch across v7x's 2 TCs
            vmem_limit_bytes=VMEM_LIMIT,
        ),
    )(x, params["w1"], params["b1"], params["w2"], params["b2"],
      params["wc_t"], params["bc"])
    return out[:, 0, :NUM_CLASSES]


# ----------------------------------------------------------------------------
# Parameters (deterministic, BN folded into the conv weights)
# ----------------------------------------------------------------------------
def init_params(key):
    ks = jax.random.split(key, 6)
    p = {}
    # conv1: 3x3, IN_CH -> C1, stride 1, pad 1; BN (mean=0, var=1) folded in.
    w1 = 0.05 * jax.random.normal(ks[0], (3, 3, IN_CH, C1), jnp.float32)
    g1 = 1.0 + 0.01 * jax.random.normal(ks[1], (C1,), jnp.float32)
    s1 = g1 / jnp.sqrt(1.0 + BN_EPS)
    p["w1"] = (w1 * s1).reshape(9, IN_CH, C1).astype(jnp.bfloat16)
    p["b1"] = (0.01 * jax.random.normal(ks[2], (C1,), jnp.float32)).reshape(1, C1)
    # conv2: 3x3, C1 -> FEATURE_SIZE, stride 2, pad 1; BN folded in.
    w2 = 0.05 * jax.random.normal(ks[3], (3, 3, C1, FEATURE_SIZE), jnp.float32)
    s2 = 1.0 / jnp.sqrt(1.0 + BN_EPS)
    p["w2"] = (w2 * s2).reshape(9, C1, FEATURE_SIZE).astype(jnp.bfloat16)
    p["b2"] = jnp.zeros((1, FEATURE_SIZE), jnp.float32)
    # classifier_3 = nn.Linear(512, 100): stored pre-transposed (K, N), padded
    # to 128 classes for lane-dense stores (sliced back in the wrapper).
    wc = 0.02 * jax.random.normal(ks[4], (NUM_CLASSES, FEATURE_SIZE), jnp.float32)
    bc = 0.01 * jax.random.normal(ks[5], (NUM_CLASSES,), jnp.float32)
    p["wc_t"] = jnp.pad(
        wc.T, ((0, 0), (0, NUM_CLASSES_PAD - NUM_CLASSES))).astype(jnp.bfloat16)
    p["bc"] = jnp.pad(bc, (0, NUM_CLASSES_PAD - NUM_CLASSES)).reshape(1, NUM_CLASSES_PAD)
    return p


if __name__ == "__main__":
    key = jax.random.PRNGKey(0)
    pkey, xkey = jax.random.split(key)
    params = init_params(pkey)
    x = jax.random.normal(xkey, (2, IN_CH, 16, 16), jnp.float32)  # NCHW, like PyTorch

    out = jax.jit(wideresnet_forward)(params, x)
    out = jax.block_until_ready(out)
    assert out.shape == (2, NUM_CLASSES) and out.dtype == jnp.float32
    print("KERNEL_OK")
</pallas_src>

<mosaic_0001>
module attributes {stable_mosaic.version = 11 : i64} {
  func.func @_fused_forward_kernel(%arg0: i32, %arg1: memref<1x18x18x4xf32, #tpu.memory_space<vmem>>, %arg2: memref<9x4x64xbf16, #tpu.memory_space<vmem>>, %arg3: memref<1x64xf32, #tpu.memory_space<vmem>>, %arg4: memref<9x64x512xbf16, #tpu.memory_space<vmem>>, %arg5: memref<1x512xf32, #tpu.memory_space<vmem>>, %arg6: memref<512x128xbf16, #tpu.memory_space<vmem>>, %arg7: memref<1x128xf32, #tpu.memory_space<vmem>>, %arg8: memref<1x1x128xf32, #tpu.memory_space<vmem>>, %arg9: memref<18x18x64xf32, #tpu.memory_space<vmem>>) attributes {dimension_semantics = [#tpu.dimension_semantics<parallel>], iteration_bounds = array<i64: 2>, scalar_prefetch = 0 : i64, scratch_operands = 1 : i64, tpu.core_type = #tpu.core_type<tc>, window_params = [{transform_indices = @transform_0, window_bounds = array<i64: 1, 18, 18, 4>}, {pipeline_mode = #tpu.pipeline_mode<synchronous>, transform_indices = @transform_1, window_bounds = array<i64: 9, 4, 64>}, {pipeline_mode = #tpu.pipeline_mode<synchronous>, transform_indices = @transform_2, window_bounds = array<i64: 1, 64>}, {pipeline_mode = #tpu.pipeline_mode<synchronous>, transform_indices = @transform_3, window_bounds = array<i64: 9, 64, 512>}, {pipeline_mode = #tpu.pipeline_mode<synchronous>, transform_indices = @transform_4, window_bounds = array<i64: 1, 512>}, {pipeline_mode = #tpu.pipeline_mode<synchronous>, transform_indices = @transform_5, window_bounds = array<i64: 512, 128>}, {pipeline_mode = #tpu.pipeline_mode<synchronous>, transform_indices = @transform_6, window_bounds = array<i64: 1, 128>}, {transform_indices = @transform_7, window_bounds = array<i64: 1, 1, 128>}]} {
    %c0 = arith.constant 0 : index
    %c0_0 = arith.constant 0 : index
    %c0_1 = arith.constant 0 : index
    %c0_2 = arith.constant 0 : index
    %0 = vector.load %arg1[%c0, %c0_0, %c0_1, %c0_2] : memref<1x18x18x4xf32, #tpu.memory_space<vmem>>, vector<1x18x18x4xf32>
    %1 = vector.shape_cast %0 : vector<1x18x18x4xf32> to vector<18x18x4xf32>
    %cst = arith.constant 0.000000e+00 : f32
    %2 = vector.broadcast %cst : f32 to vector<256x64xf32>
    %3 = vector.extract_strided_slice %1 {offsets = [0, 0, 0], sizes = [16, 16, 4], strides = [1, 1, 1]} : vector<18x18x4xf32> to vector<16x16x4xf32>
    %4 = vector.shape_cast %3 : vector<16x16x4xf32> to vector<256x4xf32>
    %5 = arith.truncf %4 : vector<256x4xf32> to vector<256x4xbf16>
    %c0_3 = arith.constant 0 : index
    %c0_4 = arith.constant 0 : index
    %c0_5 = arith.constant 0 : index
    %6 = vector.load %arg2[%c0_3, %c0_4, %c0_5] : memref<9x4x64xbf16, #tpu.memory_space<vmem>>, vector<1x4x64xbf16>
    %7 = vector.shape_cast %6 : vector<1x4x64xbf16> to vector<4x64xbf16>
    %cst_6 = arith.constant dense<0.000000e+00> : vector<256x64xf32>
    %8 = tpu.matmul %5, %7, %cst_6 {dimension_numbers = #tpu.dot_dimension_numbers<[1], [0], [0], [1], [0, 0, 1, 1], [], []>} : vector<256x4xbf16>, vector<4x64xbf16>, vector<256x64xf32> -> vector<256x64xf32>
    %9 = arith.addf %2, %8 : vector<256x64xf32>
    %10 = vector.extract_strided_slice %1 {offsets = [0, 1, 0], sizes = [16, 16, 4], strides = [1, 1, 1]} : vector<18x18x4xf32> to vector<16x16x4xf32>
    %11 = vector.shape_cast %10 : vector<16x16x4xf32> to vector<256x4xf32>
    %12 = arith.truncf %11 : vector<256x4xf32> to vector<256x4xbf16>
    %c1 = arith.constant 1 : index
    %c0_7 = arith.constant 0 : index
    %c0_8 = arith.constant 0 : index
    %13 = vector.load %arg2[%c1, %c0_7, %c0_8] : memref<9x4x64xbf16, #tpu.memory_space<vmem>>, vector<1x4x64xbf16>
    %14 = vector.shape_cast %13 : vector<1x4x64xbf16> to vector<4x64xbf16>
    %cst_9 = arith.constant dense<0.000000e+00> : vector<256x64xf32>
    %15 = tpu.matmul %12, %14, %cst_9 {dimension_numbers = #tpu.dot_dimension_numbers<[1], [0], [0], [1], [0, 0, 1, 1], [], []>} : vector<256x4xbf16>, vector<4x64xbf16>, vector<256x64xf32> -> vector<256x64xf32>
    %16 = arith.addf %9, %15 : vector<256x64xf32>
    %17 = vector.extract_strided_slice %1 {offsets = [0, 2, 0], sizes = [16, 16, 4], strides = [1, 1, 1]} : vector<18x18x4xf32> to vector<16x16x4xf32>
    %18 = vector.shape_cast %17 : vector<16x16x4xf32> to vector<256x4xf32>
    %19 = arith.truncf %18 : vector<256x4xf32> to vector<256x4xbf16>
    %c2 = arith.constant 2 : index
    %c0_10 = arith.constant 0 : index
    %c0_11 = arith.constant 0 : index
    %20 = vector.load %arg2[%c2, %c0_10, %c0_11] : memref<9x4x64xbf16, #tpu.memory_space<vmem>>, vector<1x4x64xbf16>
    %21 = vector.shape_cast %20 : vector<1x4x64xbf16> to vector<4x64xbf16>
    %cst_12 = arith.constant dense<0.000000e+00> : vector<256x64xf32>
    %22 = tpu.matmul %19, %21, %cst_12 {dimension_numbers = #tpu.dot_dimension_numbers<[1], [0], [0], [1], [0, 0, 1, 1], [], []>} : vector<256x4xbf16>, vector<4x64xbf16>, vector<256x64xf32> -> vector<256x64xf32>
    %23 = arith.addf %16, %22 : vector<256x64xf32>
    %24 = vector.extract_strided_slice %1 {offsets = [1, 0, 0], sizes = [16, 16, 4], strides = [1, 1, 1]} : vector<18x18x4xf32> to vector<16x16x4xf32>
    %25 = vector.shape_cast %24 : vector<16x16x4xf32> to vector<256x4xf32>
    %26 = arith.truncf %25 : vector<256x4xf32> to vector<256x4xbf16>
    %c3 = arith.constant 3 : index
    %c0_13 = arith.constant 0 : index
    %c0_14 = arith.constant 0 : index
    %27 = vector.load %arg2[%c3, %c0_13, %c0_14] : memref<9x4x64xbf16, #tpu.memory_space<vmem>>, vector<1x4x64xbf16>
    %28 = vector.shape_cast %27 : vector<1x4x64xbf16> to vector<4x64xbf16>
    %cst_15 = arith.constant dense<0.000000e+00> : vector<256x64xf32>
    %29 = tpu.matmul %26, %28, %cst_15 {dimension_numbers = #tpu.dot_dimension_numbers<[1], [0], [0], [1], [0, 0, 1, 1], [], []>} : vector<256x4xbf16>, vector<4x64xbf16>, vector<256x64xf32> -> vector<256x64xf32>
    %30 = arith.addf %23, %29 : vector<256x64xf32>
    %31 = vector.extract_strided_slice %1 {offsets = [1, 1, 0], sizes = [16, 16, 4], strides = [1, 1, 1]} : vector<18x18x4xf32> to vector<16x16x4xf32>
    %32 = vector.shape_cast %31 : vector<16x16x4xf32> to vector<256x4xf32>
    %33 = arith.truncf %32 : vector<256x4xf32> to vector<256x4xbf16>
    %c4 = arith.constant 4 : index
    %c0_16 = arith.constant 0 : index
    %c0_17 = arith.constant 0 : index
    %34 = vector.load %arg2[%c4, %c0_16, %c0_17] : memref<9x4x64xbf16, #tpu.memory_space<vmem>>, vector<1x4x64xbf16>
    %35 = vector.shape_cast %34 : vector<1x4x64xbf16> to vector<4x64xbf16>
    %cst_18 = arith.constant dense<0.000000e+00> : vector<256x64xf32>
    %36 = tpu.matmul %33, %35, %cst_18 {dimension_numbers = #tpu.dot_dimension_numbers<[1], [0], [0], [1], [0, 0, 1, 1], [], []>} : vector<256x4xbf16>, vector<4x64xbf16>, vector<256x64xf32> -> vector<256x64xf32>
    %37 = arith.addf %30, %36 : vector<256x64xf32>
    %38 = vector.extract_strided_slice %1 {offsets = [1, 2, 0], sizes = [16, 16, 4], strides = [1, 1, 1]} : vector<18x18x4xf32> to vector<16x16x4xf32>
    %39 = vector.shape_cast %38 : vector<16x16x4xf32> to vector<256x4xf32>
    %40 = arith.truncf %39 : vector<256x4xf32> to vector<256x4xbf16>
    %c5 = arith.constant 5 : index
    %c0_19 = arith.constant 0 : index
    %c0_20 = arith.constant 0 : index
    %41 = vector.load %arg2[%c5, %c0_19, %c0_20] : memref<9x4x64xbf16, #tpu.memory_space<vmem>>, vector<1x4x64xbf16>
    %42 = vector.shape_cast %41 : vector<1x4x64xbf16> to vector<4x64xbf16>
    %cst_21 = arith.constant dense<0.000000e+00> : vector<256x64xf32>
    %43 = tpu.matmul %40, %42, %cst_21 {dimension_numbers = #tpu.dot_dimension_numbers<[1], [0], [0], [1], [0, 0, 1, 1], [], []>} : vector<256x4xbf16>, vector<4x64xbf16>, vector<256x64xf32> -> vector<256x64xf32>
    %44 = arith.addf %37, %43 : vector<256x64xf32>
    %45 = vector.extract_strided_slice %1 {offsets = [2, 0, 0], sizes = [16, 16, 4], strides = [1, 1, 1]} : vector<18x18x4xf32> to vector<16x16x4xf32>
    %46 = vector.shape_cast %45 : vector<16x16x4xf32> to vector<256x4xf32>
    %47 = arith.truncf %46 : vector<256x4xf32> to vector<256x4xbf16>
    %c6 = arith.constant 6 : index
    %c0_22 = arith.constant 0 : index
    %c0_23 = arith.constant 0 : index
    %48 = vector.load %arg2[%c6, %c0_22, %c0_23] : memref<9x4x64xbf16, #tpu.memory_space<vmem>>, vector<1x4x64xbf16>
    %49 = vector.shape_cast %48 : vector<1x4x64xbf16> to vector<4x64xbf16>
    %cst_24 = arith.constant dense<0.000000e+00> : vector<256x64xf32>
    %50 = tpu.matmul %47, %49, %cst_24 {dimension_numbers = #tpu.dot_dimension_numbers<[1], [0], [0], [1], [0, 0, 1, 1], [], []>} : vector<256x4xbf16>, vector<4x64xbf16>, vector<256x64xf32> -> vector<256x64xf32>
    %51 = arith.addf %44, %50 : vector<256x64xf32>
    %52 = vector.extract_strided_slice %1 {offsets = [2, 1, 0], sizes = [16, 16, 4], strides = [1, 1, 1]} : vector<18x18x4xf32> to vector<16x16x4xf32>
    %53 = vector.shape_cast %52 : vector<16x16x4xf32> to vector<256x4xf32>
    %54 = arith.truncf %53 : vector<256x4xf32> to vector<256x4xbf16>
    %c7 = arith.constant 7 : index
    %c0_25 = arith.constant 0 : index
    %c0_26 = arith.constant 0 : index
    %55 = vector.load %arg2[%c7, %c0_25, %c0_26] : memref<9x4x64xbf16, #tpu.memory_space<vmem>>, vector<1x4x64xbf16>
    %56 = vector.shape_cast %55 : vector<1x4x64xbf16> to vector<4x64xbf16>
    %cst_27 = arith.constant dense<0.000000e+00> : vector<256x64xf32>
    %57 = tpu.matmul %54, %56, %cst_27 {dimension_numbers = #tpu.dot_dimension_numbers<[1], [0], [0], [1], [0, 0, 1, 1], [], []>} : vector<256x4xbf16>, vector<4x64xbf16>, vector<256x64xf32> -> vector<256x64xf32>
    %58 = arith.addf %51, %57 : vector<256x64xf32>
    %59 = vector.extract_strided_slice %1 {offsets = [2, 2, 0], sizes = [16, 16, 4], strides = [1, 1, 1]} : vector<18x18x4xf32> to vector<16x16x4xf32>
    %60 = vector.shape_cast %59 : vector<16x16x4xf32> to vector<256x4xf32>
    %61 = arith.truncf %60 : vector<256x4xf32> to vector<256x4xbf16>
    %c8 = arith.constant 8 : index
    %c0_28 = arith.constant 0 : index
    %c0_29 = arith.constant 0 : index
    %62 = vector.load %arg2[%c8, %c0_28, %c0_29] : memref<9x4x64xbf16, #tpu.memory_space<vmem>>, vector<1x4x64xbf16>
    %63 = vector.shape_cast %62 : vector<1x4x64xbf16> to vector<4x64xbf16>
    %cst_30 = arith.constant dense<0.000000e+00> : vector<256x64xf32>
    %64 = tpu.matmul %61, %63, %cst_30 {dimension_numbers = #tpu.dot_dimension_numbers<[1], [0], [0], [1], [0, 0, 1, 1], [], []>} : vector<256x4xbf16>, vector<4x64xbf16>, vector<256x64xf32> -> vector<256x64xf32>
    %65 = arith.addf %58, %64 : vector<256x64xf32>
    %c0_31 = arith.constant 0 : index
    %c0_32 = arith.constant 0 : index
    %66 = vector.load %arg3[%c0_31, %c0_32] : memref<1x64xf32, #tpu.memory_space<vmem>>, vector<1x64xf32>
    %67 = vector.broadcast %66 : vector<1x64xf32> to vector<256x64xf32>
    %68 = arith.addf %65, %67 : vector<256x64xf32>
    %cst_33 = arith.constant 0.000000e+00 : f32
    %69 = vector.broadcast %cst_33 : f32 to vector<256x64xf32>
    %70 = arith.maximumf %68, %69 : vector<256x64xf32>
    %71 = vector.shape_cast %70 : vector<256x64xf32> to vector<16x16x64xf32>
    %cst_34 = arith.constant 0.000000e+00 : f32
    %72 = vector.broadcast %cst_34 : f32 to vector<18x18x64xf32>
    %c0_35 = arith.constant 0 : index
    %c0_36 = arith.constant 0 : index
    %c0_37 = arith.constant 0 : index
    %73 = vector.load %arg9[%c0_35, %c0_36, %c0_37] : memref<18x18x64xf32, #tpu.memory_space<vmem>>, vector<18x18x64xf32>
    tpu.vector_store %arg9[%c0_35, %c0_36, %c0_37], %72 {strides = array<i32>} : memref<18x18x64xf32, #tpu.memory_space<vmem>>, vector<18x18x64xf32>,
    %c1_38 = arith.constant 1 : index
    %c1_39 = arith.constant 1 : index
    %c0_40 = arith.constant 0 : index
    %74 = vector.load %arg9[%c1_38, %c1_39, %c0_40] : memref<18x18x64xf32, #tpu.memory_space<vmem>>, vector<16x16x64xf32>
    tpu.vector_store %arg9[%c1_38, %c1_39, %c0_40], %71 {strides = array<i32>} : memref<18x18x64xf32, #tpu.memory_space<vmem>>, vector<16x16x64xf32>,
    %c0_41 = arith.constant 0 : index
    %c0_42 = arith.constant 0 : index
    %c0_43 = arith.constant 0 : index
    %75 = vector.load %arg9[%c0_41, %c0_42, %c0_43] : memref<18x18x64xf32, #tpu.memory_space<vmem>>, vector<18x18x64xf32>
    %76 = vector.shape_cast %75 : vector<18x18x64xf32> to vector<9x2x18x64xf32>
    %77 = vector.extract_strided_slice %76 {offsets = [0, 0, 0, 0], sizes = [9, 1, 18, 64], strides = [1, 1, 1, 1]} : vector<9x2x18x64xf32> to vector<9x1x18x64xf32>
    %78 = vector.shape_cast %77 : vector<9x1x18x64xf32> to vector<9x18x64xf32>
    %79 = vector.shape_cast %78 : vector<9x18x64xf32> to vector<9x9x2x64xf32>
    %80 = vector.extract_strided_slice %79 {offsets = [0, 0, 0, 0], sizes = [9, 9, 1, 64], strides = [1, 1, 1, 1]} : vector<9x9x2x64xf32> to vector<9x9x1x64xf32>
    %81 = vector.shape_cast %80 : vector<9x9x1x64xf32> to vector<9x9x64xf32>
    %82 = vector.extract_strided_slice %79 {offsets = [0, 0, 1, 0], sizes = [9, 9, 1, 64], strides = [1, 1, 1, 1]} : vector<9x9x2x64xf32> to vector<9x9x1x64xf32>
    %83 = vector.shape_cast %82 : vector<9x9x1x64xf32> to vector<9x9x64xf32>
    %84 = vector.extract_strided_slice %76 {offsets = [0, 1, 0, 0], sizes = [9, 1, 18, 64], strides = [1, 1, 1, 1]} : vector<9x2x18x64xf32> to vector<9x1x18x64xf32>
    %85 = vector.shape_cast %84 : vector<9x1x18x64xf32> to vector<9x18x64xf32>
    %86 = vector.shape_cast %85 : vector<9x18x64xf32> to vector<9x9x2x64xf32>
    %87 = vector.extract_strided_slice %86 {offsets = [0, 0, 0, 0], sizes = [9, 9, 1, 64], strides = [1, 1, 1, 1]} : vector<9x9x2x64xf32> to vector<9x9x1x64xf32>
    %88 = vector.shape_cast %87 : vector<9x9x1x64xf32> to vector<9x9x64xf32>
    %89 = vector.extract_strided_slice %86 {offsets = [0, 0, 1, 0], sizes = [9, 9, 1, 64], strides = [1, 1, 1, 1]} : vector<9x9x2x64xf32> to vector<9x9x1x64xf32>
    %90 = vector.shape_cast %89 : vector<9x9x1x64xf32> to vector<9x9x64xf32>
    %cst_44 = arith.constant 0.000000e+00 : f32
    %91 = vector.broadcast %cst_44 : f32 to vector<64x512xf32>
    %92 = vector.extract_strided_slice %81 {offsets = [0, 0, 0], sizes = [8, 8, 64], strides = [1, 1, 1]} : vector<9x9x64xf32> to vector<8x8x64xf32>
    %93 = vector.shape_cast %92 : vector<8x8x64xf32> to vector<64x64xf32>
    %94 = arith.truncf %93 : vector<64x64xf32> to vector<64x64xbf16>
    %c0_45 = arith.constant 0 : index
    %c0_46 = arith.constant 0 : index
    %c0_47 = arith.constant 0 : index
    %95 = vector.load %arg4[%c0_45, %c0_46, %c0_47] : memref<9x64x512xbf16, #tpu.memory_space<vmem>>, vector<1x64x512xbf16>
    %96 = vector.shape_cast %95 : vector<1x64x512xbf16> to vector<64x512xbf16>
    %cst_48 = arith.constant dense<0.000000e+00> : vector<64x512xf32>
    %97 = tpu.matmul %94, %96, %cst_48 {dimension_numbers = #tpu.dot_dimension_numbers<[1], [0], [0], [1], [0, 0, 1, 1], [], []>} : vector<64x64xbf16>, vector<64x512xbf16>, vector<64x512xf32> -> vector<64x512xf32>
    %98 = arith.addf %91, %97 : vector<64x512xf32>
    %99 = vector.extract_strided_slice %83 {offsets = [0, 0, 0], sizes = [8, 8, 64], strides = [1, 1, 1]} : vector<9x9x64xf32> to vector<8x8x64xf32>
    %100 = vector.shape_cast %99 : vector<8x8x64xf32> to vector<64x64xf32>
    %101 = arith.truncf %100 : vector<64x64xf32> to vector<64x64xbf16>
    %c1_49 = arith.constant 1 : index
    %c0_50 = arith.constant 0 : index
    %c0_51 = arith.constant 0 : index
    %102 = vector.load %arg4[%c1_49, %c0_50, %c0_51] : memref<9x64x512xbf16, #tpu.memory_space<vmem>>, vector<1x64x512xbf16>
    %103 = vector.shape_cast %102 : vector<1x64x512xbf16> to vector<64x512xbf16>
    %cst_52 = arith.constant dense<0.000000e+00> : vector<64x512xf32>
    %104 = tpu.matmul %101, %103, %cst_52 {dimension_numbers = #tpu.dot_dimension_numbers<[1], [0], [0], [1], [0, 0, 1, 1], [], []>} : vector<64x64xbf16>, vector<64x512xbf16>, vector<64x512xf32> -> vector<64x512xf32>
    %105 = arith.addf %98, %104 : vector<64x512xf32>
    %106 = vector.extract_strided_slice %81 {offsets = [0, 1, 0], sizes = [8, 8, 64], strides = [1, 1, 1]} : vector<9x9x64xf32> to vector<8x8x64xf32>
    %107 = vector.shape_cast %106 : vector<8x8x64xf32> to vector<64x64xf32>
    %108 = arith.truncf %107 : vector<64x64xf32> to vector<64x64xbf16>
    %c2_53 = arith.constant 2 : index
    %c0_54 = arith.constant 0 : index
    %c0_55 = arith.constant 0 : index
    %109 = vector.load %arg4[%c2_53, %c0_54, %c0_55] : memref<9x64x512xbf16, #tpu.memory_space<vmem>>, vector<1x64x512xbf16>
    %110 = vector.shape_cast %109 : vector<1x64x512xbf16> to vector<64x512xbf16>
    %cst_56 = arith.constant dense<0.000000e+00> : vector<64x512xf32>
    %111 = tpu.matmul %108, %110, %cst_56 {dimension_numbers = #tpu.dot_dimension_numbers<[1], [0], [0], [1], [0, 0, 1, 1], [], []>} : vector<64x64xbf16>, vector<64x512xbf16>, vector<64x512xf32> -> vector<64x512xf32>
    %112 = arith.addf %105, %111 : vector<64x512xf32>
    %113 = vector.extract_strided_slice %88 {offsets = [0, 0, 0], sizes = [8, 8, 64], strides = [1, 1, 1]} : vector<9x9x64xf32> to vector<8x8x64xf32>
    %114 = vector.shape_cast %113 : vector<8x8x64xf32> to vector<64x64xf32>
    %115 = arith.truncf %114 : vector<64x64xf32> to vector<64x64xbf16>
    %c3_57 = arith.constant 3 : index
    %c0_58 = arith.constant 0 : index
    %c0_59 = arith.constant 0 : index
    %116 = vector.load %arg4[%c3_57, %c0_58, %c0_59] : memref<9x64x512xbf16, #tpu.memory_space<vmem>>, vector<1x64x512xbf16>
    %117 = vector.shape_cast %116 : vector<1x64x512xbf16> to vector<64x512xbf16>
    %cst_60 = arith.constant dense<0.000000e+00> : vector<64x512xf32>
    %118 = tpu.matmul %115, %117, %cst_60 {dimension_numbers = #tpu.dot_dimension_numbers<[1], [0], [0], [1], [0, 0, 1, 1], [], []>} : vector<64x64xbf16>, vector<64x512xbf16>, vector<64x512xf32> -> vector<64x512xf32>
    %119 = arith.addf %112, %118 : vector<64x512xf32>
    %120 = vector.extract_strided_slice %90 {offsets = [0, 0, 0], sizes = [8, 8, 64], strides = [1, 1, 1]} : vector<9x9x64xf32> to vector<8x8x64xf32>
    %121 = vector.shape_cast %120 : vector<8x8x64xf32> to vector<64x64xf32>
    %122 = arith.truncf %121 : vector<64x64xf32> to vector<64x64xbf16>
    %c4_61 = arith.constant 4 : index
    %c0_62 = arith.constant 0 : index
    %c0_63 = arith.constant 0 : index
    %123 = vector.load %arg4[%c4_61, %c0_62, %c0_63] : memref<9x64x512xbf16, #tpu.memory_space<vmem>>, vector<1x64x512xbf16>
    %124 = vector.shape_cast %123 : vector<1x64x512xbf16> to vector<64x512xbf16>
    %cst_64 = arith.constant dense<0.000000e+00> : vector<64x512xf32>
    %125 = tpu.matmul %122, %124, %cst_64 {dimension_numbers = #tpu.dot_dimension_numbers<[1], [0], [0], [1], [0, 0, 1, 1], [], []>} : vector<64x64xbf16>, vector<64x512xbf16>, vector<64x512xf32> -> vector<64x512xf32>
    %126 = arith.addf %119, %125 : vector<64x512xf32>
    %127 = vector.extract_strided_slice %88 {offsets = [0, 1, 0], sizes = [8, 8, 64], strides = [1, 1, 1]} : vector<9x9x64xf32> to vector<8x8x64xf32>
    %128 = vector.shape_cast %127 : vector<8x8x64xf32> to vector<64x64xf32>
    %129 = arith.truncf %128 : vector<64x64xf32> to vector<64x64xbf16>
    %c5_65 = arith.constant 5 : index
    %c0_66 = arith.constant 0 : index
    %c0_67 = arith.constant 0 : index
    %130 = vector.load %arg4[%c5_65, %c0_66, %c0_67] : memref<9x64x512xbf16, #tpu.memory_space<vmem>>, vector<1x64x512xbf16>
    %131 = vector.shape_cast %130 : vector<1x64x512xbf16> to vector<64x512xbf16>
    %cst_68 = arith.constant dense<0.000000e+00> : vector<64x512xf32>
    %132 = tpu.matmul %129, %131, %cst_68 {dimension_numbers = #tpu.dot_dimension_numbers<[1], [0], [0], [1], [0, 0, 1, 1], [], []>} : vector<64x64xbf16>, vector<64x512xbf16>, vector<64x512xf32> -> vector<64x512xf32>
    %133 = arith.addf %126, %132 : vector<64x512xf32>
    %134 = vector.extract_strided_slice %81 {offsets = [1, 0, 0], sizes = [8, 8, 64], strides = [1, 1, 1]} : vector<9x9x64xf32> to vector<8x8x64xf32>
    %135 = vector.shape_cast %134 : vector<8x8x64xf32> to vector<64x64xf32>
    %136 = arith.truncf %135 : vector<64x64xf32> to vector<64x64xbf16>
    %c6_69 = arith.constant 6 : index
    %c0_70 = arith.constant 0 : index
    %c0_71 = arith.constant 0 : index
    %137 = vector.load %arg4[%c6_69, %c0_70, %c0_71] : memref<9x64x512xbf16, #tpu.memory_space<vmem>>, vector<1x64x512xbf16>
    %138 = vector.shape_cast %137 : vector<1x64x512xbf16> to vector<64x512xbf16>
    %cst_72 = arith.constant dense<0.000000e+00> : vector<64x512xf32>
    %139 = tpu.matmul %136, %138, %cst_72 {dimension_numbers = #tpu.dot_dimension_numbers<[1], [0], [0], [1], [0, 0, 1, 1], [], []>} : vector<64x64xbf16>, vector<64x512xbf16>, vector<64x512xf32> -> vector<64x512xf32>
    %140 = arith.addf %133, %139 : vector<64x512xf32>
    %141 = vector.extract_strided_slice %83 {offsets = [1, 0, 0], sizes = [8, 8, 64], strides = [1, 1, 1]} : vector<9x9x64xf32> to vector<8x8x64xf32>
    %142 = vector.shape_cast %141 : vector<8x8x64xf32> to vector<64x64xf32>
    %143 = arith.truncf %142 : vector<64x64xf32> to vector<64x64xbf16>
    %c7_73 = arith.constant 7 : index
    %c0_74 = arith.constant 0 : index
    %c0_75 = arith.constant 0 : index
    %144 = vector.load %arg4[%c7_73, %c0_74, %c0_75] : memref<9x64x512xbf16, #tpu.memory_space<vmem>>, vector<1x64x512xbf16>
    %145 = vector.shape_cast %144 : vector<1x64x512xbf16> to vector<64x512xbf16>
    %cst_76 = arith.constant dense<0.000000e+00> : vector<64x512xf32>
    %146 = tpu.matmul %143, %145, %cst_76 {dimension_numbers = #tpu.dot_dimension_numbers<[1], [0], [0], [1], [0, 0, 1, 1], [], []>} : vector<64x64xbf16>, vector<64x512xbf16>, vector<64x512xf32> -> vector<64x512xf32>
    %147 = arith.addf %140, %146 : vector<64x512xf32>
    %148 = vector.extract_strided_slice %81 {offsets = [1, 1, 0], sizes = [8, 8, 64], strides = [1, 1, 1]} : vector<9x9x64xf32> to vector<8x8x64xf32>
    %149 = vector.shape_cast %148 : vector<8x8x64xf32> to vector<64x64xf32>
    %150 = arith.truncf %149 : vector<64x64xf32> to vector<64x64xbf16>
    %c8_77 = arith.constant 8 : index
    %c0_78 = arith.constant 0 : index
    %c0_79 = arith.constant 0 : index
    %151 = vector.load %arg4[%c8_77, %c0_78, %c0_79] : memref<9x64x512xbf16, #tpu.memory_space<vmem>>, vector<1x64x512xbf16>
    %152 = vector.shape_cast %151 : vector<1x64x512xbf16> to vector<64x512xbf16>
    %cst_80 = arith.constant dense<0.000000e+00> : vector<64x512xf32>
    %153 = tpu.matmul %150, %152, %cst_80 {dimension_numbers = #tpu.dot_dimension_numbers<[1], [0], [0], [1], [0, 0, 1, 1], [], []>} : vector<64x64xbf16>, vector<64x512xbf16>, vector<64x512xf32> -> vector<64x512xf32>
    %154 = arith.addf %147, %153 : vector<64x512xf32>
    %c0_81 = arith.constant 0 : index
    %c0_82 = arith.constant 0 : index
    %155 = vector.load %arg5[%c0_81, %c0_82] : memref<1x512xf32, #tpu.memory_space<vmem>>, vector<1x512xf32>
    %156 = vector.broadcast %155 : vector<1x512xf32> to vector<64x512xf32>
    %157 = arith.addf %154, %156 : vector<64x512xf32>
    %cst_83 = arith.constant 0.000000e+00 : f32
    %158 = vector.broadcast %cst_83 : f32 to vector<64x512xf32>
    %159 = arith.maximumf %157, %158 : vector<64x512xf32>
    %cst_84 = arith.constant dense<0.000000e+00> : vector<512xf32>
    %160 = vector.multi_reduction <add>, %159, %cst_84 [0] : vector<64x512xf32> to vector<512xf32>
    %161 = vector.shape_cast %160 : vector<512xf32> to vector<1x512xf32>
    %cst_85 = arith.constant 1.562500e-02 : f32
    %162 = vector.broadcast %cst_85 : f32 to vector<1x512xf32>
    %163 = arith.mulf %161, %162 : vector<1x512xf32>
    %164 = arith.truncf %163 : vector<1x512xf32> to vector<1x512xbf16>
    %c0_86 = arith.constant 0 : index
    %c0_87 = arith.constant 0 : index
    %165 = vector.load %arg6[%c0_86, %c0_87] : memref<512x128xbf16, #tpu.memory_space<vmem>>, vector<512x128xbf16>
    %cst_88 = arith.constant dense<0.000000e+00> : vector<1x128xf32>
    %166 = tpu.matmul %164, %165, %cst_88 {dimension_numbers = #tpu.dot_dimension_numbers<[1], [0], [0], [1], [0, 0, 1, 1], [], []>} : vector<1x512xbf16>, vector<512x128xbf16>, vector<1x128xf32> -> vector<1x128xf32>
    %c0_89 = arith.constant 0 : index
    %c0_90 = arith.constant 0 : index
    %167 = vector.load %arg7[%c0_89, %c0_90] : memref<1x128xf32, #tpu.memory_space<vmem>>, vector<1x128xf32>
    %168 = arith.addf %166, %167 : vector<1x128xf32>
    %c0_91 = arith.constant 0 : index
    %c0_92 = arith.constant 0 : index
    %c0_93 = arith.constant 0 : index
    %169 = vector.load %arg8[%c0_91, %c0_92, %c0_93] : memref<1x1x128xf32, #tpu.memory_space<vmem>>, vector<1x1x128xf32>
    %170 = vector.shape_cast %169 : vector<1x1x128xf32> to vector<1x128xf32>
    %171 = vector.shape_cast %168 : vector<1x128xf32> to vector<1x1x128xf32>
    tpu.vector_store %arg8[%c0_91, %c0_92, %c0_93], %171 {strides = array<i32>} : memref<1x1x128xf32, #tpu.memory_space<vmem>>, vector<1x1x128xf32>,
    return
  }
  func.func @transform_0(%arg0: i32) -> (i32, i32, i32, i32) {
    %c0_i32 = arith.constant 0 : i32
    %c0_i32_0 = arith.constant 0 : i32
    %c0_i32_1 = arith.constant 0 : i32
    %c0_i32_2 = arith.constant 0 : i32
    return %arg0, %c0_i32, %c0_i32_0, %c0_i32_1 : i32, i32, i32, i32
  }
  func.func @transform_1(%arg0: i32) -> (i32, i32, i32) {
    %c0_i32 = arith.constant 0 : i32
    %c0_i32_0 = arith.constant 0 : i32
    %c0_i32_1 = arith.constant 0 : i32
    %c0_i32_2 = arith.constant 0 : i32
    return %c0_i32, %c0_i32_0, %c0_i32_1 : i32, i32, i32
  }
  func.func @transform_2(%arg0: i32) -> (i32, i32) {
    %c0_i32 = arith.constant 0 : i32
    %c0_i32_0 = arith.constant 0 : i32
    %c0_i32_1 = arith.constant 0 : i32
    return %c0_i32, %c0_i32_0 : i32, i32
  }
  func.func @transform_3(%arg0: i32) -> (i32, i32, i32) {
    %c0_i32 = arith.constant 0 : i32
    %c0_i32_0 = arith.constant 0 : i32
    %c0_i32_1 = arith.constant 0 : i32
    %c0_i32_2 = arith.constant 0 : i32
    return %c0_i32, %c0_i32_0, %c0_i32_1 : i32, i32, i32
  }
  func.func @transform_4(%arg0: i32) -> (i32, i32) {
    %c0_i32 = arith.constant 0 : i32
    %c0_i32_0 = arith.constant 0 : i32
    %c0_i32_1 = arith.constant 0 : i32
    return %c0_i32, %c0_i32_0 : i32, i32
  }
  func.func @transform_5(%arg0: i32) -> (i32, i32) {
    %c0_i32 = arith.constant 0 : i32
    %c0_i32_0 = arith.constant 0 : i32
    %c0_i32_1 = arith.constant 0 : i32
    return %c0_i32, %c0_i32_0 : i32, i32
  }
  func.func @transform_6(%arg0: i32) -> (i32, i32) {
    %c0_i32 = arith.constant 0 : i32
    %c0_i32_0 = arith.constant 0 : i32
    %c0_i32_1 = arith.constant 0 : i32
    return %c0_i32, %c0_i32_0 : i32, i32
  }
  func.func @transform_7(%arg0: i32) -> (i32, i32, i32) {
    %c0_i32 = arith.constant 0 : i32
    %c0_i32_0 = arith.constant 0 : i32
    %c0_i32_1 = arith.constant 0 : i32
    return %arg0, %c0_i32, %c0_i32_0 : i32, i32, i32
  }
}

</mosaic_0001>

<llo_original>
// kernel: wideresnet_forward.1
$region0: #{wideresnet_forward.1}
  #allocation0 [shape = 'u32[]', space=smem, size = 0x4, offset = 0x4, fixed_abs, tag = 'smem constant byte address 0x4 - core index']
  #allocation1 [shape = 'u32[72,128]{1,0:T(1,128)}', space=vmem, size = 0x9000, scoped, tag = 'internal scratch']
  #allocation2 [shape = 'f32[18,18,64]{2,1,0:T(8,128)}', space=vmem, size = 0x36000, scoped, tag = 'scratch operand']
  %s0 = inlined_call_operand.vmem [shape: f32[2,18,18,4], index: 0, kind: input, shape index: {}]
  %s1 = inlined_call_operand.vmem [shape: bf16[9,4,64], index: 1, kind: input, shape index: {}]
  %s2 = inlined_call_operand.vmem [shape: f32[1,64], index: 2, kind: input, shape index: {}]
  %s3 = inlined_call_operand.vmem [shape: bf16[9,64,512], index: 3, kind: input, shape index: {}]
  %s4 = inlined_call_operand.vmem [shape: f32[1,512], index: 4, kind: input, shape index: {}]
  %s5 = inlined_call_operand.vmem [shape: bf16[512,128], index: 5, kind: input, shape index: {}]
  %s6 = inlined_call_operand.vmem [shape: f32[1,128], index: 6, kind: input, shape index: {}]
  %s7 = inlined_call_operand.hbm [shape: f32[2,1,128], index: 7, kind: output, shape index: {}]
  %s8 = sld [smem:[#allocation0]]
  $region61: #{wideresnet_forward.1} parent=0
    _
  %s10 = ssub.s32 1, %s8
  %s11 = scalar_select 0, %s10, %s8
  $region1: #{wideresnet_forward.1} parent=0
    #allocation3 [shape = 'u8[1024]{0}', space=vmem, size = 0x400, scoped, tag = 'output window, operand 0']
    #allocation4 [shape = 's32[2]{0}', space=sflag, size = 0x8, scoped, tag = 'scoped memory for wideresnet_forward.1']
    %12 = vsyncpa [#allocation4], 0
    %s13 = scalar_lea.sflag [#allocation4], 1
    %14 = vsyncpa %s13, 0
    loop: start=0, step=1, limit=4
    $region2: #{wideresnet_forward.1} parent=1 // loop_pre_header
      _
    $region3: #{wideresnet_forward.1} parent=1 // loop_header
      %s16 = sphi 0, %s20
      %p17 = scmp.ge.s32.totalorder %s16, 4
      %s26 = sphi 0, %s28
      %s29 = sphi 0, %s26
      %s30 = sphi 0, %s29
      %s46 = sphi 0, %s30
      %s50 = sphi 0, %s50
      %s52 = sphi 0, %s50
      %s53 = sphi 0, %s52
      %s67 = sphi 0, %s53
      %s71 = sphi 0, %s71
      %s73 = sphi 0, %s71
      %s74 = sphi 0, %s73
      %s88 = sphi 0, %s74
      %s92 = sphi 0, %s92
      %s94 = sphi 0, %s92
      %s95 = sphi 0, %s94
      %s109 = sphi 0, %s95
      %s113 = sphi 0, %s113
      %s115 = sphi 0, %s113
      %s116 = sphi 0, %s115
      %s130 = sphi 0, %s116
      %s134 = sphi 0, %s134
      %s136 = sphi 0, %s134
      %s137 = sphi 0, %s136
      %s151 = sphi 0, %s137
      %s155 = sphi 0, %s155
      %s157 = sphi 0, %s155
      %s158 = sphi 0, %s157
      %s172 = sphi 0, %s158
      %s178 = sphi 0, %s180
      %s181 = sphi 0, %s178
      %s182 = sphi 0, %s181
      %s198 = sphi 0, %s182
    $region4: #{wideresnet_forward.1} parent=1 // loop_header_branch
      %19 = sbr.rel (%p17) target = $region8
    $region5: #{wideresnet_forward.1} parent=1 // loop_body
      %s21 = ssub.s32 %s16, 1
      %s22 = ssub.s32 %s16, 2
      %s23 = sadd.s32 %s16, 1
      %s24 = ssub.s32 %s16, %s23
      %p25 = scmp.eq.s32.totalorder %s24, 0
      %s27 = sadd.s32 %s26, 1
      %s28 = scalar_select %p25, %s26, %s27
      %p31 = pneg %p25
      %p32 = scmp.eq.s32.totalorder %s16, 1
      %p33 = por %p31, %p32
      %p34 = scmp.ne.s32.totalorder %s26, %s29
      %p35 = scmp.eq.s32.totalorder %s16, 0
      %p36 = por %p34, %p35
      %p37 = scmp.ne.s32.totalorder %s26, %s29
      %p38 = scmp.eq.s32.totalorder %s21, 1
      %p39 = por %p37, %p38
      %p40 = scmp.ne.s32.totalorder %s29, %s30
      %p41 = scmp.eq.s32.totalorder %s21, 0
      %p42 = por %p40, %p41
      %p43 = scmp.ne.s32.totalorder %s29, %s30
      %p44 = scmp.eq.s32.totalorder %s22, 1
      %p45 = por %p43, %p44
      %p47 = scmp.ne.s32.totalorder %s30, %s46
      %p48 = scmp.eq.s32.totalorder %s22, 0
      %p49 = por %p47, %p48
      %s51 = sadd.s32 %s50, 1
      %p54 = scmp.eq.s32.totalorder %s16, 1
      %p55 = scmp.ne.s32.totalorder %s50, %s52
      %p56 = scmp.eq.s32.totalorder %s16, 0
      %p57 = por %p55, %p56
      %p58 = scmp.ne.s32.totalorder %s50, %s52
      %p59 = scmp.eq.s32.totalorder %s21, 1
      %p60 = por %p58, %p59
      %p61 = scmp.ne.s32.totalorder %s52, %s53
      %p62 = scmp.eq.s32.totalorder %s21, 0
      %p63 = por %p61, %p62
      %p64 = scmp.ne.s32.totalorder %s52, %s53
      %p65 = scmp.eq.s32.totalorder %s22, 1
      %p66 = por %p64, %p65
      %p68 = scmp.ne.s32.totalorder %s53, %s67
      %p69 = scmp.eq.s32.totalorder %s22, 0
      %p70 = por %p68, %p69
      %s72 = sadd.s32 %s71, 1
      %p75 = scmp.eq.s32.totalorder %s16, 1
      %p76 = scmp.ne.s32.totalorder %s71, %s73
      %p77 = scmp.eq.s32.totalorder %s16, 0
      %p78 = por %p76, %p77
      %p79 = scmp.ne.s32.totalorder %s71, %s73
      %p80 = scmp.eq.s32.totalorder %s21, 1
      %p81 = por %p79, %p80
      %p82 = scmp.ne.s32.totalorder %s73, %s74
      %p83 = scmp.eq.s32.totalorder %s21, 0
      %p84 = por %p82, %p83
      %p85 = scmp.ne.s32.totalorder %s73, %s74
      %p86 = scmp.eq.s32.totalorder %s22, 1
      %p87 = por %p85, %p86
      %p89 = scmp.ne.s32.totalorder %s74, %s88
      %p90 = scmp.eq.s32.totalorder %s22, 0
      %p91 = por %p89, %p90
      %s93 = sadd.s32 %s92, 1
      %p96 = scmp.eq.s32.totalorder %s16, 1
      %p97 = scmp.ne.s32.totalorder %s92, %s94
      %p98 = scmp.eq.s32.totalorder %s16, 0
      %p99 = por %p97, %p98
      %p100 = scmp.ne.s32.totalorder %s92, %s94
      %p101 = scmp.eq.s32.totalorder %s21, 1
      %p102 = por %p100, %p101
      %p103 = scmp.ne.s32.totalorder %s94, %s95
      %p104 = scmp.eq.s32.totalorder %s21, 0
      %p105 = por %p103, %p104
      %p106 = scmp.ne.s32.totalorder %s94, %s95
      %p107 = scmp.eq.s32.totalorder %s22, 1
      %p108 = por %p106, %p107
      %p110 = scmp.ne.s32.totalorder %s95, %s109
      %p111 = scmp.eq.s32.totalorder %s22, 0
      %p112 = por %p110, %p111
      %s114 = sadd.s32 %s113, 1
      %p117 = scmp.eq.s32.totalorder %s16, 1
      %p118 = scmp.ne.s32.totalorder %s113, %s115
      %p119 = scmp.eq.s32.totalorder %s16, 0
      %p120 = por %p118, %p119
      %p121 = scmp.ne.s32.totalorder %s113, %s115
      %p122 = scmp.eq.s32.totalorder %s21, 1
      %p123 = por %p121, %p122
      %p124 = scmp.ne.s32.totalorder %s115, %s116
      %p125 = scmp.eq.s32.totalorder %s21, 0
      %p126 = por %p124, %p125
      %p127 = scmp.ne.s32.totalorder %s115, %s116
      %p128 = scmp.eq.s32.totalorder %s22, 1
      %p129 = por %p127, %p128
      %p131 = scmp.ne.s32.totalorder %s116, %s130
      %p132 = scmp.eq.s32.totalorder %s22, 0
      %p133 = por %p131, %p132
      %s135 = sadd.s32 %s134, 1
      %p138 = scmp.eq.s32.totalorder %s16, 1
      %p139 = scmp.ne.s32.totalorder %s134, %s136
      %p140 = scmp.eq.s32.totalorder %s16, 0
      %p141 = por %p139, %p140
      %p142 = scmp.ne.s32.totalorder %s134, %s136
      %p143 = scmp.eq.s32.totalorder %s21, 1
      %p144 = por %p142, %p143
      %p145 = scmp.ne.s32.totalorder %s136, %s137
      %p146 = scmp.eq.s32.totalorder %s21, 0
      %p147 = por %p145, %p146
      %p148 = scmp.ne.s32.totalorder %s136, %s137
      %p149 = scmp.eq.s32.totalorder %s22, 1
      %p150 = por %p148, %p149
      %p152 = scmp.ne.s32.totalorder %s137, %s151
      %p153 = scmp.eq.s32.totalorder %s22, 0
      %p154 = por %p152, %p153
      %s156 = sadd.s32 %s155, 1
      %p159 = scmp.eq.s32.totalorder %s16, 1
      %p160 = scmp.ne.s32.totalorder %s155, %s157
      %p161 = scmp.eq.s32.totalorder %s16, 0
      %p162 = por %p160, %p161
      %p163 = scmp.ne.s32.totalorder %s155, %s157
      %p164 = scmp.eq.s32.totalorder %s21, 1
      %p165 = por %p163, %p164
      %p166 = scmp.ne.s32.totalorder %s157, %s158
      %p167 = scmp.eq.s32.totalorder %s21, 0
      %p168 = por %p166, %p167
      %p169 = scmp.ne.s32.totalorder %s157, %s158
      %p170 = scmp.eq.s32.totalorder %s22, 1
      %p171 = por %p169, %p170
      %p173 = scmp.ne.s32.totalorder %s158, %s172
      %p174 = scmp.eq.s32.totalorder %s22, 0
      %p175 = por %p173, %p174
      %s176 = ssub.s32 %s16, %s23
      %p177 = scmp.eq.s32.totalorder %s176, 0
      %s179 = sadd.s32 %s178, 1
      %s180 = scalar_select %p177, %s178, %s179
      %p183 = pneg %p177
      %p184 = scmp.eq.s32.totalorder %s16, 1
      %p185 = por %p183, %p184
      %p186 = scmp.ne.s32.totalorder %s178, %s181
      %p187 = scmp.eq.s32.totalorder %s16, 0
      %p188 = por %p186, %p187
      %p189 = scmp.ne.s32.totalorder %s178, %s181
      %p190 = scmp.eq.s32.totalorder %s21, 1
      %p191 = por %p189, %p190
      %p192 = scmp.ne.s32.totalorder %s181, %s182
      %p193 = scmp.eq.s32.totalorder %s21, 0
      %p194 = por %p192, %p193
      %p195 = scmp.ne.s32.totalorder %s181, %s182
      %p196 = scmp.eq.s32.totalorder %s22, 1
      %p197 = por %p195, %p196
      %p199 = scmp.ne.s32.totalorder %s182, %s198
      %p200 = scmp.eq.s32.totalorder %s22, 0
      %p201 = por %p199, %p200
      %p202 = scmp.le.s32.totalorder 1, %s16
      %p203 = scmp.lt.s32.totalorder %s16, 3
      %p204 = pnand %p202, %p203
      %p205 = pneg %p204
      // Predicated region
      $region9: #{wideresnet_forward.1} parent=5 // pred_check
        _
      $region10: #{wideresnet_forward.1} parent=5 // pred_check_branch
        %207 = sbr.rel (%p204) target = $region12
      $region11: #{wideresnet_forward.1} parent=5 // pred_region
        %s208 = ssub.s32 %s16, 1
        // Predicated region
        $region13: #{wideresnet_forward.1} parent=11 // pred_check
          %p209 = pneg %p63
        $region14: #{wideresnet_forward.1} parent=11 // pred_check_branch
          %211 = sbr.rel (%p209) target = $region16
        $region15: #{wideresnet_forward.1} parent=11 // pred_region
          _
        $region16: #{wideresnet_forward.1} parent=11 // pred_fallthru
          _
        // Predicated region
        $region17: #{wideresnet_forward.1} parent=11 // pred_check
          %p212 = pneg %p84
        $region18: #{wideresnet_forward.1} parent=11 // pred_check_branch
          %214 = sbr.rel (%p212) target = $region20
        $region19: #{wideresnet_forward.1} parent=11 // pred_region
          _
        $region20: #{wideresnet_forward.1} parent=11 // pred_fallthru
          _
        // Predicated region
        $region21: #{wideresnet_forward.1} parent=11 // pred_check
          %p215 = pneg %p105
        $region22: #{wideresnet_forward.1} parent=11 // pred_check_branch
          %217 = sbr.rel (%p215) target = $region24
        $region23: #{wideresnet_forward.1} parent=11 // pred_region
          _
        $region24: #{wideresnet_forward.1} parent=11 // pred_fallthru
          _
        // Predicated region
        $region25: #{wideresnet_forward.1} parent=11 // pred_check
          %p218 = pneg %p126
        $region26: #{wideresnet_forward.1} parent=11 // pred_check_branch
          %220 = sbr.rel (%p218) target = $region28
        $region27: #{wideresnet_forward.1} parent=11 // pred_region
          _
        $region28: #{wideresnet_forward.1} parent=11 // pred_fallthru
          _
        // Predicated region
        $region29: #{wideresnet_forward.1} parent=11 // pred_check
          %p221 = pneg %p147
        $region30: #{wideresnet_forward.1} parent=11 // pred_check_branch
          %223 = sbr.rel (%p221) target = $region32
        $region31: #{wideresnet_forward.1} parent=11 // pred_region
          _
        $region32: #{wideresnet_forward.1} parent=11 // pred_fallthru
          _
        // Predicated region
        $region33: #{wideresnet_forward.1} parent=11 // pred_check
          %p224 = pneg %p168
        $region34: #{wideresnet_forward.1} parent=11 // pred_check_branch
          %226 = sbr.rel (%p224) target = $region36
        $region35: #{wideresnet_forward.1} parent=11 // pred_region
          _
        $region36: #{wideresnet_forward.1} parent=11 // pred_fallthru
          _
      $region12: #{wideresnet_forward.1} parent=5 // pred_fallthru
        _
      %p227 = scmp.lt.s32.totalorder %s16, 2
      // Predicated region
      $region37: #{wideresnet_forward.1} parent=5 // pred_check
        %p228 = pneg %p227
      $region38: #{wideresnet_forward.1} parent=5 // pred_check_branch
        %230 = sbr.rel (%p228) target = $region40
      $region39: #{wideresnet_forward.1} parent=5 // pred_region
        // Predicated region
        $region41: #{wideresnet_forward.1} parent=39 // pred_check
          %p231 = pneg %p36
        $region42: #{wideresnet_forward.1} parent=39 // pred_check_branch
          %233 = sbr.rel (%p231) target = $region44
        $region43: #{wideresnet_forward.1} parent=39 // pred_region
          %p234 = scmp.lt.s32.totalorder %s16, 1
          %s235 = scalar_select %p234, %s16, 1
          %s236 = smul.addr %s235, 54
          %s237 = smul.addr %s236, 8
          %s238 = scalar_lea.vmem %s0, %s237
        $region44: #{wideresnet_forward.1} parent=39 // pred_fallthru
          _
      $region40: #{wideresnet_forward.1} parent=5 // pred_fallthru
        _
      %p239 = scmp.le.s32.totalorder 1, %s16
      %p240 = scmp.lt.s32.totalorder %s16, 3
      %p241 = pnand %p239, %p240
      %p242 = pneg %p241
      // Predicated region
      $region45: #{wideresnet_forward.1} parent=5 // pred_check
        _
      $region46: #{wideresnet_forward.1} parent=5 // pred_check_branch
        %244 = sbr.rel (%p241) target = $region48
      $region47: #{wideresnet_forward.1} parent=5 // pred_region
        %s245 = ssub.s32 %s16, 1
        %p246 = scmp.lt.s32.totalorder %s21, 1
        %s247 = scalar_select %p246, %s21, 1
        %s248 = smul.addr %s247, 54
        %s249 = smul.addr %s248, 8
        %s250 = scalar_lea.vmem %s0, %s249
        %p251 = pneg %p42
        %p252 = pneg %p39
        %p253 = pneg %p63
        %p254 = pneg %p60
        %p255 = pneg %p84
        %p256 = pneg %p81
        %p257 = pneg %p105
        %p258 = pneg %p102
        %p259 = pneg %p126
        %p260 = pneg %p123
        %p261 = pneg %p147
        %p262 = pneg %p144
        %p263 = pneg %p168
        %p264 = pneg %p165
        %p265 = pneg %p194
        %p266 = pneg %p191
        %s267 = sand.u32 %s181, 1
        %s268 = scalar_lea.sflag [#allocation4], %s267
        %s269 = sand.u32 %s181, 1
        %s270 = scalar_lea.vmem [#allocation3], %s269
        %p271 = scmp.lt.s32.totalorder %s21, 1
        %s272 = scalar_select %p271, %s21, 1
        %s273 = smul.addr %s272, 54
        %s274 = smul.addr %s273, 8
        %s275 = scalar_lea.vmem %s0, %s274
        %v277 = vld [vmem:[%s275] sm:$0xff]
        %v278 = vld [vmem:[%s275 + $0x8] sm:$0xff]
        %v279 = vld [vmem:[%s275 + $0x10] sm:$0x3]
        %v280 = vld [vmem:[%s275 + $0x18] sm:$0xff]
        %v281 = vld [vmem:[%s275 + $0x20] sm:$0xff]
        %v282 = vld [vmem:[%s275 + $0x28] sm:$0x3]
        %v283 = vld [vmem:[%s275 + $0x30] sm:$0xff]
        %v284 = vld [vmem:[%s275 + $0x38] sm:$0xff]
        %v285 = vld [vmem:[%s275 + $0x40] sm:$0x3]
        %v286 = vld [vmem:[%s275 + $0x48] sm:$0xff]
        %v287 = vld [vmem:[%s275 + $0x50] sm:$0xff]
        %v288 = vld [vmem:[%s275 + $0x58] sm:$0x3]
        %v289 = vld [vmem:[%s275 + $0x60] sm:$0xff]
        %v290 = vld [vmem:[%s275 + $0x68] sm:$0xff]
        %v291 = vld [vmem:[%s275 + $0x70] sm:$0x3]
        %v292 = vld [vmem:[%s275 + $0x78] sm:$0xff]
        %v293 = vld [vmem:[%s275 + $0x80] sm:$0xff]
        %v294 = vld [vmem:[%s275 + $0x88] sm:$0x3]
        %v295 = vld [vmem:[%s275 + $0x90] sm:$0xff]
        %v296 = vld [vmem:[%s275 + $0x98] sm:$0xff]
        %v297 = vld [vmem:[%s275 + $0xa0] sm:$0x3]
        %v298 = vld [vmem:[%s275 + $0xa8] sm:$0xff]
        %v299 = vld [vmem:[%s275 + $0xb0] sm:$0xff]
        %v300 = vld [vmem:[%s275 + $0xb8] sm:$0x3]
        %v301 = vld [vmem:[%s275 + $0xc0] sm:$0xff]
        %v302 = vld [vmem:[%s275 + $0xc8] sm:$0xff]
        %v303 = vld [vmem:[%s275 + $0xd0] sm:$0x3]
        %v304 = vld [vmem:[%s275 + $0xd8] sm:$0xff]
        %v305 = vld [vmem:[%s275 + $0xe0] sm:$0xff]
        %v306 = vld [vmem:[%s275 + $0xe8] sm:$0x3]
        %v307 = vld [vmem:[%s275 + $0xf0] sm:$0xff]
        %v308 = vld [vmem:[%s275 + $0xf8] sm:$0xff]
        %v309 = vld [vmem:[%s275 + $0x100] sm:$0x3]
        %v310 = vld [vmem:[%s275 + $0x108] sm:$0xff]
        %v311 = vld [vmem:[%s275 + $0x110] sm:$0xff]
        %v312 = vld [vmem:[%s275 + $0x118] sm:$0x3]
        %v313 = vld [vmem:[%s275 + $0x120] sm:$0xff]
        %v314 = vld [vmem:[%s275 + $0x128] sm:$0xff]
        %v315 = vld [vmem:[%s275 + $0x130] sm:$0x3]
        %v316 = vld [vmem:[%s275 + $0x138] sm:$0xff]
        %v317 = vld [vmem:[%s275 + $0x140] sm:$0xff]
        %v318 = vld [vmem:[%s275 + $0x148] sm:$0x3]
        %v319 = vld [vmem:[%s275 + $0x150] sm:$0xff]
        %v320 = vld [vmem:[%s275 + $0x158] sm:$0xff]
        %v321 = vld [vmem:[%s275 + $0x160] sm:$0x3]
        %v322 = vld [vmem:[%s275 + $0x168] sm:$0xff]
        %v323 = vld [vmem:[%s275 + $0x170] sm:$0xff]
        %v324 = vld [vmem:[%s275 + $0x178] sm:$0x3]
        %v325 = vld [vmem:[%s275 + $0x180] sm:$0xff]
        %v326 = vld [vmem:[%s275 + $0x188] sm:$0xff]
        %v327 = vld [vmem:[%s275 + $0x190] sm:$0x3]
        %v328 = vld [vmem:[%s275 + $0x198] sm:$0xff]
        %v329 = vld [vmem:[%s275 + $0x1a0] sm:$0xff]
        %v330 = vld [vmem:[%s275 + $0x1a8] sm:$0x3]
        %v331 = vpack.c.bf16 %v278, %v277
        %v332 = vpack.c.bf16 %v281, %v280
        %v333 = vpack.c.bf16 %v284, %v283
        %v334 = vpack.c.bf16 %v287, %v286
        %v335 = vpack.c.bf16 %v290, %v289
        %v336 = vpack.c.bf16 %v293, %v292
        %v337 = vpack.c.bf16 %v296, %v295
        %v338 = vpack.c.bf16 %v299, %v298
        %v339 = vpack.c.bf16 %v302, %v301
        %v340 = vpack.c.bf16 %v305, %v304
        %v341 = vpack.c.bf16 %v308, %v307
        %v342 = vpack.c.bf16 %v311, %v310
        %v343 = vpack.c.bf16 %v314, %v313
        %v344 = vpack.c.bf16 %v317, %v316
        %v345 = vpack.c.bf16 %v320, %v319
        %v346 = vpack.c.bf16 %v323, %v322
        %v347 = vld [vmem:[%s1] sm:$0x3]
        %vm396 = vcmask 1046528
        %v397 = vrot.slane %v277, 1
        %v398 = vrot.slane %v278, 1
        %v399 = vsel %vm396, %v397, %v398
        %v400 = vrot.slane %v279, 1
        %v401 = vsel %vm396, %v398, %v400
        %v402 = vrot.slane %v280, 1
        %v403 = vrot.slane %v281, 1
        %v404 = vsel %vm396, %v402, %v403
        %v405 = vrot.slane %v282, 1
        %v406 = vsel %vm396, %v403, %v405
        %v407 = vrot.slane %v283, 1
        %v408 = vrot.slane %v284, 1
        %v409 = vsel %vm396, %v407, %v408
        %v410 = vrot.slane %v285, 1
        %v411 = vsel %vm396, %v408, %v410
        %v412 = vrot.slane %v286, 1
        %v413 = vrot.slane %v287, 1
        %v414 = vsel %vm396, %v412, %v413
        %v415 = vrot.slane %v288, 1
        %v416 = vsel %vm396, %v413, %v415
        %v417 = vrot.slane %v289, 1
        %v418 = vrot.slane %v290, 1
        %v419 = vsel %vm396, %v417, %v418
        %v420 = vrot.slane %v291, 1
        %v421 = vsel %vm396, %v418, %v420
        %v422 = vrot.slane %v292, 1
        %v423 = vrot.slane %v293, 1
        %v424 = vsel %vm396, %v422, %v423
        %v425 = vrot.slane %v294, 1
        %v426 = vsel %vm396, %v423, %v425
        %v427 = vrot.slane %v295, 1
        %v428 = vrot.slane %v296, 1
        %v429 = vsel %vm396, %v427, %v428
        %v430 = vrot.slane %v297, 1
        %v431 = vsel %vm396, %v428, %v430
        %v432 = vrot.slane %v298, 1
        %v433 = vrot.slane %v299, 1
        %v434 = vsel %vm396, %v432, %v433
        %v435 = vrot.slane %v300, 1
        %v436 = vsel %vm396, %v433, %v435
        %v437 = vrot.slane %v301, 1
        %v438 = vrot.slane %v302, 1
        %v439 = vsel %vm396, %v437, %v438
        %v440 = vrot.slane %v303, 1
        %v441 = vsel %vm396, %v438, %v440
        %v442 = vrot.slane %v304, 1
        %v443 = vrot.slane %v305, 1
        %v444 = vsel %vm396, %v442, %v443
        %v445 = vrot.slane %v306, 1
        %v446 = vsel %vm396, %v443, %v445
        %v447 = vrot.slane %v307, 1
        %v448 = vrot.slane %v308, 1
        %v449 = vsel %vm396, %v447, %v448
        %v450 = vrot.slane %v309, 1
        %v451 = vsel %vm396, %v448, %v450
        %v452 = vrot.slane %v310, 1
        %v453 = vrot.slane %v311, 1
        %v454 = vsel %vm396, %v452, %v453
        %v455 = vrot.slane %v312, 1
        %v456 = vsel %vm396, %v453, %v455
        %v457 = vrot.slane %v313, 1
        %v458 = vrot.slane %v314, 1
        %v459 = vsel %vm396, %v457, %v458
        %v460 = vrot.slane %v315, 1
        %v461 = vsel %vm396, %v458, %v460
        %v462 = vrot.slane %v316, 1
        %v463 = vrot.slane %v317, 1
        %v464 = vsel %vm396, %v462, %v463
        %v465 = vrot.slane %v318, 1
        %v466 = vsel %vm396, %v463, %v465
        %v467 = vrot.slane %v319, 1
        %v468 = vrot.slane %v320, 1
        %v469 = vsel %vm396, %v467, %v468
        %v470 = vrot.slane %v321, 1
        %v471 = vsel %vm396, %v468, %v470
        %v472 = vrot.slane %v322, 1
        %v473 = vrot.slane %v323, 1
        %v474 = vsel %vm396, %v472, %v473
        %v475 = vrot.slane %v324, 1
        %v476 = vsel %vm396, %v473, %v475
        %v509 = vpack.c.bf16 %v401, %v399
        %v510 = vpack.c.bf16 %v406, %v404
        %v511 = vpack.c.bf16 %v411, %v409
        %v512 = vpack.c.bf16 %v416, %v414
        %v513 = vpack.c.bf16 %v421, %v419
        %v514 = vpack.c.bf16 %v426, %v424
        %v515 = vpack.c.bf16 %v431, %v429
        %v516 = vpack.c.bf16 %v436, %v434
        %v517 = vpack.c.bf16 %v441, %v439
        %v518 = vpack.c.bf16 %v446, %v444
        %v519 = vpack.c.bf16 %v451, %v449
        %v520 = vpack.c.bf16 %v456, %v454
        %v521 = vpack.c.bf16 %v461, %v459
        %v522 = vpack.c.bf16 %v466, %v464
        %v523 = vpack.c.bf16 %v471, %v469
        %v524 = vpack.c.bf16 %v476, %v474
        %s525 = scalar_lea.vmem %s1, 2
        %v526 = vld [vmem:[%s525] sm:$0x3]
        %vm527 = vcmask 31744
        %v529 = vsel %vm527, %v509, 0
        %v532 = vsel %vm527, %v510, 0
        %v535 = vsel %vm527, %v511, 0
        %v538 = vsel %vm527, %v512, 0
        %v541 = vsel %vm527, %v513, 0
        %v544 = vsel %vm527, %v514, 0
        %v547 = vsel %vm527, %v515, 0
        %v550 = vsel %vm527, %v516, 0
        %v553 = vsel %vm527, %v517, 0
        %v556 = vsel %vm527, %v518, 0
        %v559 = vsel %vm527, %v519, 0
        %v562 = vsel %vm527, %v520, 0
        %v565 = vsel %vm527, %v521, 0
        %v568 = vsel %vm527, %v522, 0
        %v571 = vsel %vm527, %v523, 0
        %v574 = vsel %vm527, %v524, 0
        %vm576 = vcmask 1041408
        %v578 = vsel %vm576, %v526, 0
        %580 = vmatpush.bf16.msra.mxu0 0
        %581 = vmatpush.bf16.msra.mxu0 0
        %582 = vmatpush.bf16.msra.mxu0 0
        %583 = vmatpush.bf16.msra.mxu0 0
        %584 = vmatpush.bf16.msra.mxu0 0
        %585 = vmatpush.bf16.msra.mxu0 0
        %586 = vmatpush.bf16.msra.mxu0 0
        %587 = vmatpush.bf16.msra.mxu0 %v578
        %588 = vmatmul.bf16.gmra.mxu0 %v529
        %v589 = vpop.f32.mrf.mxu0
        %v590 = vadd.f32 0.0, %v589
        %v591 = vpop.f32.mrf.mxu0
        %v592 = vadd.f32 0.0, %v591
        %593 = vmatmul.bf16.gmra.mxu0 %v532
        %v594 = vpop.f32.mrf.mxu0
        %v595 = vadd.f32 0.0, %v594
        %v596 = vpop.f32.mrf.mxu0
        %v597 = vadd.f32 0.0, %v596
        %598 = vmatmul.bf16.gmra.mxu0 %v535
        %v599 = vpop.f32.mrf.mxu0
        %v600 = vadd.f32 0.0, %v599
        %v601 = vpop.f32.mrf.mxu0
        %v602 = vadd.f32 0.0, %v601
        %603 = vmatmul.bf16.gmra.mxu0 %v538
        %v604 = vpop.f32.mrf.mxu0
        %v605 = vadd.f32 0.0, %v604
        %v606 = vpop.f32.mrf.mxu0
        %v607 = vadd.f32 0.0, %v606
        %608 = vmatmul.bf16.gmra.mxu0 %v541
        %v609 = vpop.f32.mrf.mxu0
        %v610 = vadd.f32 0.0, %v609
        %v611 = vpop.f32.mrf.mxu0
        %v612 = vadd.f32 0.0, %v611
        %613 = vmatmul.bf16.gmra.mxu0 %v544
        %v614 = vpop.f32.mrf.mxu0
        %v615 = vadd.f32 0.0, %v614
        %v616 = vpop.f32.mrf.mxu0
        %v617 = vadd.f32 0.0, %v616
        %618 = vmatmul.bf16.gmra.mxu0 %v547
        %v619 = vpop.f32.mrf.mxu0
        %v620 = vadd.f32 0.0, %v619
        %v621 = vpop.f32.mrf.mxu0
        %v622 = vadd.f32 0.0, %v621
        %623 = vmatmul.bf16.gmra.mxu0 %v550
        %v624 = vpop.f32.mrf.mxu0
        %v625 = vadd.f32 0.0, %v624
        %v626 = vpop.f32.mrf.mxu0
        %v627 = vadd.f32 0.0, %v626
        %628 = vmatmul.bf16.gmra.mxu0 %v553
        %v629 = vpop.f32.mrf.mxu0
        %v630 = vadd.f32 0.0, %v629
        %v631 = vpop.f32.mrf.mxu0
        %v632 = vadd.f32 0.0, %v631
        %633 = vmatmul.bf16.gmra.mxu0 %v556
        %v634 = vpop.f32.mrf.mxu0
        %v635 = vadd.f32 0.0, %v634
        %v636 = vpop.f32.mrf.mxu0
        %v637 = vadd.f32 0.0, %v636
        %638 = vmatmul.bf16.gmra.mxu0 %v559
        %v639 = vpop.f32.mrf.mxu0
        %v640 = vadd.f32 0.0, %v639
        %v641 = vpop.f32.mrf.mxu0
        %v642 = vadd.f32 0.0, %v641
        %643 = vmatmul.bf16.gmra.mxu0 %v562
        %v644 = vpop.f32.mrf.mxu0
        %v645 = vadd.f32 0.0, %v644
        %v646 = vpop.f32.mrf.mxu0
        %v647 = vadd.f32 0.0, %v646
        %648 = vmatmul.bf16.gmra.mxu0 %v565
        %v649 = vpop.f32.mrf.mxu0
        %v650 = vadd.f32 0.0, %v649
        %v651 = vpop.f32.mrf.mxu0
        %v652 = vadd.f32 0.0, %v651
        %653 = vmatmul.bf16.gmra.mxu0 %v568
        %v654 = vpop.f32.mrf.mxu0
        %v655 = vadd.f32 0.0, %v654
        %v656 = vpop.f32.mrf.mxu0
        %v657 = vadd.f32 0.0, %v656
        %658 = vmatmul.bf16.gmra.mxu0 %v571
        %v659 = vpop.f32.mrf.mxu0
        %v660 = vadd.f32 0.0, %v659
        %v661 = vpop.f32.mrf.mxu0
        %v662 = vadd.f32 0.0, %v661
        %663 = vmatmul.bf16.gmra.mxu0 %v574
        %v664 = vpop.f32.mrf.mxu0
        %v665 = vadd.f32 0.0, %v664
        %v666 = vpop.f32.mrf.mxu0
        %v667 = vadd.f32 0.0, %v666
        %668 = vdwg.mxu0
        %v670 = vsel %vm527, %v331, 0
        %v673 = vsel %vm527, %v332, 0
        %v676 = vsel %vm527, %v333, 0
        %v679 = vsel %vm527, %v334, 0
        %v682 = vsel %vm527, %v335, 0
        %v685 = vsel %vm527, %v336, 0
        %v688 = vsel %vm527, %v337, 0
        %v691 = vsel %vm527, %v338, 0
        %v694 = vsel %vm527, %v339, 0
        %v697 = vsel %vm527, %v340, 0
        %v700 = vsel %vm527, %v341, 0
        %v703 = vsel %vm527, %v342, 0
        %v706 = vsel %vm527, %v343, 0
        %v709 = vsel %vm527, %v344, 0
        %v712 = vsel %vm527, %v345, 0
        %v715 = vsel %vm527, %v346, 0
        %v718 = vsel %vm576, %v347, 0
        %720 = vmatpush.bf16.msra.mxu0 0
        %721 = vmatpush.bf16.msra.mxu0 0
        %722 = vmatpush.bf16.msra.mxu0 0
        %723 = vmatpush.bf16.msra.mxu0 0
        %724 = vmatpush.bf16.msra.mxu0 0
        %725 = vmatpush.bf16.msra.mxu0 0
        %726 = vmatpush.bf16.msra.mxu0 0
        %727 = vmatpush.bf16.msra.mxu0 %v718
        %728 = vmatmul.bf16.gmra.mxu0 %v670
        %v729 = vpop.f32.mrf.mxu0
        %v730 = vadd.f32 %v590, %v729
        %v731 = vpop.f32.mrf.mxu0
        %v732 = vadd.f32 %v592, %v731
        %733 = vmatmul.bf16.gmra.mxu0 %v673
        %v734 = vpop.f32.mrf.mxu0
        %v735 = vadd.f32 %v595, %v734
        %v736 = vpop.f32.mrf.mxu0
        %v737 = vadd.f32 %v597, %v736
        %738 = vmatmul.bf16.gmra.mxu0 %v676
        %v739 = vpop.f32.mrf.mxu0
        %v740 = vadd.f32 %v600, %v739
        %v741 = vpop.f32.mrf.mxu0
        %v742 = vadd.f32 %v602, %v741
        %743 = vmatmul.bf16.gmra.mxu0 %v679
        %v744 = vpop.f32.mrf.mxu0
        %v745 = vadd.f32 %v605, %v744
        %v746 = vpop.f32.mrf.mxu0
        %v747 = vadd.f32 %v607, %v746
        %748 = vmatmul.bf16.gmra.mxu0 %v682
        %v749 = vpop.f32.mrf.mxu0
        %v750 = vadd.f32 %v610, %v749
        %v751 = vpop.f32.mrf.mxu0
        %v752 = vadd.f32 %v612, %v751
        %753 = vmatmul.bf16.gmra.mxu0 %v685
        %v754 = vpop.f32.mrf.mxu0
        %v755 = vadd.f32 %v615, %v754
        %v756 = vpop.f32.mrf.mxu0
        %v757 = vadd.f32 %v617, %v756
        %758 = vmatmul.bf16.gmra.mxu0 %v688
        %v759 = vpop.f32.mrf.mxu0
        %v760 = vadd.f32 %v620, %v759
        %v761 = vpop.f32.mrf.mxu0
        %v762 = vadd.f32 %v622, %v761
        %763 = vmatmul.bf16.gmra.mxu0 %v691
        %v764 = vpop.f32.mrf.mxu0
        %v765 = vadd.f32 %v625, %v764
        %v766 = vpop.f32.mrf.mxu0
        %v767 = vadd.f32 %v627, %v766
        %768 = vmatmul.bf16.gmra.mxu0 %v694
        %v769 = vpop.f32.mrf.mxu0
        %v770 = vadd.f32 %v630, %v769
        %v771 = vpop.f32.mrf.mxu0
        %v772 = vadd.f32 %v632, %v771
        %773 = vmatmul.bf16.gmra.mxu0 %v697
        %v774 = vpop.f32.mrf.mxu0
        %v775 = vadd.f32 %v635, %v774
        %v776 = vpop.f32.mrf.mxu0
        %v777 = vadd.f32 %v637, %v776
        %778 = vmatmul.bf16.gmra.mxu0 %v700
        %v779 = vpop.f32.mrf.mxu0
        %v780 = vadd.f32 %v640, %v779
        %v781 = vpop.f32.mrf.mxu0
        %v782 = vadd.f32 %v642, %v781
        %783 = vmatmul.bf16.gmra.mxu0 %v703
        %v784 = vpop.f32.mrf.mxu0
        %v785 = vadd.f32 %v645, %v784
        %v786 = vpop.f32.mrf.mxu0
        %v787 = vadd.f32 %v647, %v786
        %788 = vmatmul.bf16.gmra.mxu0 %v706
        %v789 = vpop.f32.mrf.mxu0
        %v790 = vadd.f32 %v650, %v789
        %v791 = vpop.f32.mrf.mxu0
        %v792 = vadd.f32 %v652, %v791
        %793 = vmatmul.bf16.gmra.mxu0 %v709
        %v794 = vpop.f32.mrf.mxu0
        %v795 = vadd.f32 %v655, %v794
        %v796 = vpop.f32.mrf.mxu0
        %v797 = vadd.f32 %v657, %v796
        %798 = vmatmul.bf16.gmra.mxu0 %v712
        %v799 = vpop.f32.mrf.mxu0
        %v800 = vadd.f32 %v660, %v799
        %v801 = vpop.f32.mrf.mxu0
        %v802 = vadd.f32 %v662, %v801
        %803 = vmatmul.bf16.gmra.mxu0 %v715
        %v804 = vpop.f32.mrf.mxu0
        %v805 = vadd.f32 %v665, %v804
        %v806 = vpop.f32.mrf.mxu0
        %v807 = vadd.f32 %v667, %v806
        %808 = vdwg.mxu0
        %vm809 = vcmask 1045504
        %v810 = vrot.slane %v277, 2
        %v811 = vrot.slane %v278, 2
        %v812 = vsel %vm809, %v810, %v811
        %v813 = vrot.slane %v279, 2
        %v814 = vsel %vm809, %v811, %v813
        %v815 = vrot.slane %v280, 2
        %v816 = vrot.slane %v281, 2
        %v817 = vsel %vm809, %v815, %v816
        %v818 = vrot.slane %v282, 2
        %v819 = vsel %vm809, %v816, %v818
        %v820 = vrot.slane %v283, 2
        %v821 = vrot.slane %v284, 2
        %v822 = vsel %vm809, %v820, %v821
        %v823 = vrot.slane %v285, 2
        %v824 = vsel %vm809, %v821, %v823
        %v825 = vrot.slane %v286, 2
        %v826 = vrot.slane %v287, 2
        %v827 = vsel %vm809, %v825, %v826
        %v828 = vrot.slane %v288, 2
        %v829 = vsel %vm809, %v826, %v828
        %v830 = vrot.slane %v289, 2
        %v831 = vrot.slane %v290, 2
        %v832 = vsel %vm809, %v830, %v831
        %v833 = vrot.slane %v291, 2
        %v834 = vsel %vm809, %v831, %v833
        %v835 = vrot.slane %v292, 2
        %v836 = vrot.slane %v293, 2
        %v837 = vsel %vm809, %v835, %v836
        %v838 = vrot.slane %v294, 2
        %v839 = vsel %vm809, %v836, %v838
        %v840 = vrot.slane %v295, 2
        %v841 = vrot.slane %v296, 2
        %v842 = vsel %vm809, %v840, %v841
        %v843 = vrot.slane %v297, 2
        %v844 = vsel %vm809, %v841, %v843
        %v845 = vrot.slane %v298, 2
        %v846 = vrot.slane %v299, 2
        %v847 = vsel %vm809, %v845, %v846
        %v848 = vrot.slane %v300, 2
        %v849 = vsel %vm809, %v846, %v848
        %v850 = vrot.slane %v301, 2
        %v851 = vrot.slane %v302, 2
        %v852 = vsel %vm809, %v850, %v851
        %v853 = vrot.slane %v303, 2
        %v854 = vsel %vm809, %v851, %v853
        %v855 = vrot.slane %v304, 2
        %v856 = vrot.slane %v305, 2
        %v857 = vsel %vm809, %v855, %v856
        %v858 = vrot.slane %v306, 2
        %v859 = vsel %vm809, %v856, %v858
        %v860 = vrot.slane %v307, 2
        %v861 = vrot.slane %v308, 2
        %v862 = vsel %vm809, %v860, %v861
        %v863 = vrot.slane %v309, 2
        %v864 = vsel %vm809, %v861, %v863
        %v865 = vrot.slane %v310, 2
        %v866 = vrot.slane %v311, 2
        %v867 = vsel %vm809, %v865, %v866
        %v868 = vrot.slane %v312, 2
        %v869 = vsel %vm809, %v866, %v868
        %v870 = vrot.slane %v313, 2
        %v871 = vrot.slane %v314, 2
        %v872 = vsel %vm809, %v870, %v871
        %v873 = vrot.slane %v315, 2
        %v874 = vsel %vm809, %v871, %v873
        %v875 = vrot.slane %v316, 2
        %v876 = vrot.slane %v317, 2
        %v877 = vsel %vm809, %v875, %v876
        %v878 = vrot.slane %v318, 2
        %v879 = vsel %vm809, %v876, %v878
        %v880 = vrot.slane %v319, 2
        %v881 = vrot.slane %v320, 2
        %v882 = vsel %vm809, %v880, %v881
        %v883 = vrot.slane %v321, 2
        %v884 = vsel %vm809, %v881, %v883
        %v885 = vrot.slane %v322, 2
        %v886 = vrot.slane %v323, 2
        %v887 = vsel %vm809, %v885, %v886
        %v888 = vrot.slane %v324, 2
        %v889 = vsel %vm809, %v886, %v888
        %v922 = vpack.c.bf16 %v814, %v812
        %v923 = vpack.c.bf16 %v819, %v817
        %v924 = vpack.c.bf16 %v824, %v822
        %v925 = vpack.c.bf16 %v829, %v827
        %v926 = vpack.c.bf16 %v834, %v832
        %v927 = vpack.c.bf16 %v839, %v837
        %v928 = vpack.c.bf16 %v844, %v842
        %v929 = vpack.c.bf16 %v849, %v847
        %v930 = vpack.c.bf16 %v854, %v852
        %v931 = vpack.c.bf16 %v859, %v857
        %v932 = vpack.c.bf16 %v864, %v862
        %v933 = vpack.c.bf16 %v869, %v867
        %v934 = vpack.c.bf16 %v874, %v872
        %v935 = vpack.c.bf16 %v879, %v877
        %v936 = vpack.c.bf16 %v884, %v882
        %v937 = vpack.c.bf16 %v889, %v887
        %s938 = scalar_lea.vmem %s1, 4
        %v939 = vld [vmem:[%s938] sm:$0x3]
        %v941 = vsel %vm527, %v922, 0
        %v944 = vsel %vm527, %v923, 0
        %v947 = vsel %vm527, %v924, 0
        %v950 = vsel %vm527, %v925, 0
        %v953 = vsel %vm527, %v926, 0
        %v956 = vsel %vm527, %v927, 0
        %v959 = vsel %vm527, %v928, 0
        %v962 = vsel %vm527, %v929, 0
        %v965 = vsel %vm527, %v930, 0
        %v968 = vsel %vm527, %v931, 0
        %v971 = vsel %vm527, %v932, 0
        %v974 = vsel %vm527, %v933, 0
        %v977 = vsel %vm527, %v934, 0
        %v980 = vsel %vm527, %v935, 0
        %v983 = vsel %vm527, %v936, 0
        %v986 = vsel %vm527, %v937, 0
        %v989 = vsel %vm576, %v939, 0
        %991 = vmatpush.bf16.msra.mxu0 0
        %992 = vmatpush.bf16.msra.mxu0 0
        %993 = vmatpush.bf16.msra.mxu0 0
        %994 = vmatpush.bf16.msra.mxu0 0
        %995 = vmatpush.bf16.msra.mxu0 0
        %996 = vmatpush.bf16.msra.mxu0 0
        %997 = vmatpush.bf16.msra.mxu0 0
        %998 = vmatpush.bf16.msra.mxu0 %v989
        %999 = vmatmul.bf16.gmra.mxu0 %v941
        %v1000 = vpop.f32.mrf.mxu0
        %v1001 = vadd.f32 0.0, %v1000
        %v1002 = vpop.f32.mrf.mxu0
        %v1003 = vadd.f32 0.0, %v1002
        %1004 = vmatmul.bf16.gmra.mxu0 %v944
        %v1005 = vpop.f32.mrf.mxu0
        %v1006 = vadd.f32 0.0, %v1005
        %v1007 = vpop.f32.mrf.mxu0
        %v1008 = vadd.f32 0.0, %v1007
        %1009 = vmatmul.bf16.gmra.mxu0 %v947
        %v1010 = vpop.f32.mrf.mxu0
        %v1011 = vadd.f32 0.0, %v1010
        %v1012 = vpop.f32.mrf.mxu0
        %v1013 = vadd.f32 0.0, %v1012
        %1014 = vmatmul.bf16.gmra.mxu0 %v950
        %v1015 = vpop.f32.mrf.mxu0
        %v1016 = vadd.f32 0.0, %v1015
        %v1017 = vpop.f32.mrf.mxu0
        %v1018 = vadd.f32 0.0, %v1017
        %1019 = vmatmul.bf16.gmra.mxu0 %v953
        %v1020 = vpop.f32.mrf.mxu0
        %v1021 = vadd.f32 0.0, %v1020
        %v1022 = vpop.f32.mrf.mxu0
        %v1023 = vadd.f32 0.0, %v1022
        %1024 = vmatmul.bf16.gmra.mxu0 %v956
        %v1025 = vpop.f32.mrf.mxu0
        %v1026 = vadd.f32 0.0, %v1025
        %v1027 = vpop.f32.mrf.mxu0
        %v1028 = vadd.f32 0.0, %v1027
        %1029 = vmatmul.bf16.gmra.mxu0 %v959
        %v1030 = vpop.f32.mrf.mxu0
        %v1031 = vadd.f32 0.0, %v1030
        %v1032 = vpop.f32.mrf.mxu0
        %v1033 = vadd.f32 0.0, %v1032
        %1034 = vmatmul.bf16.gmra.mxu0 %v962
        %v1035 = vpop.f32.mrf.mxu0
        %v1036 = vadd.f32 0.0, %v1035
        %v1037 = vpop.f32.mrf.mxu0
        %v1038 = vadd.f32 0.0, %v1037
        %1039 = vmatmul.bf16.gmra.mxu0 %v965
        %v1040 = vpop.f32.mrf.mxu0
        %v1041 = vadd.f32 0.0, %v1040
        %v1042 = vpop.f32.mrf.mxu0
        %v1043 = vadd.f32 0.0, %v1042
        %1044 = vmatmul.bf16.gmra.mxu0 %v968
        %v1045 = vpop.f32.mrf.mxu0
        %v1046 = vadd.f32 0.0, %v1045
        %v1047 = vpop.f32.mrf.mxu0
        %v1048 = vadd.f32 0.0, %v1047
        %1049 = vmatmul.bf16.gmra.mxu0 %v971
        %v1050 = vpop.f32.mrf.mxu0
        %v1051 = vadd.f32 0.0, %v1050
        %v1052 = vpop.f32.mrf.mxu0
        %v1053 = vadd.f32 0.0, %v1052
        %1054 = vmatmul.bf16.gmra.mxu0 %v974
        %v1055 = vpop.f32.mrf.mxu0
        %v1056 = vadd.f32 0.0, %v1055
        %v1057 = vpop.f32.mrf.mxu0
        %v1058 = vadd.f32 0.0, %v1057
        %1059 = vmatmul.bf16.gmra.mxu0 %v977
        %v1060 = vpop.f32.mrf.mxu0
        %v1061 = vadd.f32 0.0, %v1060
        %v1062 = vpop.f32.mrf.mxu0
        %v1063 = vadd.f32 0.0, %v1062
        %1064 = vmatmul.bf16.gmra.mxu0 %v980
        %v1065 = vpop.f32.mrf.mxu0
        %v1066 = vadd.f32 0.0, %v1065
        %v1067 = vpop.f32.mrf.mxu0
        %v1068 = vadd.f32 0.0, %v1067
        %1069 = vmatmul.bf16.gmra.mxu0 %v983
        %v1070 = vpop.f32.mrf.mxu0
        %v1071 = vadd.f32 0.0, %v1070
        %v1072 = vpop.f32.mrf.mxu0
        %v1073 = vadd.f32 0.0, %v1072
        %1074 = vmatmul.bf16.gmra.mxu0 %v986
        %v1075 = vpop.f32.mrf.mxu0
        %v1076 = vadd.f32 0.0, %v1075
        %v1077 = vpop.f32.mrf.mxu0
        %v1078 = vadd.f32 0.0, %v1077
        %1079 = vdwg.mxu0
        %v1080 = vadd.f32 %v730, %v1001
        %v1081 = vadd.f32 %v732, %v1003
        %v1082 = vadd.f32 %v735, %v1006
        %v1083 = vadd.f32 %v737, %v1008
        %v1084 = vadd.f32 %v740, %v1011
        %v1085 = vadd.f32 %v742, %v1013
        %v1086 = vadd.f32 %v745, %v1016
        %v1087 = vadd.f32 %v747, %v1018
        %v1088 = vadd.f32 %v750, %v1021
        %v1089 = vadd.f32 %v752, %v1023
        %v1090 = vadd.f32 %v755, %v1026
        %v1091 = vadd.f32 %v757, %v1028
        %v1092 = vadd.f32 %v760, %v1031
        %v1093 = vadd.f32 %v762, %v1033
        %v1094 = vadd.f32 %v765, %v1036
        %v1095 = vadd.f32 %v767, %v1038
        %v1096 = vadd.f32 %v770, %v1041
        %v1097 = vadd.f32 %v772, %v1043
        %v1098 = vadd.f32 %v775, %v1046
        %v1099 = vadd.f32 %v777, %v1048
        %v1100 = vadd.f32 %v780, %v1051
        %v1101 = vadd.f32 %v782, %v1053
        %v1102 = vadd.f32 %v785, %v1056
        %v1103 = vadd.f32 %v787, %v1058
        %v1104 = vadd.f32 %v790, %v1061
        %v1105 = vadd.f32 %v792, %v1063
        %v1106 = vadd.f32 %v795, %v1066
        %v1107 = vadd.f32 %v797, %v1068
        %v1108 = vadd.f32 %v800, %v1071
        %v1109 = vadd.f32 %v802, %v1073
        %v1110 = vadd.f32 %v805, %v1076
        %v1111 = vadd.f32 %v807, %v1078
        %v1112 = vpack.c.bf16 %v326, %v325
        %s1113 = scalar_lea.vmem %s1, 6
        %v1114 = vld [vmem:[%s1113] sm:$0x3]
        %v1116 = vsel %vm527, %v1112, 0
        %v1119 = vsel %vm576, %v1114, 0
        %1121 = vmatpush.bf16.msra.mxu0 0
        %1122 = vmatpush.bf16.msra.mxu0 0
        %1123 = vmatpush.bf16.msra.mxu0 0
        %1124 = vmatpush.bf16.msra.mxu0 0
        %1125 = vmatpush.bf16.msra.mxu0 0
        %1126 = vmatpush.bf16.msra.mxu0 0
        %1127 = vmatpush.bf16.msra.mxu0 0
        %1128 = vmatpush.bf16.msra.mxu0 %v1119
        %1129 = vmatmul.bf16.gmra.mxu0 %v673
        %v1130 = vpop.f32.mrf.mxu0
        %v1131 = vadd.f32 0.0, %v1130
        %v1132 = vpop.f32.mrf.mxu0
        %v1133 = vadd.f32 0.0, %v1132
        %1134 = vmatmul.bf16.gmra.mxu0 %v676
        %v1135 = vpop.f32.mrf.mxu0
        %v1136 = vadd.f32 0.0, %v1135
        %v1137 = vpop.f32.mrf.mxu0
        %v1138 = vadd.f32 0.0, %v1137
        %1139 = vmatmul.bf16.gmra.mxu0 %v679
        %v1140 = vpop.f32.mrf.mxu0
        %v1141 = vadd.f32 0.0, %v1140
        %v1142 = vpop.f32.mrf.mxu0
        %v1143 = vadd.f32 0.0, %v1142
        %1144 = vmatmul.bf16.gmra.mxu0 %v682
        %v1145 = vpop.f32.mrf.mxu0
        %v1146 = vadd.f32 0.0, %v1145
        %v1147 = vpop.f32.mrf.mxu0
        %v1148 = vadd.f32 0.0, %v1147
        %1149 = vmatmul.bf16.gmra.mxu0 %v685
        %v1150 = vpop.f32.mrf.mxu0
        %v1151 = vadd.f32 0.0, %v1150
        %v1152 = vpop.f32.mrf.mxu0
        %v1153 = vadd.f32 0.0, %v1152
        %1154 = vmatmul.bf16.gmra.mxu0 %v688
        %v1155 = vpop.f32.mrf.mxu0
        %v1156 = vadd.f32 0.0, %v1155
        %v1157 = vpop.f32.mrf.mxu0
        %v1158 = vadd.f32 0.0, %v1157
        %1159 = vmatmul.bf16.gmra.mxu0 %v691
        %v1160 = vpop.f32.mrf.mxu0
        %v1161 = vadd.f32 0.0, %v1160
        %v1162 = vpop.f32.mrf.mxu0
        %v1163 = vadd.f32 0.0, %v1162
        %1164 = vmatmul.bf16.gmra.mxu0 %v694
        %v1165 = vpop.f32.mrf.mxu0
        %v1166 = vadd.f32 0.0, %v1165
        %v1167 = vpop.f32.mrf.mxu0
        %v1168 = vadd.f32 0.0, %v1167
        %1169 = vmatmul.bf16.gmra.mxu0 %v697
        %v1170 = vpop.f32.mrf.mxu0
        %v1171 = vadd.f32 0.0, %v1170
        %v1172 = vpop.f32.mrf.mxu0
        %v1173 = vadd.f32 0.0, %v1172
        %1174 = vmatmul.bf16.gmra.mxu0 %v700
        %v1175 = vpop.f32.mrf.mxu0
        %v1176 = vadd.f32 0.0, %v1175
        %v1177 = vpop.f32.mrf.mxu0
        %v1178 = vadd.f32 0.0, %v1177
        %1179 = vmatmul.bf16.gmra.mxu0 %v703
        %v1180 = vpop.f32.mrf.mxu0
        %v1181 = vadd.f32 0.0, %v1180
        %v1182 = vpop.f32.mrf.mxu0
        %v1183 = vadd.f32 0.0, %v1182
        %1184 = vmatmul.bf16.gmra.mxu0 %v706
        %v1185 = vpop.f32.mrf.mxu0
        %v1186 = vadd.f32 0.0, %v1185
        %v1187 = vpop.f32.mrf.mxu0
        %v1188 = vadd.f32 0.0, %v1187
        %1189 = vmatmul.bf16.gmra.mxu0 %v709
        %v1190 = vpop.f32.mrf.mxu0
        %v1191 = vadd.f32 0.0, %v1190
        %v1192 = vpop.f32.mrf.mxu0
        %v1193 = vadd.f32 0.0, %v1192
        %1194 = vmatmul.bf16.gmra.mxu0 %v712
        %v1195 = vpop.f32.mrf.mxu0
        %v1196 = vadd.f32 0.0, %v1195
        %v1197 = vpop.f32.mrf.mxu0
        %v1198 = vadd.f32 0.0, %v1197
        %1199 = vmatmul.bf16.gmra.mxu0 %v715
        %v1200 = vpop.f32.mrf.mxu0
        %v1201 = vadd.f32 0.0, %v1200
        %v1202 = vpop.f32.mrf.mxu0
        %v1203 = vadd.f32 0.0, %v1202
        %1204 = vmatmul.bf16.gmra.mxu0 %v1116
        %v1205 = vpop.f32.mrf.mxu0
        %v1206 = vadd.f32 0.0, %v1205
        %v1207 = vpop.f32.mrf.mxu0
        %v1208 = vadd.f32 0.0, %v1207
        %1209 = vdwg.mxu0
        %v1210 = vadd.f32 %v1080, %v1131
        %v1211 = vadd.f32 %v1081, %v1133
        %v1212 = vadd.f32 %v1082, %v1136
        %v1213 = vadd.f32 %v1083, %v1138
        %v1214 = vadd.f32 %v1084, %v1141
        %v1215 = vadd.f32 %v1085, %v1143
        %v1216 = vadd.f32 %v1086, %v1146
        %v1217 = vadd.f32 %v1087, %v1148
        %v1218 = vadd.f32 %v1088, %v1151
        %v1219 = vadd.f32 %v1089, %v1153
        %v1220 = vadd.f32 %v1090, %v1156
        %v1221 = vadd.f32 %v1091, %v1158
        %v1222 = vadd.f32 %v1092, %v1161
        %v1223 = vadd.f32 %v1093, %v1163
        %v1224 = vadd.f32 %v1094, %v1166
        %v1225 = vadd.f32 %v1095, %v1168
        %v1226 = vadd.f32 %v1096, %v1171
        %v1227 = vadd.f32 %v1097, %v1173
        %v1228 = vadd.f32 %v1098, %v1176
        %v1229 = vadd.f32 %v1099, %v1178
        %v1230 = vadd.f32 %v1100, %v1181
        %v1231 = vadd.f32 %v1101, %v1183
        %v1232 = vadd.f32 %v1102, %v1186
        %v1233 = vadd.f32 %v1103, %v1188
        %v1234 = vadd.f32 %v1104, %v1191
        %v1235 = vadd.f32 %v1105, %v1193
        %v1236 = vadd.f32 %v1106, %v1196
        %v1237 = vadd.f32 %v1107, %v1198
        %v1238 = vadd.f32 %v1108, %v1201
        %v1239 = vadd.f32 %v1109, %v1203
        %v1240 = vadd.f32 %v1110, %v1206
        %v1241 = vadd.f32 %v1111, %v1208
        %v1245 = vrot.slane %v325, 1
        %v1246 = vrot.slane %v326, 1
        %v1247 = vsel %vm396, %v1245, %v1246
        %v1248 = vrot.slane %v327, 1
        %v1249 = vsel %vm396, %v1246, %v1248
        %v1252 = vpack.c.bf16 %v1249, %v1247
        %s1253 = scalar_lea.vmem %s1, 8
        %v1254 = vld [vmem:[%s1253] sm:$0x3]
        %v1256 = vsel %vm527, %v1252, 0
        %v1259 = vsel %vm576, %v1254, 0
        %1261 = vmatpush.bf16.msra.mxu0 0
        %1262 = vmatpush.bf16.msra.mxu0 0
        %1263 = vmatpush.bf16.msra.mxu0 0
        %1264 = vmatpush.bf16.msra.mxu0 0
        %1265 = vmatpush.bf16.msra.mxu0 0
        %1266 = vmatpush.bf16.msra.mxu0 0
        %1267 = vmatpush.bf16.msra.mxu0 0
        %1268 = vmatpush.bf16.msra.mxu0 %v1259
        %1269 = vmatmul.bf16.gmra.mxu0 %v532
        %v1270 = vpop.f32.mrf.mxu0
        %v1271 = vadd.f32 0.0, %v1270
        %v1272 = vpop.f32.mrf.mxu0
        %v1273 = vadd.f32 0.0, %v1272
        %1274 = vmatmul.bf16.gmra.mxu0 %v535
        %v1275 = vpop.f32.mrf.mxu0
        %v1276 = vadd.f32 0.0, %v1275
        %v1277 = vpop.f32.mrf.mxu0
        %v1278 = vadd.f32 0.0, %v1277
        %1279 = vmatmul.bf16.gmra.mxu0 %v538
        %v1280 = vpop.f32.mrf.mxu0
        %v1281 = vadd.f32 0.0, %v1280
        %v1282 = vpop.f32.mrf.mxu0
        %v1283 = vadd.f32 0.0, %v1282
        %1284 = vmatmul.bf16.gmra.mxu0 %v541
        %v1285 = vpop.f32.mrf.mxu0
        %v1286 = vadd.f32 0.0, %v1285
        %v1287 = vpop.f32.mrf.mxu0
        %v1288 = vadd.f32 0.0, %v1287
        %1289 = vmatmul.bf16.gmra.mxu0 %v544
        %v1290 = vpop.f32.mrf.mxu0
        %v1291 = vadd.f32 0.0, %v1290
        %v1292 = vpop.f32.mrf.mxu0
        %v1293 = vadd.f32 0.0, %v1292
        %1294 = vmatmul.bf16.gmra.mxu0 %v547
        %v1295 = vpop.f32.mrf.mxu0
        %v1296 = vadd.f32 0.0, %v1295
        %v1297 = vpop.f32.mrf.mxu0
        %v1298 = vadd.f32 0.0, %v1297
        %1299 = vmatmul.bf16.gmra.mxu0 %v550
        %v1300 = vpop.f32.mrf.mxu0
        %v1301 = vadd.f32 0.0, %v1300
        %v1302 = vpop.f32.mrf.mxu0
        %v1303 = vadd.f32 0.0, %v1302
        %1304 = vmatmul.bf16.gmra.mxu0 %v553
        %v1305 = vpop.f32.mrf.mxu0
        %v1306 = vadd.f32 0.0, %v1305
        %v1307 = vpop.f32.mrf.mxu0
        %v1308 = vadd.f32 0.0, %v1307
        %1309 = vmatmul.bf16.gmra.mxu0 %v556
        %v1310 = vpop.f32.mrf.mxu0
        %v1311 = vadd.f32 0.0, %v1310
        %v1312 = vpop.f32.mrf.mxu0
        %v1313 = vadd.f32 0.0, %v1312
        %1314 = vmatmul.bf16.gmra.mxu0 %v559
        %v1315 = vpop.f32.mrf.mxu0
        %v1316 = vadd.f32 0.0, %v1315
        %v1317 = vpop.f32.mrf.mxu0
        %v1318 = vadd.f32 0.0, %v1317
        %1319 = vmatmul.bf16.gmra.mxu0 %v562
        %v1320 = vpop.f32.mrf.mxu0
        %v1321 = vadd.f32 0.0, %v1320
        %v1322 = vpop.f32.mrf.mxu0
        %v1323 = vadd.f32 0.0, %v1322
        %1324 = vmatmul.bf16.gmra.mxu0 %v565
        %v1325 = vpop.f32.mrf.mxu0
        %v1326 = vadd.f32 0.0, %v1325
        %v1327 = vpop.f32.mrf.mxu0
        %v1328 = vadd.f32 0.0, %v1327
        %1329 = vmatmul.bf16.gmra.mxu0 %v568
        %v1330 = vpop.f32.mrf.mxu0
        %v1331 = vadd.f32 0.0, %v1330
        %v1332 = vpop.f32.mrf.mxu0
        %v1333 = vadd.f32 0.0, %v1332
        %1334 = vmatmul.bf16.gmra.mxu0 %v571
        %v1335 = vpop.f32.mrf.mxu0
        %v1336 = vadd.f32 0.0, %v1335
        %v1337 = vpop.f32.mrf.mxu0
        %v1338 = vadd.f32 0.0, %v1337
        %1339 = vmatmul.bf16.gmra.mxu0 %v574
        %v1340 = vpop.f32.mrf.mxu0
        %v1341 = vadd.f32 0.0, %v1340
        %v1342 = vpop.f32.mrf.mxu0
        %v1343 = vadd.f32 0.0, %v1342
        %1344 = vmatmul.bf16.gmra.mxu0 %v1256
        %v1345 = vpop.f32.mrf.mxu0
        %v1346 = vadd.f32 0.0, %v1345
        %v1347 = vpop.f32.mrf.mxu0
        %v1348 = vadd.f32 0.0, %v1347
        %1349 = vdwg.mxu0
        %v1350 = vadd.f32 %v1210, %v1271
        %v1351 = vadd.f32 %v1211, %v1273
        %v1352 = vadd.f32 %v1212, %v1276
        %v1353 = vadd.f32 %v1213, %v1278
        %v1354 = vadd.f32 %v1214, %v1281
        %v1355 = vadd.f32 %v1215, %v1283
        %v1356 = vadd.f32 %v1216, %v1286
        %v1357 = vadd.f32 %v1217, %v1288
        %v1358 = vadd.f32 %v1218, %v1291
        %v1359 = vadd.f32 %v1219, %v1293
        %v1360 = vadd.f32 %v1220, %v1296
        %v1361 = vadd.f32 %v1221, %v1298
        %v1362 = vadd.f32 %v1222, %v1301
        %v1363 = vadd.f32 %v1223, %v1303
        %v1364 = vadd.f32 %v1224, %v1306
        %v1365 = vadd.f32 %v1225, %v1308
        %v1366 = vadd.f32 %v1226, %v1311
        %v1367 = vadd.f32 %v1227, %v1313
        %v1368 = vadd.f32 %v1228, %v1316
        %v1369 = vadd.f32 %v1229, %v1318
        %v1370 = vadd.f32 %v1230, %v1321
        %v1371 = vadd.f32 %v1231, %v1323
        %v1372 = vadd.f32 %v1232, %v1326
        %v1373 = vadd.f32 %v1233, %v1328
        %v1374 = vadd.f32 %v1234, %v1331
        %v1375 = vadd.f32 %v1235, %v1333
        %v1376 = vadd.f32 %v1236, %v1336
        %v1377 = vadd.f32 %v1237, %v1338
        %v1378 = vadd.f32 %v1238, %v1341
        %v1379 = vadd.f32 %v1239, %v1343
        %v1380 = vadd.f32 %v1240, %v1346
        %v1381 = vadd.f32 %v1241, %v1348
        %v1382 = vrot.slane %v325, 2
        %v1383 = vrot.slane %v326, 2
        %v1384 = vsel %vm809, %v1382, %v1383
        %v1385 = vrot.slane %v327, 2
        %v1386 = vsel %vm809, %v1383, %v1385
        %v1389 = vpack.c.bf16 %v1386, %v1384
        %s1390 = scalar_lea.vmem %s1, 10
        %v1391 = vld [vmem:[%s1390] sm:$0x3]
        %v1393 = vsel %vm527, %v1389, 0
        %v1396 = vsel %vm576, %v1391, 0
        %1398 = vmatpush.bf16.msra.mxu0 0
        %1399 = vmatpush.bf16.msra.mxu0 0
        %1400 = vmatpush.bf16.msra.mxu0 0
        %1401 = vmatpush.bf16.msra.mxu0 0
        %1402 = vmatpush.bf16.msra.mxu0 0
        %1403 = vmatpush.bf16.msra.mxu0 0
        %1404 = vmatpush.bf16.msra.mxu0 0
        %1405 = vmatpush.bf16.msra.mxu0 %v1396
        %1406 = vmatmul.bf16.gmra.mxu0 %v944
        %v1407 = vpop.f32.mrf.mxu0
        %v1408 = vadd.f32 0.0, %v1407
        %v1409 = vpop.f32.mrf.mxu0
        %v1410 = vadd.f32 0.0, %v1409
        %1411 = vmatmul.bf16.gmra.mxu0 %v947
        %v1412 = vpop.f32.mrf.mxu0
        %v1413 = vadd.f32 0.0, %v1412
        %v1414 = vpop.f32.mrf.mxu0
        %v1415 = vadd.f32 0.0, %v1414
        %1416 = vmatmul.bf16.gmra.mxu0 %v950
        %v1417 = vpop.f32.mrf.mxu0
        %v1418 = vadd.f32 0.0, %v1417
        %v1419 = vpop.f32.mrf.mxu0
        %v1420 = vadd.f32 0.0, %v1419
        %1421 = vmatmul.bf16.gmra.mxu0 %v953
        %v1422 = vpop.f32.mrf.mxu0
        %v1423 = vadd.f32 0.0, %v1422
        %v1424 = vpop.f32.mrf.mxu0
        %v1425 = vadd.f32 0.0, %v1424
        %1426 = vmatmul.bf16.gmra.mxu0 %v956
        %v1427 = vpop.f32.mrf.mxu0
        %v1428 = vadd.f32 0.0, %v1427
        %v1429 = vpop.f32.mrf.mxu0
        %v1430 = vadd.f32 0.0, %v1429
        %1431 = vmatmul.bf16.gmra.mxu0 %v959
        %v1432 = vpop.f32.mrf.mxu0
        %v1433 = vadd.f32 0.0, %v1432
        %v1434 = vpop.f32.mrf.mxu0
        %v1435 = vadd.f32 0.0, %v1434
        %1436 = vmatmul.bf16.gmra.mxu0 %v962
        %v1437 = vpop.f32.mrf.mxu0
        %v1438 = vadd.f32 0.0, %v1437
        %v1439 = vpop.f32.mrf.mxu0
        %v1440 = vadd.f32 0.0, %v1439
        %1441 = vmatmul.bf16.gmra.mxu0 %v965
        %v1442 = vpop.f32.mrf.mxu0
        %v1443 = vadd.f32 0.0, %v1442
        %v1444 = vpop.f32.mrf.mxu0
        %v1445 = vadd.f32 0.0, %v1444
        %1446 = vmatmul.bf16.gmra.mxu0 %v968
        %v1447 = vpop.f32.mrf.mxu0
        %v1448 = vadd.f32 0.0, %v1447
        %v1449 = vpop.f32.mrf.mxu0
        %v1450 = vadd.f32 0.0, %v1449
        %1451 = vmatmul.bf16.gmra.mxu0 %v971
        %v1452 = vpop.f32.mrf.mxu0
        %v1453 = vadd.f32 0.0, %v1452
        %v1454 = vpop.f32.mrf.mxu0
        %v1455 = vadd.f32 0.0, %v1454
        %1456 = vmatmul.bf16.gmra.mxu0 %v974
        %v1457 = vpop.f32.mrf.mxu0
        %v1458 = vadd.f32 0.0, %v1457
        %v1459 = vpop.f32.mrf.mxu0
        %v1460 = vadd.f32 0.0, %v1459
        %1461 = vmatmul.bf16.gmra.mxu0 %v977
        %v1462 = vpop.f32.mrf.mxu0
        %v1463 = vadd.f32 0.0, %v1462
        %v1464 = vpop.f32.mrf.mxu0
        %v1465 = vadd.f32 0.0, %v1464
        %1466 = vmatmul.bf16.gmra.mxu0 %v980
        %v1467 = vpop.f32.mrf.mxu0
        %v1468 = vadd.f32 0.0, %v1467
        %v1469 = vpop.f32.mrf.mxu0
        %v1470 = vadd.f32 0.0, %v1469
        %1471 = vmatmul.bf16.gmra.mxu0 %v983
        %v1472 = vpop.f32.mrf.mxu0
        %v1473 = vadd.f32 0.0, %v1472
        %v1474 = vpop.f32.mrf.mxu0
        %v1475 = vadd.f32 0.0, %v1474
        %1476 = vmatmul.bf16.gmra.mxu0 %v986
        %v1477 = vpop.f32.mrf.mxu0
        %v1478 = vadd.f32 0.0, %v1477
        %v1479 = vpop.f32.mrf.mxu0
        %v1480 = vadd.f32 0.0, %v1479
        %1481 = vmatmul.bf16.gmra.mxu0 %v1393
        %v1482 = vpop.f32.mrf.mxu0
        %v1483 = vadd.f32 0.0, %v1482
        %v1484 = vpop.f32.mrf.mxu0
        %v1485 = vadd.f32 0.0, %v1484
        %1486 = vdwg.mxu0
        %v1487 = vadd.f32 %v1350, %v1408
        %v1488 = vadd.f32 %v1351, %v1410
        %v1489 = vadd.f32 %v1352, %v1413
        %v1490 = vadd.f32 %v1353, %v1415
        %v1491 = vadd.f32 %v1354, %v1418
        %v1492 = vadd.f32 %v1355, %v1420
        %v1493 = vadd.f32 %v1356, %v1423
        %v1494 = vadd.f32 %v1357, %v1425
        %v1495 = vadd.f32 %v1358, %v1428
        %v1496 = vadd.f32 %v1359, %v1430
        %v1497 = vadd.f32 %v1360, %v1433
        %v1498 = vadd.f32 %v1361, %v1435
        %v1499 = vadd.f32 %v1362, %v1438
        %v1500 = vadd.f32 %v1363, %v1440
        %v1501 = vadd.f32 %v1364, %v1443
        %v1502 = vadd.f32 %v1365, %v1445
        %v1503 = vadd.f32 %v1366, %v1448
        %v1504 = vadd.f32 %v1367, %v1450
        %v1505 = vadd.f32 %v1368, %v1453
        %v1506 = vadd.f32 %v1369, %v1455
        %v1507 = vadd.f32 %v1370, %v1458
        %v1508 = vadd.f32 %v1371, %v1460
        %v1509 = vadd.f32 %v1372, %v1463
        %v1510 = vadd.f32 %v1373, %v1465
        %v1511 = vadd.f32 %v1374, %v1468
        %v1512 = vadd.f32 %v1375, %v1470
        %v1513 = vadd.f32 %v1376, %v1473
        %v1514 = vadd.f32 %v1377, %v1475
        %v1515 = vadd.f32 %v1378, %v1478
        %v1516 = vadd.f32 %v1379, %v1480
        %v1517 = vadd.f32 %v1380, %v1483
        %v1518 = vadd.f32 %v1381, %v1485
        %v1519 = vpack.c.bf16 %v329, %v328
        %s1520 = scalar_lea.vmem %s1, 12
        %v1521 = vld [vmem:[%s1520] sm:$0x3]
        %v1523 = vsel %vm527, %v1519, 0
        %v1526 = vsel %vm576, %v1521, 0
        %1528 = vmatpush.bf16.msra.mxu0 0
        %1529 = vmatpush.bf16.msra.mxu0 0
        %1530 = vmatpush.bf16.msra.mxu0 0
        %1531 = vmatpush.bf16.msra.mxu0 0
        %1532 = vmatpush.bf16.msra.mxu0 0
        %1533 = vmatpush.bf16.msra.mxu0 0
        %1534 = vmatpush.bf16.msra.mxu0 0
        %1535 = vmatpush.bf16.msra.mxu0 %v1526
        %1536 = vmatmul.bf16.gmra.mxu0 %v676
        %v1537 = vpop.f32.mrf.mxu0
        %v1538 = vadd.f32 0.0, %v1537
        %v1539 = vpop.f32.mrf.mxu0
        %v1540 = vadd.f32 0.0, %v1539
        %1541 = vmatmul.bf16.gmra.mxu0 %v679
        %v1542 = vpop.f32.mrf.mxu0
        %v1543 = vadd.f32 0.0, %v1542
        %v1544 = vpop.f32.mrf.mxu0
        %v1545 = vadd.f32 0.0, %v1544
        %1546 = vmatmul.bf16.gmra.mxu0 %v682
        %v1547 = vpop.f32.mrf.mxu0
        %v1548 = vadd.f32 0.0, %v1547
        %v1549 = vpop.f32.mrf.mxu0
        %v1550 = vadd.f32 0.0, %v1549
        %1551 = vmatmul.bf16.gmra.mxu0 %v685
        %v1552 = vpop.f32.mrf.mxu0
        %v1553 = vadd.f32 0.0, %v1552
        %v1554 = vpop.f32.mrf.mxu0
        %v1555 = vadd.f32 0.0, %v1554
        %1556 = vmatmul.bf16.gmra.mxu0 %v688
        %v1557 = vpop.f32.mrf.mxu0
        %v1558 = vadd.f32 0.0, %v1557
        %v1559 = vpop.f32.mrf.mxu0
        %v1560 = vadd.f32 0.0, %v1559
        %1561 = vmatmul.bf16.gmra.mxu0 %v691
        %v1562 = vpop.f32.mrf.mxu0
        %v1563 = vadd.f32 0.0, %v1562
        %v1564 = vpop.f32.mrf.mxu0
        %v1565 = vadd.f32 0.0, %v1564
        %1566 = vmatmul.bf16.gmra.mxu0 %v694
        %v1567 = vpop.f32.mrf.mxu0
        %v1568 = vadd.f32 0.0, %v1567
        %v1569 = vpop.f32.mrf.mxu0
        %v1570 = vadd.f32 0.0, %v1569
        %1571 = vmatmul.bf16.gmra.mxu0 %v697
        %v1572 = vpop.f32.mrf.mxu0
        %v1573 = vadd.f32 0.0, %v1572
        %v1574 = vpop.f32.mrf.mxu0
        %v1575 = vadd.f32 0.0, %v1574
        %1576 = vmatmul.bf16.gmra.mxu0 %v700
        %v1577 = vpop.f32.mrf.mxu0
        %v1578 = vadd.f32 0.0, %v1577
        %v1579 = vpop.f32.mrf.mxu0
        %v1580 = vadd.f32 0.0, %v1579
        %1581 = vmatmul.bf16.gmra.mxu0 %v703
        %v1582 = vpop.f32.mrf.mxu0
        %v1583 = vadd.f32 0.0, %v1582
        %v1584 = vpop.f32.mrf.mxu0
        %v1585 = vadd.f32 0.0, %v1584
        %1586 = vmatmul.bf16.gmra.mxu0 %v706
        %v1587 = vpop.f32.mrf.mxu0
        %v1588 = vadd.f32 0.0, %v1587
        %v1589 = vpop.f32.mrf.mxu0
        %v1590 = vadd.f32 0.0, %v1589
        %1591 = vmatmul.bf16.gmra.mxu0 %v709
        %v1592 = vpop.f32.mrf.mxu0
        %v1593 = vadd.f32 0.0, %v1592
        %v1594 = vpop.f32.mrf.mxu0
        %v1595 = vadd.f32 0.0, %v1594
        %1596 = vmatmul.bf16.gmra.mxu0 %v712
        %v1597 = vpop.f32.mrf.mxu0
        %v1598 = vadd.f32 0.0, %v1597
        %v1599 = vpop.f32.mrf.mxu0
        %v1600 = vadd.f32 0.0, %v1599
        %1601 = vmatmul.bf16.gmra.mxu0 %v715
        %v1602 = vpop.f32.mrf.mxu0
        %v1603 = vadd.f32 0.0, %v1602
        %v1604 = vpop.f32.mrf.mxu0
        %v1605 = vadd.f32 0.0, %v1604
        %1606 = vmatmul.bf16.gmra.mxu0 %v1116
        %v1607 = vpop.f32.mrf.mxu0
        %v1608 = vadd.f32 0.0, %v1607
        %v1609 = vpop.f32.mrf.mxu0
        %v1610 = vadd.f32 0.0, %v1609
        %1611 = vmatmul.bf16.gmra.mxu0 %v1523
        %v1612 = vpop.f32.mrf.mxu0
        %v1613 = vadd.f32 0.0, %v1612
        %v1614 = vpop.f32.mrf.mxu0
        %v1615 = vadd.f32 0.0, %v1614
        %1616 = vdwg.mxu0
        %v1617 = vadd.f32 %v1487, %v1538
        %v1618 = vadd.f32 %v1488, %v1540
        %v1619 = vadd.f32 %v1489, %v1543
        %v1620 = vadd.f32 %v1490, %v1545
        %v1621 = vadd.f32 %v1491, %v1548
        %v1622 = vadd.f32 %v1492, %v1550
        %v1623 = vadd.f32 %v1493, %v1553
        %v1624 = vadd.f32 %v1494, %v1555
        %v1625 = vadd.f32 %v1495, %v1558
        %v1626 = vadd.f32 %v1496, %v1560
        %v1627 = vadd.f32 %v1497, %v1563
        %v1628 = vadd.f32 %v1498, %v1565
        %v1629 = vadd.f32 %v1499, %v1568
        %v1630 = vadd.f32 %v1500, %v1570
        %v1631 = vadd.f32 %v1501, %v1573
        %v1632 = vadd.f32 %v1502, %v1575
        %v1633 = vadd.f32 %v1503, %v1578
        %v1634 = vadd.f32 %v1504, %v1580
        %v1635 = vadd.f32 %v1505, %v1583
        %v1636 = vadd.f32 %v1506, %v1585
        %v1637 = vadd.f32 %v1507, %v1588
        %v1638 = vadd.f32 %v1508, %v1590
        %v1639 = vadd.f32 %v1509, %v1593
        %v1640 = vadd.f32 %v1510, %v1595
        %v1641 = vadd.f32 %v1511, %v1598
        %v1642 = vadd.f32 %v1512, %v1600
        %v1643 = vadd.f32 %v1513, %v1603
        %v1644 = vadd.f32 %v1514, %v1605
        %v1645 = vadd.f32 %v1515, %v1608
        %v1646 = vadd.f32 %v1516, %v1610
        %v1647 = vadd.f32 %v1517, %v1613
        %v1648 = vadd.f32 %v1518, %v1615
        %v1652 = vrot.slane %v328, 1
        %v1653 = vrot.slane %v329, 1
        %v1654 = vsel %vm396, %v1652, %v1653
        %v1655 = vrot.slane %v330, 1
        %v1656 = vsel %vm396, %v1653, %v1655
        %v1659 = vpack.c.bf16 %v1656, %v1654
        %s1660 = scalar_lea.vmem %s1, 14
        %v1661 = vld [vmem:[%s1660] sm:$0x3]
        %v1663 = vsel %vm527, %v1659, 0
        %v1666 = vsel %vm576, %v1661, 0
        %1668 = vmatpush.bf16.msra.mxu0 0
        %1669 = vmatpush.bf16.msra.mxu0 0
        %1670 = vmatpush.bf16.msra.mxu0 0
        %1671 = vmatpush.bf16.msra.mxu0 0
        %1672 = vmatpush.bf16.msra.mxu0 0
        %1673 = vmatpush.bf16.msra.mxu0 0
        %1674 = vmatpush.bf16.msra.mxu0 0
        %1675 = vmatpush.bf16.msra.mxu0 %v1666
        %1676 = vmatmul.bf16.gmra.mxu0 %v535
        %v1677 = vpop.f32.mrf.mxu0
        %v1678 = vadd.f32 0.0, %v1677
        %v1679 = vpop.f32.mrf.mxu0
        %v1680 = vadd.f32 0.0, %v1679
        %1681 = vmatmul.bf16.gmra.mxu0 %v538
        %v1682 = vpop.f32.mrf.mxu0
        %v1683 = vadd.f32 0.0, %v1682
        %v1684 = vpop.f32.mrf.mxu0
        %v1685 = vadd.f32 0.0, %v1684
        %1686 = vmatmul.bf16.gmra.mxu0 %v541
        %v1687 = vpop.f32.mrf.mxu0
        %v1688 = vadd.f32 0.0, %v1687
        %v1689 = vpop.f32.mrf.mxu0
        %v1690 = vadd.f32 0.0, %v1689
        %1691 = vmatmul.bf16.gmra.mxu0 %v544
        %v1692 = vpop.f32.mrf.mxu0
        %v1693 = vadd.f32 0.0, %v1692
        %v1694 = vpop.f32.mrf.mxu0
        %v1695 = vadd.f32 0.0, %v1694
        %1696 = vmatmul.bf16.gmra.mxu0 %v547
        %v1697 = vpop.f32.mrf.mxu0
        %v1698 = vadd.f32 0.0, %v1697
        %v1699 = vpop.f32.mrf.mxu0
        %v1700 = vadd.f32 0.0, %v1699
        %1701 = vmatmul.bf16.gmra.mxu0 %v550
        %v1702 = vpop.f32.mrf.mxu0
        %v1703 = vadd.f32 0.0, %v1702
        %v1704 = vpop.f32.mrf.mxu0
        %v1705 = vadd.f32 0.0, %v1704
        %1706 = vmatmul.bf16.gmra.mxu0 %v553
        %v1707 = vpop.f32.mrf.mxu0
        %v1708 = vadd.f32 0.0, %v1707
        %v1709 = vpop.f32.mrf.mxu0
        %v1710 = vadd.f32 0.0, %v1709
        %1711 = vmatmul.bf16.gmra.mxu0 %v556
        %v1712 = vpop.f32.mrf.mxu0
        %v1713 = vadd.f32 0.0, %v1712
        %v1714 = vpop.f32.mrf.mxu0
        %v1715 = vadd.f32 0.0, %v1714
        %1716 = vmatmul.bf16.gmra.mxu0 %v559
        %v1717 = vpop.f32.mrf.mxu0
        %v1718 = vadd.f32 0.0, %v1717
        %v1719 = vpop.f32.mrf.mxu0
        %v1720 = vadd.f32 0.0, %v1719
        %1721 = vmatmul.bf16.gmra.mxu0 %v562
        %v1722 = vpop.f32.mrf.mxu0
        %v1723 = vadd.f32 0.0, %v1722
        %v1724 = vpop.f32.mrf.mxu0
        %v1725 = vadd.f32 0.0, %v1724
        %1726 = vmatmul.bf16.gmra.mxu0 %v565
        %v1727 = vpop.f32.mrf.mxu0
        %v1728 = vadd.f32 0.0, %v1727
        %v1729 = vpop.f32.mrf.mxu0
        %v1730 = vadd.f32 0.0, %v1729
        %1731 = vmatmul.bf16.gmra.mxu0 %v568
        %v1732 = vpop.f32.mrf.mxu0
        %v1733 = vadd.f32 0.0, %v1732
        %v1734 = vpop.f32.mrf.mxu0
        %v1735 = vadd.f32 0.0, %v1734
        %1736 = vmatmul.bf16.gmra.mxu0 %v571
        %v1737 = vpop.f32.mrf.mxu0
        %v1738 = vadd.f32 0.0, %v1737
        %v1739 = vpop.f32.mrf.mxu0
        %v1740 = vadd.f32 0.0, %v1739
        %1741 = vmatmul.bf16.gmra.mxu0 %v574
        %v1742 = vpop.f32.mrf.mxu0
        %v1743 = vadd.f32 0.0, %v1742
        %v1744 = vpop.f32.mrf.mxu0
        %v1745 = vadd.f32 0.0, %v1744
        %1746 = vmatmul.bf16.gmra.mxu0 %v1256
        %v1747 = vpop.f32.mrf.mxu0
        %v1748 = vadd.f32 0.0, %v1747
        %v1749 = vpop.f32.mrf.mxu0
        %v1750 = vadd.f32 0.0, %v1749
        %1751 = vmatmul.bf16.gmra.mxu0 %v1663
        %v1752 = vpop.f32.mrf.mxu0
        %v1753 = vadd.f32 0.0, %v1752
        %v1754 = vpop.f32.mrf.mxu0
        %v1755 = vadd.f32 0.0, %v1754
        %1756 = vdwg.mxu0
        %v1757 = vadd.f32 %v1617, %v1678
        %v1758 = vadd.f32 %v1618, %v1680
        %v1759 = vadd.f32 %v1619, %v1683
        %v1760 = vadd.f32 %v1620, %v1685
        %v1761 = vadd.f32 %v1621, %v1688
        %v1762 = vadd.f32 %v1622, %v1690
        %v1763 = vadd.f32 %v1623, %v1693
        %v1764 = vadd.f32 %v1624, %v1695
        %v1765 = vadd.f32 %v1625, %v1698
        %v1766 = vadd.f32 %v1626, %v1700
        %v1767 = vadd.f32 %v1627, %v1703
        %v1768 = vadd.f32 %v1628, %v1705
        %v1769 = vadd.f32 %v1629, %v1708
        %v1770 = vadd.f32 %v1630, %v1710
        %v1771 = vadd.f32 %v1631, %v1713
        %v1772 = vadd.f32 %v1632, %v1715
        %v1773 = vadd.f32 %v1633, %v1718
        %v1774 = vadd.f32 %v1634, %v1720
        %v1775 = vadd.f32 %v1635, %v1723
        %v1776 = vadd.f32 %v1636, %v1725
        %v1777 = vadd.f32 %v1637, %v1728
        %v1778 = vadd.f32 %v1638, %v1730
        %v1779 = vadd.f32 %v1639, %v1733
        %v1780 = vadd.f32 %v1640, %v1735
        %v1781 = vadd.f32 %v1641, %v1738
        %v1782 = vadd.f32 %v1642, %v1740
        %v1783 = vadd.f32 %v1643, %v1743
        %v1784 = vadd.f32 %v1644, %v1745
        %v1785 = vadd.f32 %v1645, %v1748
        %v1786 = vadd.f32 %v1646, %v1750
        %v1787 = vadd.f32 %v1647, %v1753
        %v1788 = vadd.f32 %v1648, %v1755
        %v1789 = vrot.slane %v328, 2
        %v1790 = vrot.slane %v329, 2
        %v1791 = vsel %vm809, %v1789, %v1790
        %v1792 = vrot.slane %v330, 2
        %v1793 = vsel %vm809, %v1790, %v1792
        %v1796 = vpack.c.bf16 %v1793, %v1791
        %s1797 = scalar_lea.vmem %s1, 16
        %v1798 = vld [vmem:[%s1797] sm:$0x3]
        %v1800 = vsel %vm527, %v1796, 0
        %v1803 = vsel %vm576, %v1798, 0
        %1805 = vmatpush.bf16.msra.mxu0 0
        %1806 = vmatpush.bf16.msra.mxu0 0
        %1807 = vmatpush.bf16.msra.mxu0 0
        %1808 = vmatpush.bf16.msra.mxu0 0
        %1809 = vmatpush.bf16.msra.mxu0 0
        %1810 = vmatpush.bf16.msra.mxu0 0
        %1811 = vmatpush.bf16.msra.mxu0 0
        %1812 = vmatpush.bf16.msra.mxu0 %v1803
        %1813 = vmatmul.bf16.gmra.mxu0 %v947
        %v1814 = vpop.f32.mrf.mxu0
        %v1815 = vadd.f32 0.0, %v1814
        %v1816 = vpop.f32.mrf.mxu0
        %v1817 = vadd.f32 0.0, %v1816
        %1818 = vmatmul.bf16.gmra.mxu0 %v950
        %v1819 = vpop.f32.mrf.mxu0
        %v1820 = vadd.f32 0.0, %v1819
        %v1821 = vpop.f32.mrf.mxu0
        %v1822 = vadd.f32 0.0, %v1821
        %1823 = vmatmul.bf16.gmra.mxu0 %v953
        %v1824 = vpop.f32.mrf.mxu0
        %v1825 = vadd.f32 0.0, %v1824
        %v1826 = vpop.f32.mrf.mxu0
        %v1827 = vadd.f32 0.0, %v1826
        %1828 = vmatmul.bf16.gmra.mxu0 %v956
        %v1829 = vpop.f32.mrf.mxu0
        %v1830 = vadd.f32 0.0, %v1829
        %v1831 = vpop.f32.mrf.mxu0
        %v1832 = vadd.f32 0.0, %v1831
        %1833 = vmatmul.bf16.gmra.mxu0 %v959
        %v1834 = vpop.f32.mrf.mxu0
        %v1835 = vadd.f32 0.0, %v1834
        %v1836 = vpop.f32.mrf.mxu0
        %v1837 = vadd.f32 0.0, %v1836
        %1838 = vmatmul.bf16.gmra.mxu0 %v962
        %v1839 = vpop.f32.mrf.mxu0
        %v1840 = vadd.f32 0.0, %v1839
        %v1841 = vpop.f32.mrf.mxu0
        %v1842 = vadd.f32 0.0, %v1841
        %1843 = vmatmul.bf16.gmra.mxu0 %v965
        %v1844 = vpop.f32.mrf.mxu0
        %v1845 = vadd.f32 0.0, %v1844
        %v1846 = vpop.f32.mrf.mxu0
        %v1847 = vadd.f32 0.0, %v1846
        %1848 = vmatmul.bf16.gmra.mxu0 %v968
        %v1849 = vpop.f32.mrf.mxu0
        %v1850 = vadd.f32 0.0, %v1849
        %v1851 = vpop.f32.mrf.mxu0
        %v1852 = vadd.f32 0.0, %v1851
        %1853 = vmatmul.bf16.gmra.mxu0 %v971
        %v1854 = vpop.f32.mrf.mxu0
        %v1855 = vadd.f32 0.0, %v1854
        %v1856 = vpop.f32.mrf.mxu0
        %v1857 = vadd.f32 0.0, %v1856
        %1858 = vmatmul.bf16.gmra.mxu0 %v974
        %v1859 = vpop.f32.mrf.mxu0
        %v1860 = vadd.f32 0.0, %v1859
        %v1861 = vpop.f32.mrf.mxu0
        %v1862 = vadd.f32 0.0, %v1861
        %1863 = vmatmul.bf16.gmra.mxu0 %v977
        %v1864 = vpop.f32.mrf.mxu0
        %v1865 = vadd.f32 0.0, %v1864
        %v1866 = vpop.f32.mrf.mxu0
        %v1867 = vadd.f32 0.0, %v1866
        %1868 = vmatmul.bf16.gmra.mxu0 %v980
        %v1869 = vpop.f32.mrf.mxu0
        %v1870 = vadd.f32 0.0, %v1869
        %v1871 = vpop.f32.mrf.mxu0
        %v1872 = vadd.f32 0.0, %v1871
        %1873 = vmatmul.bf16.gmra.mxu0 %v983
        %v1874 = vpop.f32.mrf.mxu0
        %v1875 = vadd.f32 0.0, %v1874
        %v1876 = vpop.f32.mrf.mxu0
        %v1877 = vadd.f32 0.0, %v1876
        %1878 = vmatmul.bf16.gmra.mxu0 %v986
        %v1879 = vpop.f32.mrf.mxu0
        %v1880 = vadd.f32 0.0, %v1879
        %v1881 = vpop.f32.mrf.mxu0
        %v1882 = vadd.f32 0.0, %v1881
        %1883 = vmatmul.bf16.gmra.mxu0 %v1393
        %v1884 = vpop.f32.mrf.mxu0
        %v1885 = vadd.f32 0.0, %v1884
        %v1886 = vpop.f32.mrf.mxu0
        %v1887 = vadd.f32 0.0, %v1886
        %1888 = vmatmul.bf16.gmra.mxu0 %v1800
        %v1889 = vpop.f32.mrf.mxu0
        %v1890 = vadd.f32 0.0, %v1889
        %v1891 = vpop.f32.mrf.mxu0
        %v1892 = vadd.f32 0.0, %v1891
        %1893 = vdwg.mxu0
        %v1894 = vadd.f32 %v1757, %v1815
        %v1895 = vadd.f32 %v1758, %v1817
        %v1896 = vadd.f32 %v1759, %v1820
        %v1897 = vadd.f32 %v1760, %v1822
        %v1898 = vadd.f32 %v1761, %v1825
        %v1899 = vadd.f32 %v1762, %v1827
        %v1900 = vadd.f32 %v1763, %v1830
        %v1901 = vadd.f32 %v1764, %v1832
        %v1902 = vadd.f32 %v1765, %v1835
        %v1903 = vadd.f32 %v1766, %v1837
        %v1904 = vadd.f32 %v1767, %v1840
        %v1905 = vadd.f32 %v1768, %v1842
        %v1906 = vadd.f32 %v1769, %v1845
        %v1907 = vadd.f32 %v1770, %v1847
        %v1908 = vadd.f32 %v1771, %v1850
        %v1909 = vadd.f32 %v1772, %v1852
        %v1910 = vadd.f32 %v1773, %v1855
        %v1911 = vadd.f32 %v1774, %v1857
        %v1912 = vadd.f32 %v1775, %v1860
        %v1913 = vadd.f32 %v1776, %v1862
        %v1914 = vadd.f32 %v1777, %v1865
        %v1915 = vadd.f32 %v1778, %v1867
        %v1916 = vadd.f32 %v1779, %v1870
        %v1917 = vadd.f32 %v1780, %v1872
        %v1918 = vadd.f32 %v1781, %v1875
        %v1919 = vadd.f32 %v1782, %v1877
        %v1920 = vadd.f32 %v1783, %v1880
        %v1921 = vadd.f32 %v1784, %v1882
        %v1922 = vadd.f32 %v1785, %v1885
        %v1923 = vadd.f32 %v1786, %v1887
        %v1924 = vadd.f32 %v1787, %v1890
        %v1925 = vadd.f32 %v1788, %v1892
        %v1926 = vld [vmem:[%s2] sm:$0x1]
        %v1928 = vperm.slane %v1926, 0
        %v1930 = vadd.f32 %v1894, %v1928
        %v1931 = vadd.f32 %v1895, %v1928
        %v1932 = vadd.f32 %v1896, %v1928
        %v1933 = vadd.f32 %v1897, %v1928
        %v1934 = vadd.f32 %v1898, %v1928
        %v1935 = vadd.f32 %v1899, %v1928
        %v1936 = vadd.f32 %v1900, %v1928
        %v1937 = vadd.f32 %v1901, %v1928
        %v1938 = vadd.f32 %v1902, %v1928
        %v1939 = vadd.f32 %v1903, %v1928
        %v1940 = vadd.f32 %v1904, %v1928
        %v1941 = vadd.f32 %v1905, %v1928
        %v1942 = vadd.f32 %v1906, %v1928
        %v1943 = vadd.f32 %v1907, %v1928
        %v1944 = vadd.f32 %v1908, %v1928
        %v1945 = vadd.f32 %v1909, %v1928
        %v1946 = vadd.f32 %v1910, %v1928
        %v1947 = vadd.f32 %v1911, %v1928
        %v1948 = vadd.f32 %v1912, %v1928
        %v1949 = vadd.f32 %v1913, %v1928
        %v1950 = vadd.f32 %v1914, %v1928
        %v1951 = vadd.f32 %v1915, %v1928
        %v1952 = vadd.f32 %v1916, %v1928
        %v1953 = vadd.f32 %v1917, %v1928
        %v1954 = vadd.f32 %v1918, %v1928
        %v1955 = vadd.f32 %v1919, %v1928
        %v1956 = vadd.f32 %v1920, %v1928
        %v1957 = vadd.f32 %v1921, %v1928
        %v1958 = vadd.f32 %v1922, %v1928
        %v1959 = vadd.f32 %v1923, %v1928
        %v1960 = vadd.f32 %v1924, %v1928
        %v1961 = vadd.f32 %v1925, %v1928
        %v1962 = vmax.f32 %v1930, 0.0
        %v1963 = vmax.f32 %v1931, 0.0
        %v1964 = vmax.f32 %v1932, 0.0
        %v1965 = vmax.f32 %v1933, 0.0
        %v1966 = vmax.f32 %v1934, 0.0
        %v1967 = vmax.f32 %v1935, 0.0
        %v1968 = vmax.f32 %v1936, 0.0
        %v1969 = vmax.f32 %v1937, 0.0
        %v1970 = vmax.f32 %v1938, 0.0
        %v1971 = vmax.f32 %v1939, 0.0
        %v1972 = vmax.f32 %v1940, 0.0
        %v1973 = vmax.f32 %v1941, 0.0
        %v1974 = vmax.f32 %v1942, 0.0
        %v1975 = vmax.f32 %v1943, 0.0
        %v1976 = vmax.f32 %v1944, 0.0
        %v1977 = vmax.f32 %v1945, 0.0
        %v1978 = vmax.f32 %v1946, 0.0
        %v1979 = vmax.f32 %v1947, 0.0
        %v1980 = vmax.f32 %v1948, 0.0
        %v1981 = vmax.f32 %v1949, 0.0
        %v1982 = vmax.f32 %v1950, 0.0
        %v1983 = vmax.f32 %v1951, 0.0
        %v1984 = vmax.f32 %v1952, 0.0
        %v1985 = vmax.f32 %v1953, 0.0
        %v1986 = vmax.f32 %v1954, 0.0
        %v1987 = vmax.f32 %v1955, 0.0
        %v1988 = vmax.f32 %v1956, 0.0
        %v1989 = vmax.f32 %v1957, 0.0
        %v1990 = vmax.f32 %v1958, 0.0
        %v1991 = vmax.f32 %v1959, 0.0
        %v1992 = vmax.f32 %v1960, 0.0
        %v1993 = vmax.f32 %v1961, 0.0
        %vm1994 = vcmask 523264
        %1995 = vst.msk [vmem:[#allocation2] sm:$0xff] %vm1994, 0.0
        %1996 = vst.msk [vmem:[#allocation2 + $0x8] sm:$0xff] %vm1994, 0.0
        %vm1997 = vcmask 517120
        %1998 = vst.msk [vmem:[#allocation2 + $0x10] sm:$0x3] %vm1997, 0.0
        %1999 = vst.msk [vmem:[#allocation2 + $0x18] sm:$0xff] %vm1994, 0.0
        %2000 = vst.msk [vmem:[#allocation2 + $0x20] sm:$0xff] %vm1994, 0.0
        %2001 = vst.msk [vmem:[#allocation2 + $0x28] sm:$0x3] %vm1997, 0.0
        %2002 = vst.msk [vmem:[#allocation2 + $0x30] sm:$0xff] %vm1994, 0.0
        %2003 = vst.msk [vmem:[#allocation2 + $0x38] sm:$0xff] %vm1994, 0.0
        %2004 = vst.msk [vmem:[#allocation2 + $0x40] sm:$0x3] %vm1997, 0.0
        %2005 = vst.msk [vmem:[#allocation2 + $0x48] sm:$0xff] %vm1994, 0.0
        %2006 = vst.msk [vmem:[#allocation2 + $0x50] sm:$0xff] %vm1994, 0.0
        %2007 = vst.msk [vmem:[#allocation2 + $0x58] sm:$0x3] %vm1997, 0.0
        %2008 = vst.msk [vmem:[#allocation2 + $0x60] sm:$0xff] %vm1994, 0.0
        %2009 = vst.msk [vmem:[#allocation2 + $0x68] sm:$0xff] %vm1994, 0.0
        %2010 = vst.msk [vmem:[#allocation2 + $0x70] sm:$0x3] %vm1997, 0.0
        %2011 = vst.msk [vmem:[#allocation2 + $0x78] sm:$0xff] %vm1994, 0.0
        %2012 = vst.msk [vmem:[#allocation2 + $0x80] sm:$0xff] %vm1994, 0.0
        %2013 = vst.msk [vmem:[#allocation2 + $0x88] sm:$0x3] %vm1997, 0.0
        %2014 = vst.msk [vmem:[#allocation2 + $0x90] sm:$0xff] %vm1994, 0.0
        %2015 = vst.msk [vmem:[#allocation2 + $0x98] sm:$0xff] %vm1994, 0.0
        %2016 = vst.msk [vmem:[#allocation2 + $0xa0] sm:$0x3] %vm1997, 0.0
        %2017 = vst.msk [vmem:[#allocation2 + $0xa8] sm:$0xff] %vm1994, 0.0
        %2018 = vst.msk [vmem:[#allocation2 + $0xb0] sm:$0xff] %vm1994, 0.0
        %2019 = vst.msk [vmem:[#allocation2 + $0xb8] sm:$0x3] %vm1997, 0.0
        %2020 = vst.msk [vmem:[#allocation2 + $0xc0] sm:$0xff] %vm1994, 0.0
        %2021 = vst.msk [vmem:[#allocation2 + $0xc8] sm:$0xff] %vm1994, 0.0
        %2022 = vst.msk [vmem:[#allocation2 + $0xd0] sm:$0x3] %vm1997, 0.0
        %2023 = vst.msk [vmem:[#allocation2 + $0xd8] sm:$0xff] %vm1994, 0.0
        %2024 = vst.msk [vmem:[#allocation2 + $0xe0] sm:$0xff] %vm1994, 0.0
        %2025 = vst.msk [vmem:[#allocation2 + $0xe8] sm:$0x3] %vm1997, 0.0
        %2026 = vst.msk [vmem:[#allocation2 + $0xf0] sm:$0xff] %vm1994, 0.0
        %2027 = vst.msk [vmem:[#allocation2 + $0xf8] sm:$0xff] %vm1994, 0.0
        %2028 = vst.msk [vmem:[#allocation2 + $0x100] sm:$0x3] %vm1997, 0.0
        %2029 = vst.msk [vmem:[#allocation2 + $0x108] sm:$0xff] %vm1994, 0.0
        %2030 = vst.msk [vmem:[#allocation2 + $0x110] sm:$0xff] %vm1994, 0.0
        %2031 = vst.msk [vmem:[#allocation2 + $0x118] sm:$0x3] %vm1997, 0.0
        %2032 = vst.msk [vmem:[#allocation2 + $0x120] sm:$0xff] %vm1994, 0.0
        %2033 = vst.msk [vmem:[#allocation2 + $0x128] sm:$0xff] %vm1994, 0.0
        %2034 = vst.msk [vmem:[#allocation2 + $0x130] sm:$0x3] %vm1997, 0.0
        %2035 = vst.msk [vmem:[#allocation2 + $0x138] sm:$0xff] %vm1994, 0.0
        %2036 = vst.msk [vmem:[#allocation2 + $0x140] sm:$0xff] %vm1994, 0.0
        %2037 = vst.msk [vmem:[#allocation2 + $0x148] sm:$0x3] %vm1997, 0.0
        %2038 = vst.msk [vmem:[#allocation2 + $0x150] sm:$0xff] %vm1994, 0.0
        %2039 = vst.msk [vmem:[#allocation2 + $0x158] sm:$0xff] %vm1994, 0.0
        %2040 = vst.msk [vmem:[#allocation2 + $0x160] sm:$0x3] %vm1997, 0.0
        %2041 = vst.msk [vmem:[#allocation2 + $0x168] sm:$0xff] %vm1994, 0.0
        %2042 = vst.msk [vmem:[#allocation2 + $0x170] sm:$0xff] %vm1994, 0.0
        %2043 = vst.msk [vmem:[#allocation2 + $0x178] sm:$0x3] %vm1997, 0.0
        %2044 = vst.msk [vmem:[#allocation2 + $0x180] sm:$0xff] %vm1994, 0.0
        %2045 = vst.msk [vmem:[#allocation2 + $0x188] sm:$0xff] %vm1994, 0.0
        %2046 = vst.msk [vmem:[#allocation2 + $0x190] sm:$0x3] %vm1997, 0.0
        %2047 = vst.msk [vmem:[#allocation2 + $0x198] sm:$0xff] %vm1994, 0.0
        %2048 = vst.msk [vmem:[#allocation2 + $0x1a0] sm:$0xff] %vm1994, 0.0
        %2049 = vst.msk [vmem:[#allocation2 + $0x1a8] sm:$0x3] %vm1997, 0.0
        %s2050 = scalar_lea.vmem [#allocation2], 24
        %2051 = vst.msk [vmem:[%s2050 + $0x1] sm:$0xff] %vm1994, %v1962
        %2052 = vst.msk [vmem:[%s2050 + $0x9] sm:$0xff] %vm1994, %v1963
        %2053 = vst.msk [vmem:[%s2050 + $0x19] sm:$0xff] %vm1994, %v1964
        %2054 = vst.msk [vmem:[%s2050 + $0x21] sm:$0xff] %vm1994, %v1965
        %2055 = vst.msk [vmem:[%s2050 + $0x31] sm:$0xff] %vm1994, %v1966
        %2056 = vst.msk [vmem:[%s2050 + $0x39] sm:$0xff] %vm1994, %v1967
        %2057 = vst.msk [vmem:[%s2050 + $0x49] sm:$0xff] %vm1994, %v1968
        %2058 = vst.msk [vmem:[%s2050 + $0x51] sm:$0xff] %vm1994, %v1969
        %2059 = vst.msk [vmem:[%s2050 + $0x61] sm:$0xff] %vm1994, %v1970
        %2060 = vst.msk [vmem:[%s2050 + $0x69] sm:$0xff] %vm1994, %v1971
        %2061 = vst.msk [vmem:[%s2050 + $0x79] sm:$0xff] %vm1994, %v1972
        %2062 = vst.msk [vmem:[%s2050 + $0x81] sm:$0xff] %vm1994, %v1973
        %2063 = vst.msk [vmem:[%s2050 + $0x91] sm:$0xff] %vm1994, %v1974
        %2064 = vst.msk [vmem:[%s2050 + $0x99] sm:$0xff] %vm1994, %v1975
        %2065 = vst.msk [vmem:[%s2050 + $0xa9] sm:$0xff] %vm1994, %v1976
        %2066 = vst.msk [vmem:[%s2050 + $0xb1] sm:$0xff] %vm1994, %v1977
        %2067 = vst.msk [vmem:[%s2050 + $0xc1] sm:$0xff] %vm1994, %v1978
        %2068 = vst.msk [vmem:[%s2050 + $0xc9] sm:$0xff] %vm1994, %v1979
        %2069 = vst.msk [vmem:[%s2050 + $0xd9] sm:$0xff] %vm1994, %v1980
        %2070 = vst.msk [vmem:[%s2050 + $0xe1] sm:$0xff] %vm1994, %v1981
        %2071 = vst.msk [vmem:[%s2050 + $0xf1] sm:$0xff] %vm1994, %v1982
        %2072 = vst.msk [vmem:[%s2050 + $0xf9] sm:$0xff] %vm1994, %v1983
        %2073 = vst.msk [vmem:[%s2050 + $0x109] sm:$0xff] %vm1994, %v1984
        %2074 = vst.msk [vmem:[%s2050 + $0x111] sm:$0xff] %vm1994, %v1985
        %2075 = vst.msk [vmem:[%s2050 + $0x121] sm:$0xff] %vm1994, %v1986
        %2076 = vst.msk [vmem:[%s2050 + $0x129] sm:$0xff] %vm1994, %v1987
        %2077 = vst.msk [vmem:[%s2050 + $0x139] sm:$0xff] %vm1994, %v1988
        %2078 = vst.msk [vmem:[%s2050 + $0x141] sm:$0xff] %vm1994, %v1989
        %2079 = vst.msk [vmem:[%s2050 + $0x151] sm:$0xff] %vm1994, %v1990
        %2080 = vst.msk [vmem:[%s2050 + $0x159] sm:$0xff] %vm1994, %v1991
        %2081 = vst.msk [vmem:[%s2050 + $0x169] sm:$0xff] %vm1994, %v1992
        %2082 = vst.msk [vmem:[%s2050 + $0x171] sm:$0xff] %vm1994, %v1993
        %v2083 = vld [vmem:[#allocation2] sm:$0xff]
        %v2084 = vld [vmem:[#allocation2 + $0x8] sm:$0xff]
        %v2085 = vld [vmem:[#allocation2 + $0x10] sm:$0x3]
        %v2086 = vld [vmem:[#allocation2 + $0x18] sm:$0xff]
        %v2087 = vld [vmem:[#allocation2 + $0x20] sm:$0xff]
        %v2088 = vld [vmem:[#allocation2 + $0x28] sm:$0x3]
        %v2089 = vld [vmem:[#allocation2 + $0x30] sm:$0xff]
        %v2090 = vld [vmem:[#allocation2 + $0x38] sm:$0xff]
        %v2091 = vld [vmem:[#allocation2 + $0x40] sm:$0x3]
        %v2092 = vld [vmem:[#allocation2 + $0x48] sm:$0xff]
        %v2093 = vld [vmem:[#allocation2 + $0x50] sm:$0xff]
        %v2094 = vld [vmem:[#allocation2 + $0x58] sm:$0x3]
        %v2095 = vld [vmem:[#allocation2 + $0x60] sm:$0xff]
        %v2096 = vld [vmem:[#allocation2 + $0x68] sm:$0xff]
        %v2097 = vld [vmem:[#allocation2 + $0x70] sm:$0x3]
        %v2098 = vld [vmem:[#allocation2 + $0x78] sm:$0xff]
        %v2099 = vld [vmem:[#allocation2 + $0x80] sm:$0xff]
        %v2100 = vld [vmem:[#allocation2 + $0x88] sm:$0x3]
        %v2101 = vld [vmem:[#allocation2 + $0x90] sm:$0xff]
        %v2102 = vld [vmem:[#allocation2 + $0x98] sm:$0xff]
        %v2103 = vld [vmem:[#allocation2 + $0xa0] sm:$0x3]
        %v2104 = vld [vmem:[#allocation2 + $0xa8] sm:$0xff]
        %v2105 = vld [vmem:[#allocation2 + $0xb0] sm:$0xff]
        %v2106 = vld [vmem:[#allocation2 + $0xb8] sm:$0x3]
        %v2107 = vld [vmem:[#allocation2 + $0xc0] sm:$0xff]
        %v2108 = vld [vmem:[#allocation2 + $0xc8] sm:$0xff]
        %v2109 = vld [vmem:[#allocation2 + $0xd0] sm:$0x3]
        %v2110 = vld [vmem:[#allocation2 + $0xd8] sm:$0xff]
        %v2111 = vld [vmem:[#allocation2 + $0xe0] sm:$0xff]
        %v2112 = vld [vmem:[#allocation2 + $0xe8] sm:$0x3]
        %v2113 = vld [vmem:[#allocation2 + $0xf0] sm:$0xff]
        %v2114 = vld [vmem:[#allocation2 + $0xf8] sm:$0xff]
        %v2115 = vld [vmem:[#allocation2 + $0x100] sm:$0x3]
        %v2116 = vld [vmem:[#allocation2 + $0x108] sm:$0xff]
        %v2117 = vld [vmem:[#allocation2 + $0x110] sm:$0xff]
        %v2118 = vld [vmem:[#allocation2 + $0x118] sm:$0x3]
        %v2119 = vld [vmem:[#allocation2 + $0x120] sm:$0xff]
        %v2120 = vld [vmem:[#allocation2 + $0x128] sm:$0xff]
        %v2121 = vld [vmem:[#allocation2 + $0x130] sm:$0x3]
        %v2122 = vld [vmem:[#allocation2 + $0x138] sm:$0xff]
        %v2123 = vld [vmem:[#allocation2 + $0x140] sm:$0xff]
        %v2124 = vld [vmem:[#allocation2 + $0x148] sm:$0x3]
        %v2125 = vld [vmem:[#allocation2 + $0x150] sm:$0xff]
        %v2126 = vld [vmem:[#allocation2 + $0x158] sm:$0xff]
        %v2127 = vld [vmem:[#allocation2 + $0x160] sm:$0x3]
        %v2128 = vld [vmem:[#allocation2 + $0x168] sm:$0xff]
        %v2129 = vld [vmem:[#allocation2 + $0x170] sm:$0xff]
        %v2130 = vld [vmem:[#allocation2 + $0x178] sm:$0x3]
        %v2131 = vld [vmem:[#allocation2 + $0x180] sm:$0xff]
        %v2132 = vld [vmem:[#allocation2 + $0x188] sm:$0xff]
        %v2133 = vld [vmem:[#allocation2 + $0x190] sm:$0x3]
        %v2152 = vrot.slane %v2083, 2
        %v2153 = vrot.slane %v2083, 4
        %v2154 = vrot.slane %v2083, 6
        %v2155 = vrot.slane %v2084, 2
        %v2156 = vrot.slane %v2084, 4
        %v2157 = vrot.slane %v2084, 6
        %v2158 = vrot.slane %v2089, 2
        %v2159 = vrot.slane %v2089, 4
        %v2160 = vrot.slane %v2089, 6
        %v2161 = vrot.slane %v2090, 2
        %v2162 = vrot.slane %v2090, 4
        %v2163 = vrot.slane %v2090, 6
        %v2164 = vrot.slane %v2095, 2
        %v2165 = vrot.slane %v2095, 4
        %v2166 = vrot.slane %v2095, 6
        %v2167 = vrot.slane %v2096, 2
        %v2168 = vrot.slane %v2096, 4
        %v2169 = vrot.slane %v2096, 6
        %v2170 = vrot.slane %v2101, 2
        %v2171 = vrot.slane %v2101, 4
        %v2172 = vrot.slane %v2101, 6
        %v2173 = vrot.slane %v2102, 2
        %v2174 = vrot.slane %v2102, 4
        %v2175 = vrot.slane %v2102, 6
        %v2176 = vrot.slane %v2107, 2
        %v2177 = vrot.slane %v2107, 4
        %v2178 = vrot.slane %v2107, 6
        %v2179 = vrot.slane %v2108, 2
        %v2180 = vrot.slane %v2108, 4
        %v2181 = vrot.slane %v2108, 6
        %v2182 = vrot.slane %v2113, 2
        %v2183 = vrot.slane %v2113, 4
        %v2184 = vrot.slane %v2113, 6
        %v2185 = vrot.slane %v2114, 2
        %v2186 = vrot.slane %v2114, 4
        %v2187 = vrot.slane %v2114, 6
        %v2188 = vrot.slane %v2119, 2
        %v2189 = vrot.slane %v2119, 4
        %v2190 = vrot.slane %v2119, 6
        %v2191 = vrot.slane %v2120, 2
        %v2192 = vrot.slane %v2120, 4
        %v2193 = vrot.slane %v2120, 6
        %v2194 = vrot.slane %v2125, 2
        %v2195 = vrot.slane %v2125, 4
        %v2196 = vrot.slane %v2125, 6
        %v2197 = vrot.slane %v2126, 2
        %v2198 = vrot.slane %v2126, 4
        %v2199 = vrot.slane %v2126, 6
        %v2200 = vrot.slane %v2131, 2
        %v2201 = vrot.slane %v2131, 4
        %v2202 = vrot.slane %v2131, 6
        %v2203 = vrot.slane %v2132, 2
        %v2204 = vrot.slane %v2132, 4
        %v2205 = vrot.slane %v2132, 6
        %v2276 = vrot.slane %v2086, 2
        %v2277 = vrot.slane %v2086, 4
        %v2278 = vrot.slane %v2086, 6
        %v2279 = vrot.slane %v2087, 2
        %v2280 = vrot.slane %v2087, 4
        %v2281 = vrot.slane %v2087, 6
        %v2282 = vrot.slane %v2092, 2
        %v2283 = vrot.slane %v2092, 4
        %v2284 = vrot.slane %v2092, 6
        %v2285 = vrot.slane %v2093, 2
        %v2286 = vrot.slane %v2093, 4
        %v2287 = vrot.slane %v2093, 6
        %v2288 = vrot.slane %v2098, 2
        %v2289 = vrot.slane %v2098, 4
        %v2290 = vrot.slane %v2098, 6
        %v2291 = vrot.slane %v2099, 2
        %v2292 = vrot.slane %v2099, 4
        %v2293 = vrot.slane %v2099, 6
        %v2294 = vrot.slane %v2104, 2
        %v2295 = vrot.slane %v2104, 4
        %v2296 = vrot.slane %v2104, 6
        %v2297 = vrot.slane %v2105, 2
        %v2298 = vrot.slane %v2105, 4
        %v2299 = vrot.slane %v2105, 6
        %v2300 = vrot.slane %v2110, 2
        %v2301 = vrot.slane %v2110, 4
        %v2302 = vrot.slane %v2110, 6
        %v2303 = vrot.slane %v2111, 2
        %v2304 = vrot.slane %v2111, 4
        %v2305 = vrot.slane %v2111, 6
        %v2306 = vrot.slane %v2116, 2
        %v2307 = vrot.slane %v2116, 4
        %v2308 = vrot.slane %v2116, 6
        %v2309 = vrot.slane %v2117, 2
        %v2310 = vrot.slane %v2117, 4
        %v2311 = vrot.slane %v2117, 6
        %v2312 = vrot.slane %v2122, 2
        %v2313 = vrot.slane %v2122, 4
        %v2314 = vrot.slane %v2122, 6
        %v2315 = vrot.slane %v2123, 2
        %v2316 = vrot.slane %v2123, 4
        %v2317 = vrot.slane %v2123, 6
        %v2318 = vrot.slane %v2128, 2
        %v2319 = vrot.slane %v2128, 4
        %v2320 = vrot.slane %v2128, 6
        %v2321 = vrot.slane %v2129, 2
        %v2322 = vrot.slane %v2129, 4
        %v2323 = vrot.slane %v2129, 6
        %v2372 = vpack.c.bf16 %v2083, %v2083
        %v2373 = vpack.c.bf16 %v2152, %v2152
        %v2374 = vpack.c.bf16 %v2153, %v2153
        %v2375 = vpack.c.bf16 %v2154, %v2154
        %v2376 = vpack.c.bf16 %v2084, %v2084
        %v2377 = vpack.c.bf16 %v2155, %v2155
        %v2378 = vpack.c.bf16 %v2156, %v2156
        %v2379 = vpack.c.bf16 %v2157, %v2157
        %v2380 = vpack.c.bf16 %v2089, %v2089
        %v2381 = vpack.c.bf16 %v2158, %v2158
        %v2382 = vpack.c.bf16 %v2159, %v2159
        %v2383 = vpack.c.bf16 %v2160, %v2160
        %v2384 = vpack.c.bf16 %v2090, %v2090
        %v2385 = vpack.c.bf16 %v2161, %v2161
        %v2386 = vpack.c.bf16 %v2162, %v2162
        %v2387 = vpack.c.bf16 %v2163, %v2163
        %v2388 = vpack.c.bf16 %v2095, %v2095
        %v2389 = vpack.c.bf16 %v2164, %v2164
        %v2390 = vpack.c.bf16 %v2165, %v2165
        %v2391 = vpack.c.bf16 %v2166, %v2166
        %v2392 = vpack.c.bf16 %v2096, %v2096
        %v2393 = vpack.c.bf16 %v2167, %v2167
        %v2394 = vpack.c.bf16 %v2168, %v2168
        %v2395 = vpack.c.bf16 %v2169, %v2169
        %v2396 = vpack.c.bf16 %v2101, %v2101
        %v2397 = vpack.c.bf16 %v2170, %v2170
        %v2398 = vpack.c.bf16 %v2171, %v2171
        %v2399 = vpack.c.bf16 %v2172, %v2172
        %v2400 = vpack.c.bf16 %v2102, %v2102
        %v2401 = vpack.c.bf16 %v2173, %v2173
        %v2402 = vpack.c.bf16 %v2174, %v2174
        %v2403 = vpack.c.bf16 %v2175, %v2175
        %v2404 = vpack.c.bf16 %v2107, %v2107
        %v2405 = vpack.c.bf16 %v2176, %v2176
        %v2406 = vpack.c.bf16 %v2177, %v2177
        %v2407 = vpack.c.bf16 %v2178, %v2178
        %v2408 = vpack.c.bf16 %v2108, %v2108
        %v2409 = vpack.c.bf16 %v2179, %v2179
        %v2410 = vpack.c.bf16 %v2180, %v2180
        %v2411 = vpack.c.bf16 %v2181, %v2181
        %v2412 = vpack.c.bf16 %v2113, %v2113
        %v2413 = vpack.c.bf16 %v2182, %v2182
        %v2414 = vpack.c.bf16 %v2183, %v2183
        %v2415 = vpack.c.bf16 %v2184, %v2184
        %v2416 = vpack.c.bf16 %v2114, %v2114
        %v2417 = vpack.c.bf16 %v2185, %v2185
        %v2418 = vpack.c.bf16 %v2186, %v2186
        %v2419 = vpack.c.bf16 %v2187, %v2187
        %v2420 = vpack.c.bf16 %v2119, %v2119
        %v2421 = vpack.c.bf16 %v2188, %v2188
        %v2422 = vpack.c.bf16 %v2189, %v2189
        %v2423 = vpack.c.bf16 %v2190, %v2190
        %v2424 = vpack.c.bf16 %v2120, %v2120
        %v2425 = vpack.c.bf16 %v2191, %v2191
        %v2426 = vpack.c.bf16 %v2192, %v2192
        %v2427 = vpack.c.bf16 %v2193, %v2193
        %v2428 = vpack.c.bf16 %v2125, %v2125
        %v2429 = vpack.c.bf16 %v2194, %v2194
        %v2430 = vpack.c.bf16 %v2195, %v2195
        %v2431 = vpack.c.bf16 %v2196, %v2196
        %v2432 = vpack.c.bf16 %v2126, %v2126
        %v2433 = vpack.c.bf16 %v2197, %v2197
        %v2434 = vpack.c.bf16 %v2198, %v2198
        %v2435 = vpack.c.bf16 %v2199, %v2199
        %v2436 = vld [vmem:[%s3] sm:$0xff]
        %v2437 = vld [vmem:[%s3 + $0x8] sm:$0xff]
        %v2438 = vld [vmem:[%s3 + $0x10] sm:$0xff]
        %v2439 = vld [vmem:[%s3 + $0x18] sm:$0xff]
        %v2440 = vld [vmem:[%s3 + $0x20] sm:$0xff]
        %v2441 = vld [vmem:[%s3 + $0x28] sm:$0xff]
        %v2442 = vld [vmem:[%s3 + $0x30] sm:$0xff]
        %v2443 = vld [vmem:[%s3 + $0x38] sm:$0xff]
        %v2444 = vld [vmem:[%s3 + $0x40] sm:$0xff]
        %v2445 = vld [vmem:[%s3 + $0x48] sm:$0xff]
        %v2446 = vld [vmem:[%s3 + $0x50] sm:$0xff]
        %v2447 = vld [vmem:[%s3 + $0x58] sm:$0xff]
        %v2448 = vld [vmem:[%s3 + $0x60] sm:$0xff]
        %v2449 = vld [vmem:[%s3 + $0x68] sm:$0xff]
        %v2450 = vld [vmem:[%s3 + $0x70] sm:$0xff]
        %v2451 = vld [vmem:[%s3 + $0x78] sm:$0xff]
        %s2452 = scalar_lea.vmem %s3, 128
        %v2453 = vld [vmem:[%s2452] sm:$0xff]
        %v2454 = vld [vmem:[%s2452 + $0x8] sm:$0xff]
        %v2455 = vld [vmem:[%s2452 + $0x10] sm:$0xff]
        %v2456 = vld [vmem:[%s2452 + $0x18] sm:$0xff]
        %v2457 = vld [vmem:[%s2452 + $0x20] sm:$0xff]
        %v2458 = vld [vmem:[%s2452 + $0x28] sm:$0xff]
        %v2459 = vld [vmem:[%s2452 + $0x30] sm:$0xff]
        %v2460 = vld [vmem:[%s2452 + $0x38] sm:$0xff]
        %v2461 = vld [vmem:[%s2452 + $0x40] sm:$0xff]
        %v2462 = vld [vmem:[%s2452 + $0x48] sm:$0xff]
        %v2463 = vld [vmem:[%s2452 + $0x50] sm:$0xff]
        %v2464 = vld [vmem:[%s2452 + $0x58] sm:$0xff]
        %v2465 = vld [vmem:[%s2452 + $0x60] sm:$0xff]
        %v2466 = vld [vmem:[%s2452 + $0x68] sm:$0xff]
        %v2467 = vld [vmem:[%s2452 + $0x70] sm:$0xff]
        %v2468 = vld [vmem:[%s2452 + $0x78] sm:$0xff]
        %v2533 = vunpack.c.l.b16 %v2372
        %v2534 = vunpack.c.l.b16 %v2373
        %v2535 = vunpack.c.l.b16 %v2374
        %v2536 = vunpack.c.l.b16 %v2375
        %v2537 = vunpack.c.l.b16 %v2376
        %v2538 = vunpack.c.l.b16 %v2377
        %v2539 = vunpack.c.l.b16 %v2378
        %v2540 = vunpack.c.l.b16 %v2379
        %v2541 = vunpack.c.l.b16 %v2380
        %v2542 = vunpack.c.l.b16 %v2381
        %v2543 = vunpack.c.l.b16 %v2382
        %v2544 = vunpack.c.l.b16 %v2383
        %v2545 = vunpack.c.l.b16 %v2384
        %v2546 = vunpack.c.l.b16 %v2385
        %v2547 = vunpack.c.l.b16 %v2386
        %v2548 = vunpack.c.l.b16 %v2387
        %v2549 = vunpack.c.l.b16 %v2388
        %v2550 = vunpack.c.l.b16 %v2389
        %v2551 = vunpack.c.l.b16 %v2390
        %v2552 = vunpack.c.l.b16 %v2391
        %v2553 = vunpack.c.l.b16 %v2392
        %v2554 = vunpack.c.l.b16 %v2393
        %v2555 = vunpack.c.l.b16 %v2394
        %v2556 = vunpack.c.l.b16 %v2395
        %v2557 = vunpack.c.l.b16 %v2396
        %v2558 = vunpack.c.l.b16 %v2397
        %v2559 = vunpack.c.l.b16 %v2398
        %v2560 = vunpack.c.l.b16 %v2399
        %v2561 = vunpack.c.l.b16 %v2400
        %v2562 = vunpack.c.l.b16 %v2401
        %v2563 = vunpack.c.l.b16 %v2402
        %v2564 = vunpack.c.l.b16 %v2403
        %v2565 = vunpack.c.l.b16 %v2404
        %v2566 = vunpack.c.l.b16 %v2405
        %v2567 = vunpack.c.l.b16 %v2406
        %v2568 = vunpack.c.l.b16 %v2407
        %v2569 = vunpack.c.l.b16 %v2408
        %v2570 = vunpack.c.l.b16 %v2409
        %v2571 = vunpack.c.l.b16 %v2410
        %v2572 = vunpack.c.l.b16 %v2411
        %v2573 = vunpack.c.l.b16 %v2412
        %v2574 = vunpack.c.l.b16 %v2413
        %v2575 = vunpack.c.l.b16 %v2414
        %v2576 = vunpack.c.l.b16 %v2415
        %v2577 = vunpack.c.l.b16 %v2416
        %v2578 = vunpack.c.l.b16 %v2417
        %v2579 = vunpack.c.l.b16 %v2418
        %v2580 = vunpack.c.l.b16 %v2419
        %v2581 = vunpack.c.l.b16 %v2420
        %v2582 = vunpack.c.l.b16 %v2421
        %v2583 = vunpack.c.l.b16 %v2422
        %v2584 = vunpack.c.l.b16 %v2423
        %v2585 = vunpack.c.l.b16 %v2424
        %v2586 = vunpack.c.l.b16 %v2425
        %v2587 = vunpack.c.l.b16 %v2426
        %v2588 = vunpack.c.l.b16 %v2427
        %v2589 = vunpack.c.l.b16 %v2428
        %v2590 = vunpack.c.l.b16 %v2429
        %v2591 = vunpack.c.l.b16 %v2430
        %v2592 = vunpack.c.l.b16 %v2431
        %v2593 = vunpack.c.l.b16 %v2432
        %v2594 = vunpack.c.l.b16 %v2433
        %v2595 = vunpack.c.l.b16 %v2434
        %v2596 = vunpack.c.l.b16 %v2435
        %v2597 = vrot.slane %v2533, 1
        %vm2598 = vcmask 1041409
        %v2599 = vsel %vm2598, %v2534, %v2597
        %v2600 = vrot.slane %v2535, 7
        %vm2601 = vcmask 1042434
        %v2602 = vsel %vm2601, %v2600, %v2599
        %v2603 = vrot.slane %v2536, 6
        %vm2604 = vcmask 1043459
        %v2605 = vsel %vm2604, %v2603, %v2602
        %v2606 = vrot.slane %v2537, 5
        %vm2607 = vcmask 1044484
        %v2608 = vsel %vm2607, %v2606, %v2605
        %v2609 = vrot.slane %v2538, 4
        %vm2610 = vcmask 1045509
        %v2611 = vsel %vm2610, %v2609, %v2608
        %v2612 = vrot.slane %v2539, 3
        %vm2613 = vcmask 1046534
        %v2614 = vsel %vm2613, %v2612, %v2611
        %v2615 = vrot.slane %v2540, 2
        %vm2616 = vcmask 1047559
        %v2617 = vsel %vm2616, %v2615, %v2614
        %v2618 = vrot.slane %v2541, 1
        %v2619 = vsel %vm2598, %v2542, %v2618
        %v2620 = vrot.slane %v2543, 7
        %v2621 = vsel %vm2601, %v2620, %v2619
        %v2622 = vrot.slane %v2544, 6
        %v2623 = vsel %vm2604, %v2622, %v2621
        %v2624 = vrot.slane %v2545, 5
        %v2625 = vsel %vm2607, %v2624, %v2623
        %v2626 = vrot.slane %v2546, 4
        %v2627 = vsel %vm2610, %v2626, %v2625
        %v2628 = vrot.slane %v2547, 3
        %v2629 = vsel %vm2613, %v2628, %v2627
        %v2630 = vrot.slane %v2548, 2
        %v2631 = vsel %vm2616, %v2630, %v2629
        %v2632 = vrot.slane %v2549, 1
        %v2633 = vsel %vm2598, %v2550, %v2632
        %v2634 = vrot.slane %v2551, 7
        %v2635 = vsel %vm2601, %v2634, %v2633
        %v2636 = vrot.slane %v2552, 6
        %v2637 = vsel %vm2604, %v2636, %v2635
        %v2638 = vrot.slane %v2553, 5
        %v2639 = vsel %vm2607, %v2638, %v2637
        %v2640 = vrot.slane %v2554, 4
        %v2641 = vsel %vm2610, %v2640, %v2639
        %v2642 = vrot.slane %v2555, 3
        %v2643 = vsel %vm2613, %v2642, %v2641
        %v2644 = vrot.slane %v2556, 2
        %v2645 = vsel %vm2616, %v2644, %v2643
        %v2646 = vrot.slane %v2557, 1
        %v2647 = vsel %vm2598, %v2558, %v2646
        %v2648 = vrot.slane %v2559, 7
        %v2649 = vsel %vm2601, %v2648, %v2647
        %v2650 = vrot.slane %v2560, 6
        %v2651 = vsel %vm2604, %v2650, %v2649
        %v2652 = vrot.slane %v2561, 5
        %v2653 = vsel %vm2607, %v2652, %v2651
        %v2654 = vrot.slane %v2562, 4
        %v2655 = vsel %vm2610, %v2654, %v2653
        %v2656 = vrot.slane %v2563, 3
        %v2657 = vsel %vm2613, %v2656, %v2655
        %v2658 = vrot.slane %v2564, 2
        %v2659 = vsel %vm2616, %v2658, %v2657
        %v2660 = vrot.slane %v2565, 1
        %v2661 = vsel %vm2598, %v2566, %v2660
        %v2662 = vrot.slane %v2567, 7
        %v2663 = vsel %vm2601, %v2662, %v2661
        %v2664 = vrot.slane %v2568, 6
        %v2665 = vsel %vm2604, %v2664, %v2663
        %v2666 = vrot.slane %v2569, 5
        %v2667 = vsel %vm2607, %v2666, %v2665
        %v2668 = vrot.slane %v2570, 4
        %v2669 = vsel %vm2610, %v2668, %v2667
        %v2670 = vrot.slane %v2571, 3
        %v2671 = vsel %vm2613, %v2670, %v2669
        %v2672 = vrot.slane %v2572, 2
        %v2673 = vsel %vm2616, %v2672, %v2671
        %v2674 = vrot.slane %v2573, 1
        %v2675 = vsel %vm2598, %v2574, %v2674
        %v2676 = vrot.slane %v2575, 7
        %v2677 = vsel %vm2601, %v2676, %v2675
        %v2678 = vrot.slane %v2576, 6
        %v2679 = vsel %vm2604, %v2678, %v2677
        %v2680 = vrot.slane %v2577, 5
        %v2681 = vsel %vm2607, %v2680, %v2679
        %v2682 = vrot.slane %v2578, 4
        %v2683 = vsel %vm2610, %v2682, %v2681
        %v2684 = vrot.slane %v2579, 3
        %v2685 = vsel %vm2613, %v2684, %v2683
        %v2686 = vrot.slane %v2580, 2
        %v2687 = vsel %vm2616, %v2686, %v2685
        %v2688 = vrot.slane %v2581, 1
        %v2689 = vsel %vm2598, %v2582, %v2688
        %v2690 = vrot.slane %v2583, 7
        %v2691 = vsel %vm2601, %v2690, %v2689
        %v2692 = vrot.slane %v2584, 6
        %v2693 = vsel %vm2604, %v2692, %v2691
        %v2694 = vrot.slane %v2585, 5
        %v2695 = vsel %vm2607, %v2694, %v2693
        %v2696 = vrot.slane %v2586, 4
        %v2697 = vsel %vm2610, %v2696, %v2695
        %v2698 = vrot.slane %v2587, 3
        %v2699 = vsel %vm2613, %v2698, %v2697
        %v2700 = vrot.slane %v2588, 2
        %v2701 = vsel %vm2616, %v2700, %v2699
        %v2702 = vrot.slane %v2589, 1
        %v2703 = vsel %vm2598, %v2590, %v2702
        %v2704 = vrot.slane %v2591, 7
        %v2705 = vsel %vm2601, %v2704, %v2703
        %v2706 = vrot.slane %v2592, 6
        %v2707 = vsel %vm2604, %v2706, %v2705
        %v2708 = vrot.slane %v2593, 5
        %v2709 = vsel %vm2607, %v2708, %v2707
        %v2710 = vrot.slane %v2594, 4
        %v2711 = vsel %vm2610, %v2710, %v2709
        %v2712 = vrot.slane %v2595, 3
        %v2713 = vsel %vm2613, %v2712, %v2711
        %v2714 = vrot.slane %v2596, 2
        %v2715 = vsel %vm2616, %v2714, %v2713
        %v2716 = vpack.c.b16 %v2631, %v2617
        %v2717 = vpack.c.b16 %v2659, %v2645
        %v2718 = vpack.c.b16 %v2687, %v2673
        %v2719 = vpack.c.b16 %v2715, %v2701
        %v2736 = vunpack.c.l.b16 %v2453
        %v2737 = vunpack.c.h.b16 %v2453
        %v2738 = vunpack.c.l.b16 %v2454
        %v2739 = vunpack.c.h.b16 %v2454
        %v2740 = vunpack.c.l.b16 %v2455
        %v2741 = vunpack.c.h.b16 %v2455
        %v2742 = vunpack.c.l.b16 %v2456
        %v2743 = vunpack.c.h.b16 %v2456
        %v2744 = vunpack.c.l.b16 %v2457
        %v2745 = vunpack.c.h.b16 %v2457
        %v2746 = vunpack.c.l.b16 %v2458
        %v2747 = vunpack.c.h.b16 %v2458
        %v2748 = vunpack.c.l.b16 %v2459
        %v2749 = vunpack.c.h.b16 %v2459
        %v2750 = vunpack.c.l.b16 %v2460
        %v2751 = vunpack.c.h.b16 %v2460
        %v2752 = vunpack.c.l.b16 %v2461
        %v2753 = vunpack.c.h.b16 %v2461
        %v2754 = vunpack.c.l.b16 %v2462
        %v2755 = vunpack.c.h.b16 %v2462
        %v2756 = vunpack.c.l.b16 %v2463
        %v2757 = vunpack.c.h.b16 %v2463
        %v2758 = vunpack.c.l.b16 %v2464
        %v2759 = vunpack.c.h.b16 %v2464
        %v2760 = vunpack.c.l.b16 %v2465
        %v2761 = vunpack.c.h.b16 %v2465
        %v2762 = vunpack.c.l.b16 %v2466
        %v2763 = vunpack.c.h.b16 %v2466
        %v2764 = vunpack.c.l.b16 %v2467
        %v2765 = vunpack.c.h.b16 %v2467
        %v2766 = vunpack.c.l.b16 %v2468
        %v2767 = vunpack.c.h.b16 %v2468
        %v2768 = vpack.c.b16 %v2740, %v2736
        %v2769 = vpack.c.b16 %v2741, %v2737
        %v2770 = vpack.c.b16 %v2742, %v2738
        %v2771 = vpack.c.b16 %v2743, %v2739
        %v2772 = vpack.c.b16 %v2748, %v2744
        %v2773 = vpack.c.b16 %v2749, %v2745
        %v2774 = vpack.c.b16 %v2750, %v2746
        %v2775 = vpack.c.b16 %v2751, %v2747
        %v2776 = vpack.c.b16 %v2756, %v2752
        %v2777 = vpack.c.b16 %v2757, %v2753
        %v2778 = vpack.c.b16 %v2758, %v2754
        %v2779 = vpack.c.b16 %v2759, %v2755
        %v2780 = vpack.c.b16 %v2764, %v2760
        %v2781 = vpack.c.b16 %v2765, %v2761
        %v2782 = vpack.c.b16 %v2766, %v2762
        %v2783 = vpack.c.b16 %v2767, %v2763
        %v2801 = vsel %vm1994, %v2716, 0
        %v2804 = vsel %vm1994, %v2717, 0
        %v2807 = vsel %vm1994, %v2718, 0
        %v2810 = vsel %vm1994, %v2719, 0
        %2812 = vmatpush.bf16.msra.mxu0 0
        %2813 = vmatpush.bf16.msra.mxu0 0
        %2814 = vmatpush.bf16.msra.mxu0 0
        %2815 = vmatpush.bf16.msra.mxu0 0
        %2816 = vmatpush.bf16.msra.mxu0 %v2780
        %2817 = vmatpush.bf16.msra.mxu0 %v2776
        %2818 = vmatpush.bf16.msra.mxu0 %v2772
        %2819 = vmatpush.bf16.msra.mxu0 %v2768
        %2820 = vmatmul.bf16.gmra.mxu0 %v2801
        %v2821 = vpop.f32.mrf.mxu0
        %v2822 = vadd.f32 0.0, %v2821
        %v2823 = vpop.f32.mrf.mxu0
        %v2824 = vadd.f32 0.0, %v2823
        %2825 = vmatmul.bf16.gmra.mxu0 %v2804
        %v2826 = vpop.f32.mrf.mxu0
        %v2827 = vadd.f32 0.0, %v2826
        %v2828 = vpop.f32.mrf.mxu0
        %v2829 = vadd.f32 0.0, %v2828
        %2830 = vmatmul.bf16.gmra.mxu0 %v2807
        %v2831 = vpop.f32.mrf.mxu0
        %v2832 = vadd.f32 0.0, %v2831
        %v2833 = vpop.f32.mrf.mxu0
        %v2834 = vadd.f32 0.0, %v2833
        %2835 = vmatmul.bf16.gmra.mxu0 %v2810
        %v2836 = vpop.f32.mrf.mxu0
        %v2837 = vadd.f32 0.0, %v2836
        %v2838 = vpop.f32.mrf.mxu0
        %v2839 = vadd.f32 0.0, %v2838
        %2840 = vdwg.mxu0
        %2841 = vmatpush.bf16.msra.mxu0 0
        %2842 = vmatpush.bf16.msra.mxu0 0
        %2843 = vmatpush.bf16.msra.mxu0 0
        %2844 = vmatpush.bf16.msra.mxu0 0
        %2845 = vmatpush.bf16.msra.mxu0 %v2781
        %2846 = vmatpush.bf16.msra.mxu0 %v2777
        %2847 = vmatpush.bf16.msra.mxu0 %v2773
        %2848 = vmatpush.bf16.msra.mxu0 %v2769
        %2849 = vmatmul.bf16.gmra.mxu0 %v2801
        %v2850 = vpop.f32.mrf.mxu0
        %v2851 = vadd.f32 0.0, %v2850
        %v2852 = vpop.f32.mrf.mxu0
        %v2853 = vadd.f32 0.0, %v2852
        %2854 = vmatmul.bf16.gmra.mxu0 %v2804
        %v2855 = vpop.f32.mrf.mxu0
        %v2856 = vadd.f32 0.0, %v2855
        %v2857 = vpop.f32.mrf.mxu0
        %v2858 = vadd.f32 0.0, %v2857
        %2859 = vmatmul.bf16.gmra.mxu0 %v2807
        %v2860 = vpop.f32.mrf.mxu0
        %v2861 = vadd.f32 0.0, %v2860
        %v2862 = vpop.f32.mrf.mxu0
        %v2863 = vadd.f32 0.0, %v2862
        %2864 = vmatmul.bf16.gmra.mxu0 %v2810
        %v2865 = vpop.f32.mrf.mxu0
        %v2866 = vadd.f32 0.0, %v2865
        %v2867 = vpop.f32.mrf.mxu0
        %v2868 = vadd.f32 0.0, %v2867
        %2869 = vdwg.mxu0
        %2870 = vmatpush.bf16.msra.mxu0 0
        %2871 = vmatpush.bf16.msra.mxu0 0
        %2872 = vmatpush.bf16.msra.mxu0 0
        %2873 = vmatpush.bf16.msra.mxu0 0
        %2874 = vmatpush.bf16.msra.mxu0 %v2782
        %2875 = vmatpush.bf16.msra.mxu0 %v2778
        %2876 = vmatpush.bf16.msra.mxu0 %v2774
        %2877 = vmatpush.bf16.msra.mxu0 %v2770
        %2878 = vmatmul.bf16.gmra.mxu0 %v2801
        %v2879 = vpop.f32.mrf.mxu0
        %v2880 = vadd.f32 0.0, %v2879
        %v2881 = vpop.f32.mrf.mxu0
        %v2882 = vadd.f32 0.0, %v2881
        %2883 = vmatmul.bf16.gmra.mxu0 %v2804
        %v2884 = vpop.f32.mrf.mxu0
        %v2885 = vadd.f32 0.0, %v2884
        %v2886 = vpop.f32.mrf.mxu0
        %v2887 = vadd.f32 0.0, %v2886
        %2888 = vmatmul.bf16.gmra.mxu0 %v2807
        %v2889 = vpop.f32.mrf.mxu0
        %v2890 = vadd.f32 0.0, %v2889
        %v2891 = vpop.f32.mrf.mxu0
        %v2892 = vadd.f32 0.0, %v2891
        %2893 = vmatmul.bf16.gmra.mxu0 %v2810
        %v2894 = vpop.f32.mrf.mxu0
        %v2895 = vadd.f32 0.0, %v2894
        %v2896 = vpop.f32.mrf.mxu0
        %v2897 = vadd.f32 0.0, %v2896
        %2898 = vdwg.mxu0
        %2899 = vmatpush.bf16.msra.mxu0 0
        %2900 = vmatpush.bf16.msra.mxu0 0
        %2901 = vmatpush.bf16.msra.mxu0 0
        %2902 = vmatpush.bf16.msra.mxu0 0
        %2903 = vmatpush.bf16.msra.mxu0 %v2783
        %2904 = vmatpush.bf16.msra.mxu0 %v2779
        %2905 = vmatpush.bf16.msra.mxu0 %v2775
        %2906 = vmatpush.bf16.msra.mxu0 %v2771
        %2907 = vmatmul.bf16.gmra.mxu0 %v2801
        %v2908 = vpop.f32.mrf.mxu0
        %v2909 = vadd.f32 0.0, %v2908
        %v2910 = vpop.f32.mrf.mxu0
        %v2911 = vadd.f32 0.0, %v2910
        %2912 = vmatmul.bf16.gmra.mxu0 %v2804
        %v2913 = vpop.f32.mrf.mxu0
        %v2914 = vadd.f32 0.0, %v2913
        %v2915 = vpop.f32.mrf.mxu0
        %v2916 = vadd.f32 0.0, %v2915
        %2917 = vmatmul.bf16.gmra.mxu0 %v2807
        %v2918 = vpop.f32.mrf.mxu0
        %v2919 = vadd.f32 0.0, %v2918
        %v2920 = vpop.f32.mrf.mxu0
        %v2921 = vadd.f32 0.0, %v2920
        %2922 = vmatmul.bf16.gmra.mxu0 %v2810
        %v2923 = vpop.f32.mrf.mxu0
        %v2924 = vadd.f32 0.0, %v2923
        %v2925 = vpop.f32.mrf.mxu0
        %v2926 = vadd.f32 0.0, %v2925
        %2927 = vdwg.mxu0
        %v2928 = vrot.slane %v2534, 7
        %v2929 = vsel %vm2598, %v2928, %v2533
        %v2930 = vrot.slane %v2535, 6
        %v2931 = vsel %vm2601, %v2930, %v2929
        %v2932 = vrot.slane %v2536, 5
        %v2933 = vsel %vm2604, %v2932, %v2931
        %v2934 = vrot.slane %v2537, 4
        %v2935 = vsel %vm2607, %v2934, %v2933
        %v2936 = vrot.slane %v2538, 3
        %v2937 = vsel %vm2610, %v2936, %v2935
        %v2938 = vrot.slane %v2539, 2
        %v2939 = vsel %vm2613, %v2938, %v2937
        %v2940 = vrot.slane %v2540, 1
        %v2941 = vsel %vm2616, %v2940, %v2939
        %v2942 = vrot.slane %v2542, 7
        %v2943 = vsel %vm2598, %v2942, %v2541
        %v2944 = vrot.slane %v2543, 6
        %v2945 = vsel %vm2601, %v2944, %v2943
        %v2946 = vrot.slane %v2544, 5
        %v2947 = vsel %vm2604, %v2946, %v2945
        %v2948 = vrot.slane %v2545, 4
        %v2949 = vsel %vm2607, %v2948, %v2947
        %v2950 = vrot.slane %v2546, 3
        %v2951 = vsel %vm2610, %v2950, %v2949
        %v2952 = vrot.slane %v2547, 2
        %v2953 = vsel %vm2613, %v2952, %v2951
        %v2954 = vrot.slane %v2548, 1
        %v2955 = vsel %vm2616, %v2954, %v2953
        %v2956 = vrot.slane %v2550, 7
        %v2957 = vsel %vm2598, %v2956, %v2549
        %v2958 = vrot.slane %v2551, 6
        %v2959 = vsel %vm2601, %v2958, %v2957
        %v2960 = vrot.slane %v2552, 5
        %v2961 = vsel %vm2604, %v2960, %v2959
        %v2962 = vrot.slane %v2553, 4
        %v2963 = vsel %vm2607, %v2962, %v2961
        %v2964 = vrot.slane %v2554, 3
        %v2965 = vsel %vm2610, %v2964, %v2963
        %v2966 = vrot.slane %v2555, 2
        %v2967 = vsel %vm2613, %v2966, %v2965
        %v2968 = vrot.slane %v2556, 1
        %v2969 = vsel %vm2616, %v2968, %v2967
        %v2970 = vrot.slane %v2558, 7
        %v2971 = vsel %vm2598, %v2970, %v2557
        %v2972 = vrot.slane %v2559, 6
        %v2973 = vsel %vm2601, %v2972, %v2971
        %v2974 = vrot.slane %v2560, 5
        %v2975 = vsel %vm2604, %v2974, %v2973
        %v2976 = vrot.slane %v2561, 4
        %v2977 = vsel %vm2607, %v2976, %v2975
        %v2978 = vrot.slane %v2562, 3
        %v2979 = vsel %vm2610, %v2978, %v2977
        %v2980 = vrot.slane %v2563, 2
        %v2981 = vsel %vm2613, %v2980, %v2979
        %v2982 = vrot.slane %v2564, 1
        %v2983 = vsel %vm2616, %v2982, %v2981
        %v2984 = vrot.slane %v2566, 7
        %v2985 = vsel %vm2598, %v2984, %v2565
        %v2986 = vrot.slane %v2567, 6
        %v2987 = vsel %vm2601, %v2986, %v2985
        %v2988 = vrot.slane %v2568, 5
        %v2989 = vsel %vm2604, %v2988, %v2987
        %v2990 = vrot.slane %v2569, 4
        %v2991 = vsel %vm2607, %v2990, %v2989
        %v2992 = vrot.slane %v2570, 3
        %v2993 = vsel %vm2610, %v2992, %v2991
        %v2994 = vrot.slane %v2571, 2
        %v2995 = vsel %vm2613, %v2994, %v2993
        %v2996 = vrot.slane %v2572, 1
        %v2997 = vsel %vm2616, %v2996, %v2995
        %v2998 = vrot.slane %v2574, 7
        %v2999 = vsel %vm2598, %v2998, %v2573
        %v3000 = vrot.slane %v2575, 6
        %v3001 = vsel %vm2601, %v3000, %v2999
        %v3002 = vrot.slane %v2576, 5
        %v3003 = vsel %vm2604, %v3002, %v3001
        %v3004 = vrot.slane %v2577, 4
        %v3005 = vsel %vm2607, %v3004, %v3003
        %v3006 = vrot.slane %v2578, 3
        %v3007 = vsel %vm2610, %v3006, %v3005
        %v3008 = vrot.slane %v2579, 2
        %v3009 = vsel %vm2613, %v3008, %v3007
        %v3010 = vrot.slane %v2580, 1
        %v3011 = vsel %vm2616, %v3010, %v3009
        %v3012 = vrot.slane %v2582, 7
        %v3013 = vsel %vm2598, %v3012, %v2581
        %v3014 = vrot.slane %v2583, 6
        %v3015 = vsel %vm2601, %v3014, %v3013
        %v3016 = vrot.slane %v2584, 5
        %v3017 = vsel %vm2604, %v3016, %v3015
        %v3018 = vrot.slane %v2585, 4
        %v3019 = vsel %vm2607, %v3018, %v3017
        %v3020 = vrot.slane %v2586, 3
        %v3021 = vsel %vm2610, %v3020, %v3019
        %v3022 = vrot.slane %v2587, 2
        %v3023 = vsel %vm2613, %v3022, %v3021
        %v3024 = vrot.slane %v2588, 1
        %v3025 = vsel %vm2616, %v3024, %v3023
        %v3026 = vrot.slane %v2590, 7
        %v3027 = vsel %vm2598, %v3026, %v2589
        %v3028 = vrot.slane %v2591, 6
        %v3029 = vsel %vm2601, %v3028, %v3027
        %v3030 = vrot.slane %v2592, 5
        %v3031 = vsel %vm2604, %v3030, %v3029
        %v3032 = vrot.slane %v2593, 4
        %v3033 = vsel %vm2607, %v3032, %v3031
        %v3034 = vrot.slane %v2594, 3
        %v3035 = vsel %vm2610, %v3034, %v3033
        %v3036 = vrot.slane %v2595, 2
        %v3037 = vsel %vm2613, %v3036, %v3035
        %v3038 = vrot.slane %v2596, 1
        %v3039 = vsel %vm2616, %v3038, %v3037
        %v3040 = vpack.c.b16 %v2955, %v2941
        %v3041 = vpack.c.b16 %v2983, %v2969
        %v3042 = vpack.c.b16 %v3011, %v2997
        %v3043 = vpack.c.b16 %v3039, %v3025
        %v3060 = vunpack.c.l.b16 %v2436
        %v3061 = vunpack.c.h.b16 %v2436
        %v3062 = vunpack.c.l.b16 %v2437
        %v3063 = vunpack.c.h.b16 %v2437
        %v3064 = vunpack.c.l.b16 %v2438
        %v3065 = vunpack.c.h.b16 %v2438
        %v3066 = vunpack.c.l.b16 %v2439
        %v3067 = vunpack.c.h.b16 %v2439
        %v3068 = vunpack.c.l.b16 %v2440
        %v3069 = vunpack.c.h.b16 %v2440
        %v3070 = vunpack.c.l.b16 %v2441
        %v3071 = vunpack.c.h.b16 %v2441
        %v3072 = vunpack.c.l.b16 %v2442
        %v3073 = vunpack.c.h.b16 %v2442
        %v3074 = vunpack.c.l.b16 %v2443
        %v3075 = vunpack.c.h.b16 %v2443
        %v3076 = vunpack.c.l.b16 %v2444
        %v3077 = vunpack.c.h.b16 %v2444
        %v3078 = vunpack.c.l.b16 %v2445
        %v3079 = vunpack.c.h.b16 %v2445
        %v3080 = vunpack.c.l.b16 %v2446
        %v3081 = vunpack.c.h.b16 %v2446
        %v3082 = vunpack.c.l.b16 %v2447
        %v3083 = vunpack.c.h.b16 %v2447
        %v3084 = vunpack.c.l.b16 %v2448
        %v3085 = vunpack.c.h.b16 %v2448
        %v3086 = vunpack.c.l.b16 %v2449
        %v3087 = vunpack.c.h.b16 %v2449
        %v3088 = vunpack.c.l.b16 %v2450
        %v3089 = vunpack.c.h.b16 %v2450
        %v3090 = vunpack.c.l.b16 %v2451
        %v3091 = vunpack.c.h.b16 %v2451
        %v3092 = vpack.c.b16 %v3064, %v3060
        %v3093 = vpack.c.b16 %v3065, %v3061
        %v3094 = vpack.c.b16 %v3066, %v3062
        %v3095 = vpack.c.b16 %v3067, %v3063
        %v3096 = vpack.c.b16 %v3072, %v3068
        %v3097 = vpack.c.b16 %v3073, %v3069
        %v3098 = vpack.c.b16 %v3074, %v3070
        %v3099 = vpack.c.b16 %v3075, %v3071
        %v3100 = vpack.c.b16 %v3080, %v3076
        %v3101 = vpack.c.b16 %v3081, %v3077
        %v3102 = vpack.c.b16 %v3082, %v3078
        %v3103 = vpack.c.b16 %v3083, %v3079
        %v3104 = vpack.c.b16 %v3088, %v3084
        %v3105 = vpack.c.b16 %v3089, %v3085
        %v3106 = vpack.c.b16 %v3090, %v3086
        %v3107 = vpack.c.b16 %v3091, %v3087
        %v3125 = vsel %vm1994, %v3040, 0
        %v3128 = vsel %vm1994, %v3041, 0
        %v3131 = vsel %vm1994, %v3042, 0
        %v3134 = vsel %vm1994, %v3043, 0
        %3136 = vmatpush.bf16.msra.mxu0 0
        %3137 = vmatpush.bf16.msra.mxu0 0
        %3138 = vmatpush.bf16.msra.mxu0 0
        %3139 = vmatpush.bf16.msra.mxu0 0
        %3140 = vmatpush.bf16.msra.mxu0 %v3104
        %3141 = vmatpush.bf16.msra.mxu0 %v3100
        %3142 = vmatpush.bf16.msra.mxu0 %v3096
        %3143 = vmatpush.bf16.msra.mxu0 %v3092
        %3144 = vmatmul.bf16.gmra.mxu0 %v3125
        %v3145 = vpop.f32.mrf.mxu0
        %v3146 = vadd.f32 %v2822, %v3145
        %v3147 = vpop.f32.mrf.mxu0
        %v3148 = vadd.f32 %v2824, %v3147
        %3149 = vmatmul.bf16.gmra.mxu0 %v3128
        %v3150 = vpop.f32.mrf.mxu0
        %v3151 = vadd.f32 %v2827, %v3150
        %v3152 = vpop.f32.mrf.mxu0
        %v3153 = vadd.f32 %v2829, %v3152
        %3154 = vmatmul.bf16.gmra.mxu0 %v3131
        %v3155 = vpop.f32.mrf.mxu0
        %v3156 = vadd.f32 %v2832, %v3155
        %v3157 = vpop.f32.mrf.mxu0
        %v3158 = vadd.f32 %v2834, %v3157
        %3159 = vmatmul.bf16.gmra.mxu0 %v3134
        %v3160 = vpop.f32.mrf.mxu0
        %v3161 = vadd.f32 %v2837, %v3160
        %v3162 = vpop.f32.mrf.mxu0
        %v3163 = vadd.f32 %v2839, %v3162
        %3164 = vdwg.mxu0
        %3165 = vmatpush.bf16.msra.mxu0 0
        %3166 = vmatpush.bf16.msra.mxu0 0
        %3167 = vmatpush.bf16.msra.mxu0 0
        %3168 = vmatpush.bf16.msra.mxu0 0
        %3169 = vmatpush.bf16.msra.mxu0 %v3105
        %3170 = vmatpush.bf16.msra.mxu0 %v3101
        %3171 = vmatpush.bf16.msra.mxu0 %v3097
        %3172 = vmatpush.bf16.msra.mxu0 %v3093
        %3173 = vmatmul.bf16.gmra.mxu0 %v3125
        %v3174 = vpop.f32.mrf.mxu0
        %v3175 = vadd.f32 %v2851, %v3174
        %v3176 = vpop.f32.mrf.mxu0
        %v3177 = vadd.f32 %v2853, %v3176
        %3178 = vmatmul.bf16.gmra.mxu0 %v3128
        %v3179 = vpop.f32.mrf.mxu0
        %v3180 = vadd.f32 %v2856, %v3179
        %v3181 = vpop.f32.mrf.mxu0
        %v3182 = vadd.f32 %v2858, %v3181
        %3183 = vmatmul.bf16.gmra.mxu0 %v3131
        %v3184 = vpop.f32.mrf.mxu0
        %v3185 = vadd.f32 %v2861, %v3184
        %v3186 = vpop.f32.mrf.mxu0
        %v3187 = vadd.f32 %v2863, %v3186
        %3188 = vmatmul.bf16.gmra.mxu0 %v3134
        %v3189 = vpop.f32.mrf.mxu0
        %v3190 = vadd.f32 %v2866, %v3189
        %v3191 = vpop.f32.mrf.mxu0
        %v3192 = vadd.f32 %v2868, %v3191
        %3193 = vdwg.mxu0
        %3194 = vmatpush.bf16.msra.mxu0 0
        %3195 = vmatpush.bf16.msra.mxu0 0
        %3196 = vmatpush.bf16.msra.mxu0 0
        %3197 = vmatpush.bf16.msra.mxu0 0
        %3198 = vmatpush.bf16.msra.mxu0 %v3106
        %3199 = vmatpush.bf16.msra.mxu0 %v3102
        %3200 = vmatpush.bf16.msra.mxu0 %v3098
        %3201 = vmatpush.bf16.msra.mxu0 %v3094
        %3202 = vmatmul.bf16.gmra.mxu0 %v3125
        %v3203 = vpop.f32.mrf.mxu0
        %v3204 = vadd.f32 %v2880, %v3203
        %v3205 = vpop.f32.mrf.mxu0
        %v3206 = vadd.f32 %v2882, %v3205
        %3207 = vmatmul.bf16.gmra.mxu0 %v3128
        %v3208 = vpop.f32.mrf.mxu0
        %v3209 = vadd.f32 %v2885, %v3208
        %v3210 = vpop.f32.mrf.mxu0
        %v3211 = vadd.f32 %v2887, %v3210
        %3212 = vmatmul.bf16.gmra.mxu0 %v3131
        %v3213 = vpop.f32.mrf.mxu0
        %v3214 = vadd.f32 %v2890, %v3213
        %v3215 = vpop.f32.mrf.mxu0
        %v3216 = vadd.f32 %v2892, %v3215
        %3217 = vmatmul.bf16.gmra.mxu0 %v3134
        %v3218 = vpop.f32.mrf.mxu0
        %v3219 = vadd.f32 %v2895, %v3218
        %v3220 = vpop.f32.mrf.mxu0
        %v3221 = vadd.f32 %v2897, %v3220
        %3222 = vdwg.mxu0
        %3223 = vmatpush.bf16.msra.mxu0 0
        %3224 = vmatpush.bf16.msra.mxu0 0
        %3225 = vmatpush.bf16.msra.mxu0 0
        %3226 = vmatpush.bf16.msra.mxu0 0
        %3227 = vmatpush.bf16.msra.mxu0 %v3107
        %3228 = vmatpush.bf16.msra.mxu0 %v3103
        %3229 = vmatpush.bf16.msra.mxu0 %v3099
        %3230 = vmatpush.bf16.msra.mxu0 %v3095
        %3231 = vmatmul.bf16.gmra.mxu0 %v3125
        %v3232 = vpop.f32.mrf.mxu0
        %v3233 = vadd.f32 %v2909, %v3232
        %v3234 = vpop.f32.mrf.mxu0
        %v3235 = vadd.f32 %v2911, %v3234
        %3236 = vmatmul.bf16.gmra.mxu0 %v3128
        %v3237 = vpop.f32.mrf.mxu0
        %v3238 = vadd.f32 %v2914, %v3237
        %v3239 = vpop.f32.mrf.mxu0
        %v3240 = vadd.f32 %v2916, %v3239
        %3241 = vmatmul.bf16.gmra.mxu0 %v3131
        %v3242 = vpop.f32.mrf.mxu0
        %v3243 = vadd.f32 %v2919, %v3242
        %v3244 = vpop.f32.mrf.mxu0
        %v3245 = vadd.f32 %v2921, %v3244
        %3246 = vmatmul.bf16.gmra.mxu0 %v3134
        %v3247 = vpop.f32.mrf.mxu0
        %v3248 = vadd.f32 %v2924, %v3247
        %v3249 = vpop.f32.mrf.mxu0
        %v3250 = vadd.f32 %v2926, %v3249
        %3251 = vdwg.mxu0
        %v3252 = vpack.c.bf16 %v2085, %v2085
        %v3253 = vpack.c.bf16 %v2091, %v2091
        %v3254 = vpack.c.bf16 %v2097, %v2097
        %v3255 = vpack.c.bf16 %v2103, %v2103
        %v3256 = vpack.c.bf16 %v2109, %v2109
        %v3257 = vpack.c.bf16 %v2115, %v2115
        %v3258 = vpack.c.bf16 %v2121, %v2121
        %v3259 = vpack.c.bf16 %v2127, %v2127
        %s3260 = scalar_lea.vmem %s3, 256
        %v3261 = vld [vmem:[%s3260] sm:$0xff]
        %v3262 = vld [vmem:[%s3260 + $0x8] sm:$0xff]
        %v3263 = vld [vmem:[%s3260 + $0x10] sm:$0xff]
        %v3264 = vld [vmem:[%s3260 + $0x18] sm:$0xff]
        %v3265 = vld [vmem:[%s3260 + $0x20] sm:$0xff]
        %v3266 = vld [vmem:[%s3260 + $0x28] sm:$0xff]
        %v3267 = vld [vmem:[%s3260 + $0x30] sm:$0xff]
        %v3268 = vld [vmem:[%s3260 + $0x38] sm:$0xff]
        %v3269 = vld [vmem:[%s3260 + $0x40] sm:$0xff]
        %v3270 = vld [vmem:[%s3260 + $0x48] sm:$0xff]
        %v3271 = vld [vmem:[%s3260 + $0x50] sm:$0xff]
        %v3272 = vld [vmem:[%s3260 + $0x58] sm:$0xff]
        %v3273 = vld [vmem:[%s3260 + $0x60] sm:$0xff]
        %v3274 = vld [vmem:[%s3260 + $0x68] sm:$0xff]
        %v3275 = vld [vmem:[%s3260 + $0x70] sm:$0xff]
        %v3276 = vld [vmem:[%s3260 + $0x78] sm:$0xff]
        %v3285 = vunpack.c.l.b16 %v3252
        %v3286 = vunpack.c.l.b16 %v3253
        %v3287 = vunpack.c.l.b16 %v3254
        %v3288 = vunpack.c.l.b16 %v3255
        %v3289 = vunpack.c.l.b16 %v3256
        %v3290 = vunpack.c.l.b16 %v3257
        %v3291 = vunpack.c.l.b16 %v3258
        %v3292 = vunpack.c.l.b16 %v3259
        %v3293 = vsel %vm2598, %v2600, %v2534
        %v3294 = vsel %vm2601, %v2603, %v3293
        %v3295 = vsel %vm2604, %v2606, %v3294
        %v3296 = vsel %vm2607, %v2609, %v3295
        %v3297 = vsel %vm2610, %v2612, %v3296
        %v3298 = vsel %vm2613, %v2615, %v3297
        %v3299 = vrot.slane %v3285, 1
        %v3300 = vsel %vm2616, %v3299, %v3298
        %v3301 = vsel %vm2598, %v2620, %v2542
        %v3302 = vsel %vm2601, %v2622, %v3301
        %v3303 = vsel %vm2604, %v2624, %v3302
        %v3304 = vsel %vm2607, %v2626, %v3303
        %v3305 = vsel %vm2610, %v2628, %v3304
        %v3306 = vsel %vm2613, %v2630, %v3305
        %v3307 = vrot.slane %v3286, 1
        %v3308 = vsel %vm2616, %v3307, %v3306
        %v3309 = vsel %vm2598, %v2634, %v2550
        %v3310 = vsel %vm2601, %v2636, %v3309
        %v3311 = vsel %vm2604, %v2638, %v3310
        %v3312 = vsel %vm2607, %v2640, %v3311
        %v3313 = vsel %vm2610, %v2642, %v3312
        %v3314 = vsel %vm2613, %v2644, %v3313
        %v3315 = vrot.slane %v3287, 1
        %v3316 = vsel %vm2616, %v3315, %v3314
        %v3317 = vsel %vm2598, %v2648, %v2558
        %v3318 = vsel %vm2601, %v2650, %v3317
        %v3319 = vsel %vm2604, %v2652, %v3318
        %v3320 = vsel %vm2607, %v2654, %v3319
        %v3321 = vsel %vm2610, %v2656, %v3320
        %v3322 = vsel %vm2613, %v2658, %v3321
        %v3323 = vrot.slane %v3288, 1
        %v3324 = vsel %vm2616, %v3323, %v3322
        %v3325 = vsel %vm2598, %v2662, %v2566
        %v3326 = vsel %vm2601, %v2664, %v3325
        %v3327 = vsel %vm2604, %v2666, %v3326
        %v3328 = vsel %vm2607, %v2668, %v3327
        %v3329 = vsel %vm2610, %v2670, %v3328
        %v3330 = vsel %vm2613, %v2672, %v3329
        %v3331 = vrot.slane %v3289, 1
        %v3332 = vsel %vm2616, %v3331, %v3330
        %v3333 = vsel %vm2598, %v2676, %v2574
        %v3334 = vsel %vm2601, %v2678, %v3333
        %v3335 = vsel %vm2604, %v2680, %v3334
        %v3336 = vsel %vm2607, %v2682, %v3335
        %v3337 = vsel %vm2610, %v2684, %v3336
        %v3338 = vsel %vm2613, %v2686, %v3337
        %v3339 = vrot.slane %v3290, 1
        %v3340 = vsel %vm2616, %v3339, %v3338
        %v3341 = vsel %vm2598, %v2690, %v2582
        %v3342 = vsel %vm2601, %v2692, %v3341
        %v3343 = vsel %vm2604, %v2694, %v3342
        %v3344 = vsel %vm2607, %v2696, %v3343
        %v3345 = vsel %vm2610, %v2698, %v3344
        %v3346 = vsel %vm2613, %v2700, %v3345
        %v3347 = vrot.slane %v3291, 1
        %v3348 = vsel %vm2616, %v3347, %v3346
        %v3349 = vsel %vm2598, %v2704, %v2590
        %v3350 = vsel %vm2601, %v2706, %v3349
        %v3351 = vsel %vm2604, %v2708, %v3350
        %v3352 = vsel %vm2607, %v2710, %v3351
        %v3353 = vsel %vm2610, %v2712, %v3352
        %v3354 = vsel %vm2613, %v2714, %v3353
        %v3355 = vrot.slane %v3292, 1
        %v3356 = vsel %vm2616, %v3355, %v3354
        %v3357 = vpack.c.b16 %v3308, %v3300
        %v3358 = vpack.c.b16 %v3324, %v3316
        %v3359 = vpack.c.b16 %v3340, %v3332
        %v3360 = vpack.c.b16 %v3356, %v3348
        %v3377 = vunpack.c.l.b16 %v3261
        %v3378 = vunpack.c.h.b16 %v3261
        %v3379 = vunpack.c.l.b16 %v3262
        %v3380 = vunpack.c.h.b16 %v3262
        %v3381 = vunpack.c.l.b16 %v3263
        %v3382 = vunpack.c.h.b16 %v3263
        %v3383 = vunpack.c.l.b16 %v3264
        %v3384 = vunpack.c.h.b16 %v3264
        %v3385 = vunpack.c.l.b16 %v3265
        %v3386 = vunpack.c.h.b16 %v3265
        %v3387 = vunpack.c.l.b16 %v3266
        %v3388 = vunpack.c.h.b16 %v3266
        %v3389 = vunpack.c.l.b16 %v3267
        %v3390 = vunpack.c.h.b16 %v3267
        %v3391 = vunpack.c.l.b16 %v3268
        %v3392 = vunpack.c.h.b16 %v3268
        %v3393 = vunpack.c.l.b16 %v3269
        %v3394 = vunpack.c.h.b16 %v3269
        %v3395 = vunpack.c.l.b16 %v3270
        %v3396 = vunpack.c.h.b16 %v3270
        %v3397 = vunpack.c.l.b16 %v3271
        %v3398 = vunpack.c.h.b16 %v3271
        %v3399 = vunpack.c.l.b16 %v3272
        %v3400 = vunpack.c.h.b16 %v3272
        %v3401 = vunpack.c.l.b16 %v3273
        %v3402 = vunpack.c.h.b16 %v3273
        %v3403 = vunpack.c.l.b16 %v3274
        %v3404 = vunpack.c.h.b16 %v3274
        %v3405 = vunpack.c.l.b16 %v3275
        %v3406 = vunpack.c.h.b16 %v3275
        %v3407 = vunpack.c.l.b16 %v3276
        %v3408 = vunpack.c.h.b16 %v3276
        %v3409 = vpack.c.b16 %v3381, %v3377
        %v3410 = vpack.c.b16 %v3382, %v3378
        %v3411 = vpack.c.b16 %v3383, %v3379
        %v3412 = vpack.c.b16 %v3384, %v3380
        %v3413 = vpack.c.b16 %v3389, %v3385
        %v3414 = vpack.c.b16 %v3390, %v3386
        %v3415 = vpack.c.b16 %v3391, %v3387
        %v3416 = vpack.c.b16 %v3392, %v3388
        %v3417 = vpack.c.b16 %v3397, %v3393
        %v3418 = vpack.c.b16 %v3398, %v3394
        %v3419 = vpack.c.b16 %v3399, %v3395
        %v3420 = vpack.c.b16 %v3400, %v3396
        %v3421 = vpack.c.b16 %v3405, %v3401
        %v3422 = vpack.c.b16 %v3406, %v3402
        %v3423 = vpack.c.b16 %v3407, %v3403
        %v3424 = vpack.c.b16 %v3408, %v3404
        %v3442 = vsel %vm1994, %v3357, 0
        %v3445 = vsel %vm1994, %v3358, 0
        %v3448 = vsel %vm1994, %v3359, 0
        %v3451 = vsel %vm1994, %v3360, 0
        %3453 = vmatpush.bf16.msra.mxu0 0
        %3454 = vmatpush.bf16.msra.mxu0 0
        %3455 = vmatpush.bf16.msra.mxu0 0
        %3456 = vmatpush.bf16.msra.mxu0 0
        %3457 = vmatpush.bf16.msra.mxu0 %v3421
        %3458 = vmatpush.bf16.msra.mxu0 %v3417
        %3459 = vmatpush.bf16.msra.mxu0 %v3413
        %3460 = vmatpush.bf16.msra.mxu0 %v3409
        %3461 = vmatmul.bf16.gmra.mxu0 %v3442
        %v3462 = vpop.f32.mrf.mxu0
        %v3463 = vadd.f32 0.0, %v3462
        %v3464 = vpop.f32.mrf.mxu0
        %v3465 = vadd.f32 0.0, %v3464
        %3466 = vmatmul.bf16.gmra.mxu0 %v3445
        %v3467 = vpop.f32.mrf.mxu0
        %v3468 = vadd.f32 0.0, %v3467
        %v3469 = vpop.f32.mrf.mxu0
        %v3470 = vadd.f32 0.0, %v3469
        %3471 = vmatmul.bf16.gmra.mxu0 %v3448
        %v3472 = vpop.f32.mrf.mxu0
        %v3473 = vadd.f32 0.0, %v3472
        %v3474 = vpop.f32.mrf.mxu0
        %v3475 = vadd.f32 0.0, %v3474
        %3476 = vmatmul.bf16.gmra.mxu0 %v3451
        %v3477 = vpop.f32.mrf.mxu0
        %v3478 = vadd.f32 0.0, %v3477
        %v3479 = vpop.f32.mrf.mxu0
        %v3480 = vadd.f32 0.0, %v3479
        %3481 = vdwg.mxu0
        %3482 = vmatpush.bf16.msra.mxu0 0
        %3483 = vmatpush.bf16.msra.mxu0 0
        %3484 = vmatpush.bf16.msra.mxu0 0
        %3485 = vmatpush.bf16.msra.mxu0 0
        %3486 = vmatpush.bf16.msra.mxu0 %v3422
        %3487 = vmatpush.bf16.msra.mxu0 %v3418
        %3488 = vmatpush.bf16.msra.mxu0 %v3414
        %3489 = vmatpush.bf16.msra.mxu0 %v3410
        %3490 = vmatmul.bf16.gmra.mxu0 %v3442
        %v3491 = vpop.f32.mrf.mxu0
        %v3492 = vadd.f32 0.0, %v3491
        %v3493 = vpop.f32.mrf.mxu0
        %v3494 = vadd.f32 0.0, %v3493
        %3495 = vmatmul.bf16.gmra.mxu0 %v3445
        %v3496 = vpop.f32.mrf.mxu0
        %v3497 = vadd.f32 0.0, %v3496
        %v3498 = vpop.f32.mrf.mxu0
        %v3499 = vadd.f32 0.0, %v3498
        %3500 = vmatmul.bf16.gmra.mxu0 %v3448
        %v3501 = vpop.f32.mrf.mxu0
        %v3502 = vadd.f32 0.0, %v3501
        %v3503 = vpop.f32.mrf.mxu0
        %v3504 = vadd.f32 0.0, %v3503
        %3505 = vmatmul.bf16.gmra.mxu0 %v3451
        %v3506 = vpop.f32.mrf.mxu0
        %v3507 = vadd.f32 0.0, %v3506
        %v3508 = vpop.f32.mrf.mxu0
        %v3509 = vadd.f32 0.0, %v3508
        %3510 = vdwg.mxu0
        %3511 = vmatpush.bf16.msra.mxu0 0
        %3512 = vmatpush.bf16.msra.mxu0 0
        %3513 = vmatpush.bf16.msra.mxu0 0
        %3514 = vmatpush.bf16.msra.mxu0 0
        %3515 = vmatpush.bf16.msra.mxu0 %v3423
        %3516 = vmatpush.bf16.msra.mxu0 %v3419
        %3517 = vmatpush.bf16.msra.mxu0 %v3415
        %3518 = vmatpush.bf16.msra.mxu0 %v3411
        %3519 = vmatmul.bf16.gmra.mxu0 %v3442
        %v3520 = vpop.f32.mrf.mxu0
        %v3521 = vadd.f32 0.0, %v3520
        %v3522 = vpop.f32.mrf.mxu0
        %v3523 = vadd.f32 0.0, %v3522
        %3524 = vmatmul.bf16.gmra.mxu0 %v3445
        %v3525 = vpop.f32.mrf.mxu0
        %v3526 = vadd.f32 0.0, %v3525
        %v3527 = vpop.f32.mrf.mxu0
        %v3528 = vadd.f32 0.0, %v3527
        %3529 = vmatmul.bf16.gmra.mxu0 %v3448
        %v3530 = vpop.f32.mrf.mxu0
        %v3531 = vadd.f32 0.0, %v3530
        %v3532 = vpop.f32.mrf.mxu0
        %v3533 = vadd.f32 0.0, %v3532
        %3534 = vmatmul.bf16.gmra.mxu0 %v3451
        %v3535 = vpop.f32.mrf.mxu0
        %v3536 = vadd.f32 0.0, %v3535
        %v3537 = vpop.f32.mrf.mxu0
        %v3538 = vadd.f32 0.0, %v3537
        %3539 = vdwg.mxu0
        %3540 = vmatpush.bf16.msra.mxu0 0
        %3541 = vmatpush.bf16.msra.mxu0 0
        %3542 = vmatpush.bf16.msra.mxu0 0
        %3543 = vmatpush.bf16.msra.mxu0 0
        %3544 = vmatpush.bf16.msra.mxu0 %v3424
        %3545 = vmatpush.bf16.msra.mxu0 %v3420
        %3546 = vmatpush.bf16.msra.mxu0 %v3416
        %3547 = vmatpush.bf16.msra.mxu0 %v3412
        %3548 = vmatmul.bf16.gmra.mxu0 %v3442
        %v3549 = vpop.f32.mrf.mxu0
        %v3550 = vadd.f32 0.0, %v3549
        %v3551 = vpop.f32.mrf.mxu0
        %v3552 = vadd.f32 0.0, %v3551
        %3553 = vmatmul.bf16.gmra.mxu0 %v3445
        %v3554 = vpop.f32.mrf.mxu0
        %v3555 = vadd.f32 0.0, %v3554
        %v3556 = vpop.f32.mrf.mxu0
        %v3557 = vadd.f32 0.0, %v3556
        %3558 = vmatmul.bf16.gmra.mxu0 %v3448
        %v3559 = vpop.f32.mrf.mxu0
        %v3560 = vadd.f32 0.0, %v3559
        %v3561 = vpop.f32.mrf.mxu0
        %v3562 = vadd.f32 0.0, %v3561
        %3563 = vmatmul.bf16.gmra.mxu0 %v3451
        %v3564 = vpop.f32.mrf.mxu0
        %v3565 = vadd.f32 0.0, %v3564
        %v3566 = vpop.f32.mrf.mxu0
        %v3567 = vadd.f32 0.0, %v3566
        %3568 = vdwg.mxu0
        %v3569 = vadd.f32 %v3146, %v3463
        %v3570 = vadd.f32 %v3175, %v3492
        %v3571 = vadd.f32 %v3204, %v3521
        %v3572 = vadd.f32 %v3233, %v3550
        %v3573 = vadd.f32 %v3148, %v3465
        %v3574 = vadd.f32 %v3177, %v3494
        %v3575 = vadd.f32 %v3206, %v3523
        %v3576 = vadd.f32 %v3235, %v3552
        %v3577 = vadd.f32 %v3151, %v3468
        %v3578 = vadd.f32 %v3180, %v3497
        %v3579 = vadd.f32 %v3209, %v3526
        %v3580 = vadd.f32 %v3238, %v3555
        %v3581 = vadd.f32 %v3153, %v3470
        %v3582 = vadd.f32 %v3182, %v3499
        %v3583 = vadd.f32 %v3211, %v3528
        %v3584 = vadd.f32 %v3240, %v3557
        %v3585 = vadd.f32 %v3156, %v3473
        %v3586 = vadd.f32 %v3185, %v3502
        %v3587 = vadd.f32 %v3214, %v3531
        %v3588 = vadd.f32 %v3243, %v3560
        %v3589 = vadd.f32 %v3158, %v3475
        %v3590 = vadd.f32 %v3187, %v3504
        %v3591 = vadd.f32 %v3216, %v3533
        %v3592 = vadd.f32 %v3245, %v3562
        %v3593 = vadd.f32 %v3161, %v3478
        %v3594 = vadd.f32 %v3190, %v3507
        %v3595 = vadd.f32 %v3219, %v3536
        %v3596 = vadd.f32 %v3248, %v3565
        %v3597 = vadd.f32 %v3163, %v3480
        %v3598 = vadd.f32 %v3192, %v3509
        %v3599 = vadd.f32 %v3221, %v3538
        %v3600 = vadd.f32 %v3250, %v3567
        %v3601 = vpack.c.bf16 %v2086, %v2086
        %v3602 = vpack.c.bf16 %v2276, %v2276
        %v3603 = vpack.c.bf16 %v2277, %v2277
        %v3604 = vpack.c.bf16 %v2278, %v2278
        %v3605 = vpack.c.bf16 %v2087, %v2087
        %v3606 = vpack.c.bf16 %v2279, %v2279
        %v3607 = vpack.c.bf16 %v2280, %v2280
        %v3608 = vpack.c.bf16 %v2281, %v2281
        %v3609 = vpack.c.bf16 %v2092, %v2092
        %v3610 = vpack.c.bf16 %v2282, %v2282
        %v3611 = vpack.c.bf16 %v2283, %v2283
        %v3612 = vpack.c.bf16 %v2284, %v2284
        %v3613 = vpack.c.bf16 %v2093, %v2093
        %v3614 = vpack.c.bf16 %v2285, %v2285
        %v3615 = vpack.c.bf16 %v2286, %v2286
        %v3616 = vpack.c.bf16 %v2287, %v2287
        %v3617 = vpack.c.bf16 %v2098, %v2098
        %v3618 = vpack.c.bf16 %v2288, %v2288
        %v3619 = vpack.c.bf16 %v2289, %v2289
        %v3620 = vpack.c.bf16 %v2290, %v2290
        %v3621 = vpack.c.bf16 %v2099, %v2099
        %v3622 = vpack.c.bf16 %v2291, %v2291
        %v3623 = vpack.c.bf16 %v2292, %v2292
        %v3624 = vpack.c.bf16 %v2293, %v2293
        %v3625 = vpack.c.bf16 %v2104, %v2104
        %v3626 = vpack.c.bf16 %v2294, %v2294
        %v3627 = vpack.c.bf16 %v2295, %v2295
        %v3628 = vpack.c.bf16 %v2296, %v2296
        %v3629 = vpack.c.bf16 %v2105, %v2105
        %v3630 = vpack.c.bf16 %v2297, %v2297
        %v3631 = vpack.c.bf16 %v2298, %v2298
        %v3632 = vpack.c.bf16 %v2299, %v2299
        %v3633 = vpack.c.bf16 %v2110, %v2110
        %v3634 = vpack.c.bf16 %v2300, %v2300
        %v3635 = vpack.c.bf16 %v2301, %v2301
        %v3636 = vpack.c.bf16 %v2302, %v2302
        %v3637 = vpack.c.bf16 %v2111, %v2111
        %v3638 = vpack.c.bf16 %v2303, %v2303
        %v3639 = vpack.c.bf16 %v2304, %v2304
        %v3640 = vpack.c.bf16 %v2305, %v2305
        %v3641 = vpack.c.bf16 %v2116, %v2116
        %v3642 = vpack.c.bf16 %v2306, %v2306
        %v3643 = vpack.c.bf16 %v2307, %v2307
        %v3644 = vpack.c.bf16 %v2308, %v2308
        %v3645 = vpack.c.bf16 %v2117, %v2117
        %v3646 = vpack.c.bf16 %v2309, %v2309
        %v3647 = vpack.c.bf16 %v2310, %v2310
        %v3648 = vpack.c.bf16 %v2311, %v2311
        %v3649 = vpack.c.bf16 %v2122, %v2122
        %v3650 = vpack.c.bf16 %v2312, %v2312
        %v3651 = vpack.c.bf16 %v2313, %v2313
        %v3652 = vpack.c.bf16 %v2314, %v2314
        %v3653 = vpack.c.bf16 %v2123, %v2123
        %v3654 = vpack.c.bf16 %v2315, %v2315
        %v3655 = vpack.c.bf16 %v2316, %v2316
        %v3656 = vpack.c.bf16 %v2317, %v2317
        %v3657 = vpack.c.bf16 %v2128, %v2128
        %v3658 = vpack.c.bf16 %v2318, %v2318
        %v3659 = vpack.c.bf16 %v2319, %v2319
        %v3660 = vpack.c.bf16 %v2320, %v2320
        %v3661 = vpack.c.bf16 %v2129, %v2129
        %v3662 = vpack.c.bf16 %v2321, %v2321
        %v3663 = vpack.c.bf16 %v2322, %v2322
        %v3664 = vpack.c.bf16 %v2323, %v2323
        %s3665 = scalar_lea.vmem %s3, 384
        %v3666 = vld [vmem:[%s3665] sm:$0xff]
        %v3667 = vld [vmem:[%s3665 + $0x8] sm:$0xff]
        %v3668 = vld [vmem:[%s3665 + $0x10] sm:$0xff]
        %v3669 = vld [vmem:[%s3665 + $0x18] sm:$0xff]
        %v3670 = vld [vmem:[%s3665 + $0x20] sm:$0xff]
        %v3671 = vld [vmem:[%s3665 + $0x28] sm:$0xff]
        %v3672 = vld [vmem:[%s3665 + $0x30] sm:$0xff]
        %v3673 = vld [vmem:[%s3665 + $0x38] sm:$0xff]
        %v3674 = vld [vmem:[%s3665 + $0x40] sm:$0xff]
        %v3675 = vld [vmem:[%s3665 + $0x48] sm:$0xff]
        %v3676 = vld [vmem:[%s3665 + $0x50] sm:$0xff]
        %v3677 = vld [vmem:[%s3665 + $0x58] sm:$0xff]
        %v3678 = vld [vmem:[%s3665 + $0x60] sm:$0xff]
        %v3679 = vld [vmem:[%s3665 + $0x68] sm:$0xff]
        %v3680 = vld [vmem:[%s3665 + $0x70] sm:$0xff]
        %v3681 = vld [vmem:[%s3665 + $0x78] sm:$0xff]
        %v3746 = vunpack.c.l.b16 %v3601
        %v3747 = vunpack.c.l.b16 %v3602
        %v3748 = vunpack.c.l.b16 %v3603
        %v3749 = vunpack.c.l.b16 %v3604
        %v3750 = vunpack.c.l.b16 %v3605
        %v3751 = vunpack.c.l.b16 %v3606
        %v3752 = vunpack.c.l.b16 %v3607
        %v3753 = vunpack.c.l.b16 %v3608
        %v3754 = vunpack.c.l.b16 %v3609
        %v3755 = vunpack.c.l.b16 %v3610
        %v3756 = vunpack.c.l.b16 %v3611
        %v3757 = vunpack.c.l.b16 %v3612
        %v3758 = vunpack.c.l.b16 %v3613
        %v3759 = vunpack.c.l.b16 %v3614
        %v3760 = vunpack.c.l.b16 %v3615
        %v3761 = vunpack.c.l.b16 %v3616
        %v3762 = vunpack.c.l.b16 %v3617
        %v3763 = vunpack.c.l.b16 %v3618
        %v3764 = vunpack.c.l.b16 %v3619
        %v3765 = vunpack.c.l.b16 %v3620
        %v3766 = vunpack.c.l.b16 %v3621
        %v3767 = vunpack.c.l.b16 %v3622
        %v3768 = vunpack.c.l.b16 %v3623
        %v3769 = vunpack.c.l.b16 %v3624
        %v3770 = vunpack.c.l.b16 %v3625
        %v3771 = vunpack.c.l.b16 %v3626
        %v3772 = vunpack.c.l.b16 %v3627
        %v3773 = vunpack.c.l.b16 %v3628
        %v3774 = vunpack.c.l.b16 %v3629
        %v3775 = vunpack.c.l.b16 %v3630
        %v3776 = vunpack.c.l.b16 %v3631
        %v3777 = vunpack.c.l.b16 %v3632
        %v3778 = vunpack.c.l.b16 %v3633
        %v3779 = vunpack.c.l.b16 %v3634
        %v3780 = vunpack.c.l.b16 %v3635
        %v3781 = vunpack.c.l.b16 %v3636
        %v3782 = vunpack.c.l.b16 %v3637
        %v3783 = vunpack.c.l.b16 %v3638
        %v3784 = vunpack.c.l.b16 %v3639
        %v3785 = vunpack.c.l.b16 %v3640
        %v3786 = vunpack.c.l.b16 %v3641
        %v3787 = vunpack.c.l.b16 %v3642
        %v3788 = vunpack.c.l.b16 %v3643
        %v3789 = vunpack.c.l.b16 %v3644
        %v3790 = vunpack.c.l.b16 %v3645
        %v3791 = vunpack.c.l.b16 %v3646
        %v3792 = vunpack.c.l.b16 %v3647
        %v3793 = vunpack.c.l.b16 %v3648
        %v3794 = vunpack.c.l.b16 %v3649
        %v3795 = vunpack.c.l.b16 %v3650
        %v3796 = vunpack.c.l.b16 %v3651
        %v3797 = vunpack.c.l.b16 %v3652
        %v3798 = vunpack.c.l.b16 %v3653
        %v3799 = vunpack.c.l.b16 %v3654
        %v3800 = vunpack.c.l.b16 %v3655
        %v3801 = vunpack.c.l.b16 %v3656
        %v3802 = vunpack.c.l.b16 %v3657
        %v3803 = vunpack.c.l.b16 %v3658
        %v3804 = vunpack.c.l.b16 %v3659
        %v3805 = vunpack.c.l.b16 %v3660
        %v3806 = vunpack.c.l.b16 %v3661
        %v3807 = vunpack.c.l.b16 %v3662
        %v3808 = vunpack.c.l.b16 %v3663
        %v3809 = vunpack.c.l.b16 %v3664
        %v3810 = vrot.slane %v3747, 7
        %v3811 = vsel %vm2598, %v3810, %v3746
        %v3812 = vrot.slane %v3748, 6
        %v3813 = vsel %vm2601, %v3812, %v3811
        %v3814 = vrot.slane %v3749, 5
        %v3815 = vsel %vm2604, %v3814, %v3813
        %v3816 = vrot.slane %v3750, 4
        %v3817 = vsel %vm2607, %v3816, %v3815
        %v3818 = vrot.slane %v3751, 3
        %v3819 = vsel %vm2610, %v3818, %v3817
        %v3820 = vrot.slane %v3752, 2
        %v3821 = vsel %vm2613, %v3820, %v3819
        %v3822 = vrot.slane %v3753, 1
        %v3823 = vsel %vm2616, %v3822, %v3821
        %v3824 = vrot.slane %v3755, 7
        %v3825 = vsel %vm2598, %v3824, %v3754
        %v3826 = vrot.slane %v3756, 6
        %v3827 = vsel %vm2601, %v3826, %v3825
        %v3828 = vrot.slane %v3757, 5
        %v3829 = vsel %vm2604, %v3828, %v3827
        %v3830 = vrot.slane %v3758, 4
        %v3831 = vsel %vm2607, %v3830, %v3829
        %v3832 = vrot.slane %v3759, 3
        %v3833 = vsel %vm2610, %v3832, %v3831
        %v3834 = vrot.slane %v3760, 2
        %v3835 = vsel %vm2613, %v3834, %v3833
        %v3836 = vrot.slane %v3761, 1
        %v3837 = vsel %vm2616, %v3836, %v3835
        %v3838 = vrot.slane %v3763, 7
        %v3839 = vsel %vm2598, %v3838, %v3762
        %v3840 = vrot.slane %v3764, 6
        %v3841 = vsel %vm2601, %v3840, %v3839
        %v3842 = vrot.slane %v3765, 5
        %v3843 = vsel %vm2604, %v3842, %v3841
        %v3844 = vrot.slane %v3766, 4
        %v3845 = vsel %vm2607, %v3844, %v3843
        %v3846 = vrot.slane %v3767, 3
        %v3847 = vsel %vm2610, %v3846, %v3845
        %v3848 = vrot.slane %v3768, 2
        %v3849 = vsel %vm2613, %v3848, %v3847
        %v3850 = vrot.slane %v3769, 1
        %v3851 = vsel %vm2616, %v3850, %v3849
        %v3852 = vrot.slane %v3771, 7
        %v3853 = vsel %vm2598, %v3852, %v3770
        %v3854 = vrot.slane %v3772, 6
        %v3855 = vsel %vm2601, %v3854, %v3853
        %v3856 = vrot.slane %v3773, 5
        %v3857 = vsel %vm2604, %v3856, %v3855
        %v3858 = vrot.slane %v3774, 4
        %v3859 = vsel %vm2607, %v3858, %v3857
        %v3860 = vrot.slane %v3775, 3
        %v3861 = vsel %vm2610, %v3860, %v3859
        %v3862 = vrot.slane %v3776, 2
        %v3863 = vsel %vm2613, %v3862, %v3861
        %v3864 = vrot.slane %v3777, 1
        %v3865 = vsel %vm2616, %v3864, %v3863
        %v3866 = vrot.slane %v3779, 7
        %v3867 = vsel %vm2598, %v3866, %v3778
        %v3868 = vrot.slane %v3780, 6
        %v3869 = vsel %vm2601, %v3868, %v3867
        %v3870 = vrot.slane %v3781, 5
        %v3871 = vsel %vm2604, %v3870, %v3869
        %v3872 = vrot.slane %v3782, 4
        %v3873 = vsel %vm2607, %v3872, %v3871
        %v3874 = vrot.slane %v3783, 3
        %v3875 = vsel %vm2610, %v3874, %v3873
        %v3876 = vrot.slane %v3784, 2
        %v3877 = vsel %vm2613, %v3876, %v3875
        %v3878 = vrot.slane %v3785, 1
        %v3879 = vsel %vm2616, %v3878, %v3877
        %v3880 = vrot.slane %v3787, 7
        %v3881 = vsel %vm2598, %v3880, %v3786
        %v3882 = vrot.slane %v3788, 6
        %v3883 = vsel %vm2601, %v3882, %v3881
        %v3884 = vrot.slane %v3789, 5
        %v3885 = vsel %vm2604, %v3884, %v3883
        %v3886 = vrot.slane %v3790, 4
        %v3887 = vsel %vm2607, %v3886, %v3885
        %v3888 = vrot.slane %v3791, 3
        %v3889 = vsel %vm2610, %v3888, %v3887
        %v3890 = vrot.slane %v3792, 2
        %v3891 = vsel %vm2613, %v3890, %v3889
        %v3892 = vrot.slane %v3793, 1
        %v3893 = vsel %vm2616, %v3892, %v3891
        %v3894 = vrot.slane %v3795, 7
        %v3895 = vsel %vm2598, %v3894, %v3794
        %v3896 = vrot.slane %v3796, 6
        %v3897 = vsel %vm2601, %v3896, %v3895
        %v3898 = vrot.slane %v3797, 5
        %v3899 = vsel %vm2604, %v3898, %v3897
        %v3900 = vrot.slane %v3798, 4
        %v3901 = vsel %vm2607, %v3900, %v3899
        %v3902 = vrot.slane %v3799, 3
        %v3903 = vsel %vm2610, %v3902, %v3901
        %v3904 = vrot.slane %v3800, 2
        %v3905 = vsel %vm2613, %v3904, %v3903
        %v3906 = vrot.slane %v3801, 1
        %v3907 = vsel %vm2616, %v3906, %v3905
        %v3908 = vrot.slane %v3803, 7
        %v3909 = vsel %vm2598, %v3908, %v3802
        %v3910 = vrot.slane %v3804, 6
        %v3911 = vsel %vm2601, %v3910, %v3909
        %v3912 = vrot.slane %v3805, 5
        %v3913 = vsel %vm2604, %v3912, %v3911
        %v3914 = vrot.slane %v3806, 4
        %v3915 = vsel %vm2607, %v3914, %v3913
        %v3916 = vrot.slane %v3807, 3
        %v3917 = vsel %vm2610, %v3916, %v3915
        %v3918 = vrot.slane %v3808, 2
        %v3919 = vsel %vm2613, %v3918, %v3917
        %v3920 = vrot.slane %v3809, 1
        %v3921 = vsel %vm2616, %v3920, %v3919
        %v3922 = vpack.c.b16 %v3837, %v3823
        %v3923 = vpack.c.b16 %v3865, %v3851
        %v3924 = vpack.c.b16 %v3893, %v3879
        %v3925 = vpack.c.b16 %v3921, %v3907
        %v3942 = vunpack.c.l.b16 %v3666
        %v3943 = vunpack.c.h.b16 %v3666
        %v3944 = vunpack.c.l.b16 %v3667
        %v3945 = vunpack.c.h.b16 %v3667
        %v3946 = vunpack.c.l.b16 %v3668
        %v3947 = vunpack.c.h.b16 %v3668
        %v3948 = vunpack.c.l.b16 %v3669
        %v3949 = vunpack.c.h.b16 %v3669
        %v3950 = vunpack.c.l.b16 %v3670
        %v3951 = vunpack.c.h.b16 %v3670
        %v3952 = vunpack.c.l.b16 %v3671
        %v3953 = vunpack.c.h.b16 %v3671
        %v3954 = vunpack.c.l.b16 %v3672
        %v3955 = vunpack.c.h.b16 %v3672
        %v3956 = vunpack.c.l.b16 %v3673
        %v3957 = vunpack.c.h.b16 %v3673
        %v3958 = vunpack.c.l.b16 %v3674
        %v3959 = vunpack.c.h.b16 %v3674
        %v3960 = vunpack.c.l.b16 %v3675
        %v3961 = vunpack.c.h.b16 %v3675
        %v3962 = vunpack.c.l.b16 %v3676
        %v3963 = vunpack.c.h.b16 %v3676
        %v3964 = vunpack.c.l.b16 %v3677
        %v3965 = vunpack.c.h.b16 %v3677
        %v3966 = vunpack.c.l.b16 %v3678
        %v3967 = vunpack.c.h.b16 %v3678
        %v3968 = vunpack.c.l.b16 %v3679
        %v3969 = vunpack.c.h.b16 %v3679
        %v3970 = vunpack.c.l.b16 %v3680
        %v3971 = vunpack.c.h.b16 %v3680
        %v3972 = vunpack.c.l.b16 %v3681
        %v3973 = vunpack.c.h.b16 %v3681
        %v3974 = vpack.c.b16 %v3946, %v3942
        %v3975 = vpack.c.b16 %v3947, %v3943
        %v3976 = vpack.c.b16 %v3948, %v3944
        %v3977 = vpack.c.b16 %v3949, %v3945
        %v3978 = vpack.c.b16 %v3954, %v3950
        %v3979 = vpack.c.b16 %v3955, %v3951
        %v3980 = vpack.c.b16 %v3956, %v3952
        %v3981 = vpack.c.b16 %v3957, %v3953
        %v3982 = vpack.c.b16 %v3962, %v3958
        %v3983 = vpack.c.b16 %v3963, %v3959
        %v3984 = vpack.c.b16 %v3964, %v3960
        %v3985 = vpack.c.b16 %v3965, %v3961
        %v3986 = vpack.c.b16 %v3970, %v3966
        %v3987 = vpack.c.b16 %v3971, %v3967
        %v3988 = vpack.c.b16 %v3972, %v3968
        %v3989 = vpack.c.b16 %v3973, %v3969
        %v4007 = vsel %vm1994, %v3922, 0
        %v4010 = vsel %vm1994, %v3923, 0
        %v4013 = vsel %vm1994, %v3924, 0
        %v4016 = vsel %vm1994, %v3925, 0
        %4018 = vmatpush.bf16.msra.mxu0 0
        %4019 = vmatpush.bf16.msra.mxu0 0
        %4020 = vmatpush.bf16.msra.mxu0 0
        %4021 = vmatpush.bf16.msra.mxu0 0
        %4022 = vmatpush.bf16.msra.mxu0 %v3986
        %4023 = vmatpush.bf16.msra.mxu0 %v3982
        %4024 = vmatpush.bf16.msra.mxu0 %v3978
        %4025 = vmatpush.bf16.msra.mxu0 %v3974
        %4026 = vmatmul.bf16.gmra.mxu0 %v4007
        %v4027 = vpop.f32.mrf.mxu0
        %v4028 = vadd.f32 0.0, %v4027
        %v4029 = vpop.f32.mrf.mxu0
        %v4030 = vadd.f32 0.0, %v4029
        %4031 = vmatmul.bf16.gmra.mxu0 %v4010
        %v4032 = vpop.f32.mrf.mxu0
        %v4033 = vadd.f32 0.0, %v4032
        %v4034 = vpop.f32.mrf.mxu0
        %v4035 = vadd.f32 0.0, %v4034
        %4036 = vmatmul.bf16.gmra.mxu0 %v4013
        %v4037 = vpop.f32.mrf.mxu0
        %v4038 = vadd.f32 0.0, %v4037
        %v4039 = vpop.f32.mrf.mxu0
        %v4040 = vadd.f32 0.0, %v4039
        %4041 = vmatmul.bf16.gmra.mxu0 %v4016
        %v4042 = vpop.f32.mrf.mxu0
        %v4043 = vadd.f32 0.0, %v4042
        %v4044 = vpop.f32.mrf.mxu0
        %v4045 = vadd.f32 0.0, %v4044
        %4046 = vdwg.mxu0
        %4047 = vmatpush.bf16.msra.mxu0 0
        %4048 = vmatpush.bf16.msra.mxu0 0
        %4049 = vmatpush.bf16.msra.mxu0 0
        %4050 = vmatpush.bf16.msra.mxu0 0
        %4051 = vmatpush.bf16.msra.mxu0 %v3987
        %4052 = vmatpush.bf16.msra.mxu0 %v3983
        %4053 = vmatpush.bf16.msra.mxu0 %v3979
        %4054 = vmatpush.bf16.msra.mxu0 %v3975
        %4055 = vmatmul.bf16.gmra.mxu0 %v4007
        %v4056 = vpop.f32.mrf.mxu0
        %v4057 = vadd.f32 0.0, %v4056
        %v4058 = vpop.f32.mrf.mxu0
        %v4059 = vadd.f32 0.0, %v4058
        %4060 = vmatmul.bf16.gmra.mxu0 %v4010
        %v4061 = vpop.f32.mrf.mxu0
        %v4062 = vadd.f32 0.0, %v4061
        %v4063 = vpop.f32.mrf.mxu0
        %v4064 = vadd.f32 0.0, %v4063
        %4065 = vmatmul.bf16.gmra.mxu0 %v4013
        %v4066 = vpop.f32.mrf.mxu0
        %v4067 = vadd.f32 0.0, %v4066
        %v4068 = vpop.f32.mrf.mxu0
        %v4069 = vadd.f32 0.0, %v4068
        %4070 = vmatmul.bf16.gmra.mxu0 %v4016
        %v4071 = vpop.f32.mrf.mxu0
        %v4072 = vadd.f32 0.0, %v4071
        %v4073 = vpop.f32.mrf.mxu0
        %v4074 = vadd.f32 0.0, %v4073
        %4075 = vdwg.mxu0
        %4076 = vmatpush.bf16.msra.mxu0 0
        %4077 = vmatpush.bf16.msra.mxu0 0
        %4078 = vmatpush.bf16.msra.mxu0 0
        %4079 = vmatpush.bf16.msra.mxu0 0
        %4080 = vmatpush.bf16.msra.mxu0 %v3988
        %4081 = vmatpush.bf16.msra.mxu0 %v3984
        %4082 = vmatpush.bf16.msra.mxu0 %v3980
        %4083 = vmatpush.bf16.msra.mxu0 %v3976
        %4084 = vmatmul.bf16.gmra.mxu0 %v4007
        %v4085 = vpop.f32.mrf.mxu0
        %v4086 = vadd.f32 0.0, %v4085
        %v4087 = vpop.f32.mrf.mxu0
        %v4088 = vadd.f32 0.0, %v4087
        %4089 = vmatmul.bf16.gmra.mxu0 %v4010
        %v4090 = vpop.f32.mrf.mxu0
        %v4091 = vadd.f32 0.0, %v4090
        %v4092 = vpop.f32.mrf.mxu0
        %v4093 = vadd.f32 0.0, %v4092
        %4094 = vmatmul.bf16.gmra.mxu0 %v4013
        %v4095 = vpop.f32.mrf.mxu0
        %v4096 = vadd.f32 0.0, %v4095
        %v4097 = vpop.f32.mrf.mxu0
        %v4098 = vadd.f32 0.0, %v4097
        %4099 = vmatmul.bf16.gmra.mxu0 %v4016
        %v4100 = vpop.f32.mrf.mxu0
        %v4101 = vadd.f32 0.0, %v4100
        %v4102 = vpop.f32.mrf.mxu0
        %v4103 = vadd.f32 0.0, %v4102
        %4104 = vdwg.mxu0
        %4105 = vmatpush.bf16.msra.mxu0 0
        %4106 = vmatpush.bf16.msra.mxu0 0
        %4107 = vmatpush.bf16.msra.mxu0 0
        %4108 = vmatpush.bf16.msra.mxu0 0
        %4109 = vmatpush.bf16.msra.mxu0 %v3989
        %4110 = vmatpush.bf16.msra.mxu0 %v3985
        %4111 = vmatpush.bf16.msra.mxu0 %v3981
        %4112 = vmatpush.bf16.msra.mxu0 %v3977
        %4113 = vmatmul.bf16.gmra.mxu0 %v4007
        %v4114 = vpop.f32.mrf.mxu0
        %v4115 = vadd.f32 0.0, %v4114
        %v4116 = vpop.f32.mrf.mxu0
        %v4117 = vadd.f32 0.0, %v4116
        %4118 = vmatmul.bf16.gmra.mxu0 %v4010
        %v4119 = vpop.f32.mrf.mxu0
        %v4120 = vadd.f32 0.0, %v4119
        %v4121 = vpop.f32.mrf.mxu0
        %v4122 = vadd.f32 0.0, %v4121
        %4123 = vmatmul.bf16.gmra.mxu0 %v4013
        %v4124 = vpop.f32.mrf.mxu0
        %v4125 = vadd.f32 0.0, %v4124
        %v4126 = vpop.f32.mrf.mxu0
        %v4127 = vadd.f32 0.0, %v4126
        %4128 = vmatmul.bf16.gmra.mxu0 %v4016
        %v4129 = vpop.f32.mrf.mxu0
        %v4130 = vadd.f32 0.0, %v4129
        %v4131 = vpop.f32.mrf.mxu0
        %v4132 = vadd.f32 0.0, %v4131
        %4133 = vdwg.mxu0
        %v4134 = vadd.f32 %v3569, %v4028
        %v4135 = vadd.f32 %v3570, %v4057
        %v4136 = vadd.f32 %v3571, %v4086
        %v4137 = vadd.f32 %v3572, %v4115
        %v4138 = vadd.f32 %v3573, %v4030
        %v4139 = vadd.f32 %v3574, %v4059
        %v4140 = vadd.f32 %v3575, %v4088
        %v4141 = vadd.f32 %v3576, %v4117
        %v4142 = vadd.f32 %v3577, %v4033
        %v4143 = vadd.f32 %v3578, %v4062
        %v4144 = vadd.f32 %v3579, %v4091
        %v4145 = vadd.f32 %v3580, %v4120
        %v4146 = vadd.f32 %v3581, %v4035
        %v4147 = vadd.f32 %v3582, %v4064
        %v4148 = vadd.f32 %v3583, %v4093
        %v4149 = vadd.f32 %v3584, %v4122
        %v4150 = vadd.f32 %v3585, %v4038
        %v4151 = vadd.f32 %v3586, %v4067
        %v4152 = vadd.f32 %v3587, %v4096
        %v4153 = vadd.f32 %v3588, %v4125
        %v4154 = vadd.f32 %v3589, %v4040
        %v4155 = vadd.f32 %v3590, %v4069
        %v4156 = vadd.f32 %v3591, %v4098
        %v4157 = vadd.f32 %v3592, %v4127
        %v4158 = vadd.f32 %v3593, %v4043
        %v4159 = vadd.f32 %v3594, %v4072
        %v4160 = vadd.f32 %v3595, %v4101
        %v4161 = vadd.f32 %v3596, %v4130
        %v4162 = vadd.f32 %v3597, %v4045
        %v4163 = vadd.f32 %v3598, %v4074
        %v4164 = vadd.f32 %v3599, %v4103
        %v4165 = vadd.f32 %v3600, %v4132
        %s4166 = scalar_lea.vmem %s3, 512
        %v4167 = vld [vmem:[%s4166] sm:$0xff]
        %v4168 = vld [vmem:[%s4166 + $0x8] sm:$0xff]
        %v4169 = vld [vmem:[%s4166 + $0x10] sm:$0xff]
        %v4170 = vld [vmem:[%s4166 + $0x18] sm:$0xff]
        %v4171 = vld [vmem:[%s4166 + $0x20] sm:$0xff]
        %v4172 = vld [vmem:[%s4166 + $0x28] sm:$0xff]
        %v4173 = vld [vmem:[%s4166 + $0x30] sm:$0xff]
        %v4174 = vld [vmem:[%s4166 + $0x38] sm:$0xff]
        %v4175 = vld [vmem:[%s4166 + $0x40] sm:$0xff]
        %v4176 = vld [vmem:[%s4166 + $0x48] sm:$0xff]
        %v4177 = vld [vmem:[%s4166 + $0x50] sm:$0xff]
        %v4178 = vld [vmem:[%s4166 + $0x58] sm:$0xff]
        %v4179 = vld [vmem:[%s4166 + $0x60] sm:$0xff]
        %v4180 = vld [vmem:[%s4166 + $0x68] sm:$0xff]
        %v4181 = vld [vmem:[%s4166 + $0x70] sm:$0xff]
        %v4182 = vld [vmem:[%s4166 + $0x78] sm:$0xff]
        %v4183 = vrot.slane %v3746, 1
        %v4184 = vsel %vm2598, %v3747, %v4183
        %v4185 = vrot.slane %v3748, 7
        %v4186 = vsel %vm2601, %v4185, %v4184
        %v4187 = vrot.slane %v3749, 6
        %v4188 = vsel %vm2604, %v4187, %v4186
        %v4189 = vrot.slane %v3750, 5
        %v4190 = vsel %vm2607, %v4189, %v4188
        %v4191 = vrot.slane %v3751, 4
        %v4192 = vsel %vm2610, %v4191, %v4190
        %v4193 = vrot.slane %v3752, 3
        %v4194 = vsel %vm2613, %v4193, %v4192
        %v4195 = vrot.slane %v3753, 2
        %v4196 = vsel %vm2616, %v4195, %v4194
        %v4197 = vrot.slane %v3754, 1
        %v4198 = vsel %vm2598, %v3755, %v4197
        %v4199 = vrot.slane %v3756, 7
        %v4200 = vsel %vm2601, %v4199, %v4198
        %v4201 = vrot.slane %v3757, 6
        %v4202 = vsel %vm2604, %v4201, %v4200
        %v4203 = vrot.slane %v3758, 5
        %v4204 = vsel %vm2607, %v4203, %v4202
        %v4205 = vrot.slane %v3759, 4
        %v4206 = vsel %vm2610, %v4205, %v4204
        %v4207 = vrot.slane %v3760, 3
        %v4208 = vsel %vm2613, %v4207, %v4206
        %v4209 = vrot.slane %v3761, 2
        %v4210 = vsel %vm2616, %v4209, %v4208
        %v4211 = vrot.slane %v3762, 1
        %v4212 = vsel %vm2598, %v3763, %v4211
        %v4213 = vrot.slane %v3764, 7
        %v4214 = vsel %vm2601, %v4213, %v4212
        %v4215 = vrot.slane %v3765, 6
        %v4216 = vsel %vm2604, %v4215, %v4214
        %v4217 = vrot.slane %v3766, 5
        %v4218 = vsel %vm2607, %v4217, %v4216
        %v4219 = vrot.slane %v3767, 4
        %v4220 = vsel %vm2610, %v4219, %v4218
        %v4221 = vrot.slane %v3768, 3
        %v4222 = vsel %vm2613, %v4221, %v4220
        %v4223 = vrot.slane %v3769, 2
        %v4224 = vsel %vm2616, %v4223, %v4222
        %v4225 = vrot.slane %v3770, 1
        %v4226 = vsel %vm2598, %v3771, %v4225
        %v4227 = vrot.slane %v3772, 7
        %v4228 = vsel %vm2601, %v4227, %v4226
        %v4229 = vrot.slane %v3773, 6
        %v4230 = vsel %vm2604, %v4229, %v4228
        %v4231 = vrot.slane %v3774, 5
        %v4232 = vsel %vm2607, %v4231, %v4230
        %v4233 = vrot.slane %v3775, 4
        %v4234 = vsel %vm2610, %v4233, %v4232
        %v4235 = vrot.slane %v3776, 3
        %v4236 = vsel %vm2613, %v4235, %v4234
        %v4237 = vrot.slane %v3777, 2
        %v4238 = vsel %vm2616, %v4237, %v4236
        %v4239 = vrot.slane %v3778, 1
        %v4240 = vsel %vm2598, %v3779, %v4239
        %v4241 = vrot.slane %v3780, 7
        %v4242 = vsel %vm2601, %v4241, %v4240
        %v4243 = vrot.slane %v3781, 6
        %v4244 = vsel %vm2604, %v4243, %v4242
        %v4245 = vrot.slane %v3782, 5
        %v4246 = vsel %vm2607, %v4245, %v4244
        %v4247 = vrot.slane %v3783, 4
        %v4248 = vsel %vm2610, %v4247, %v4246
        %v4249 = vrot.slane %v3784, 3
        %v4250 = vsel %vm2613, %v4249, %v4248
        %v4251 = vrot.slane %v3785, 2
        %v4252 = vsel %vm2616, %v4251, %v4250
        %v4253 = vrot.slane %v3786, 1
        %v4254 = vsel %vm2598, %v3787, %v4253
        %v4255 = vrot.slane %v3788, 7
        %v4256 = vsel %vm2601, %v4255, %v4254
        %v4257 = vrot.slane %v3789, 6
        %v4258 = vsel %vm2604, %v4257, %v4256
        %v4259 = vrot.slane %v3790, 5
        %v4260 = vsel %vm2607, %v4259, %v4258
        %v4261 = vrot.slane %v3791, 4
        %v4262 = vsel %vm2610, %v4261, %v4260
        %v4263 = vrot.slane %v3792, 3
        %v4264 = vsel %vm2613, %v4263, %v4262
        %v4265 = vrot.slane %v3793, 2
        %v4266 = vsel %vm2616, %v4265, %v4264
        %v4267 = vrot.slane %v3794, 1
        %v4268 = vsel %vm2598, %v3795, %v4267
        %v4269 = vrot.slane %v3796, 7
        %v4270 = vsel %vm2601, %v4269, %v4268
        %v4271 = vrot.slane %v3797, 6
        %v4272 = vsel %vm2604, %v4271, %v4270
        %v4273 = vrot.slane %v3798, 5
        %v4274 = vsel %vm2607, %v4273, %v4272
        %v4275 = vrot.slane %v3799, 4
        %v4276 = vsel %vm2610, %v4275, %v4274
        %v4277 = vrot.slane %v3800, 3
        %v4278 = vsel %vm2613, %v4277, %v4276
        %v4279 = vrot.slane %v3801, 2
        %v4280 = vsel %vm2616, %v4279, %v4278
        %v4281 = vrot.slane %v3802, 1
        %v4282 = vsel %vm2598, %v3803, %v4281
        %v4283 = vrot.slane %v3804, 7
        %v4284 = vsel %vm2601, %v4283, %v4282
        %v4285 = vrot.slane %v3805, 6
        %v4286 = vsel %vm2604, %v4285, %v4284
        %v4287 = vrot.slane %v3806, 5
        %v4288 = vsel %vm2607, %v4287, %v4286
        %v4289 = vrot.slane %v3807, 4
        %v4290 = vsel %vm2610, %v4289, %v4288
        %v4291 = vrot.slane %v3808, 3
        %v4292 = vsel %vm2613, %v4291, %v4290
        %v4293 = vrot.slane %v3809, 2
        %v4294 = vsel %vm2616, %v4293, %v4292
        %v4295 = vpack.c.b16 %v4210, %v4196
        %v4296 = vpack.c.b16 %v4238, %v4224
        %v4297 = vpack.c.b16 %v4266, %v4252
        %v4298 = vpack.c.b16 %v4294, %v4280
        %v4315 = vunpack.c.l.b16 %v4167
        %v4316 = vunpack.c.h.b16 %v4167
        %v4317 = vunpack.c.l.b16 %v4168
        %v4318 = vunpack.c.h.b16 %v4168
        %v4319 = vunpack.c.l.b16 %v4169
        %v4320 = vunpack.c.h.b16 %v4169
        %v4321 = vunpack.c.l.b16 %v4170
        %v4322 = vunpack.c.h.b16 %v4170
        %v4323 = vunpack.c.l.b16 %v4171
        %v4324 = vunpack.c.h.b16 %v4171
        %v4325 = vunpack.c.l.b16 %v4172
        %v4326 = vunpack.c.h.b16 %v4172
        %v4327 = vunpack.c.l.b16 %v4173
        %v4328 = vunpack.c.h.b16 %v4173
        %v4329 = vunpack.c.l.b16 %v4174
        %v4330 = vunpack.c.h.b16 %v4174
        %v4331 = vunpack.c.l.b16 %v4175
        %v4332 = vunpack.c.h.b16 %v4175
        %v4333 = vunpack.c.l.b16 %v4176
        %v4334 = vunpack.c.h.b16 %v4176
        %v4335 = vunpack.c.l.b16 %v4177
        %v4336 = vunpack.c.h.b16 %v4177
        %v4337 = vunpack.c.l.b16 %v4178
        %v4338 = vunpack.c.h.b16 %v4178
        %v4339 = vunpack.c.l.b16 %v4179
        %v4340 = vunpack.c.h.b16 %v4179
        %v4341 = vunpack.c.l.b16 %v4180
        %v4342 = vunpack.c.h.b16 %v4180
        %v4343 = vunpack.c.l.b16 %v4181
        %v4344 = vunpack.c.h.b16 %v4181
        %v4345 = vunpack.c.l.b16 %v4182
        %v4346 = vunpack.c.h.b16 %v4182
        %v4347 = vpack.c.b16 %v4319, %v4315
        %v4348 = vpack.c.b16 %v4320, %v4316
        %v4349 = vpack.c.b16 %v4321, %v4317
        %v4350 = vpack.c.b16 %v4322, %v4318
        %v4351 = vpack.c.b16 %v4327, %v4323
        %v4352 = vpack.c.b16 %v4328, %v4324
        %v4353 = vpack.c.b16 %v4329, %v4325
        %v4354 = vpack.c.b16 %v4330, %v4326
        %v4355 = vpack.c.b16 %v4335, %v4331
        %v4356 = vpack.c.b16 %v4336, %v4332
        %v4357 = vpack.c.b16 %v4337, %v4333
        %v4358 = vpack.c.b16 %v4338, %v4334
        %v4359 = vpack.c.b16 %v4343, %v4339
        %v4360 = vpack.c.b16 %v4344, %v4340
        %v4361 = vpack.c.b16 %v4345, %v4341
        %v4362 = vpack.c.b16 %v4346, %v4342
        %v4380 = vsel %vm1994, %v4295, 0
        %v4383 = vsel %vm1994, %v4296, 0
        %v4386 = vsel %vm1994, %v4297, 0
        %v4389 = vsel %vm1994, %v4298, 0
        %4391 = vmatpush.bf16.msra.mxu0 0
        %4392 = vmatpush.bf16.msra.mxu0 0
        %4393 = vmatpush.bf16.msra.mxu0 0
        %4394 = vmatpush.bf16.msra.mxu0 0
        %4395 = vmatpush.bf16.msra.mxu0 %v4359
        %4396 = vmatpush.bf16.msra.mxu0 %v4355
        %4397 = vmatpush.bf16.msra.mxu0 %v4351
        %4398 = vmatpush.bf16.msra.mxu0 %v4347
        %4399 = vmatmul.bf16.gmra.mxu0 %v4380
        %v4400 = vpop.f32.mrf.mxu0
        %v4401 = vadd.f32 0.0, %v4400
        %v4402 = vpop.f32.mrf.mxu0
        %v4403 = vadd.f32 0.0, %v4402
        %4404 = vmatmul.bf16.gmra.mxu0 %v4383
        %v4405 = vpop.f32.mrf.mxu0
        %v4406 = vadd.f32 0.0, %v4405
        %v4407 = vpop.f32.mrf.mxu0
        %v4408 = vadd.f32 0.0, %v4407
        %4409 = vmatmul.bf16.gmra.mxu0 %v4386
        %v4410 = vpop.f32.mrf.mxu0
        %v4411 = vadd.f32 0.0, %v4410
        %v4412 = vpop.f32.mrf.mxu0
        %v4413 = vadd.f32 0.0, %v4412
        %4414 = vmatmul.bf16.gmra.mxu0 %v4389
        %v4415 = vpop.f32.mrf.mxu0
        %v4416 = vadd.f32 0.0, %v4415
        %v4417 = vpop.f32.mrf.mxu0
        %v4418 = vadd.f32 0.0, %v4417
        %4419 = vdwg.mxu0
        %4420 = vmatpush.bf16.msra.mxu0 0
        %4421 = vmatpush.bf16.msra.mxu0 0
        %4422 = vmatpush.bf16.msra.mxu0 0
        %4423 = vmatpush.bf16.msra.mxu0 0
        %4424 = vmatpush.bf16.msra.mxu0 %v4360
        %4425 = vmatpush.bf16.msra.mxu0 %v4356
        %4426 = vmatpush.bf16.msra.mxu0 %v4352
        %4427 = vmatpush.bf16.msra.mxu0 %v4348
        %4428 = vmatmul.bf16.gmra.mxu0 %v4380
        %v4429 = vpop.f32.mrf.mxu0
        %v4430 = vadd.f32 0.0, %v4429
        %v4431 = vpop.f32.mrf.mxu0
        %v4432 = vadd.f32 0.0, %v4431
        %4433 = vmatmul.bf16.gmra.mxu0 %v4383
        %v4434 = vpop.f32.mrf.mxu0
        %v4435 = vadd.f32 0.0, %v4434
        %v4436 = vpop.f32.mrf.mxu0
        %v4437 = vadd.f32 0.0, %v4436
        %4438 = vmatmul.bf16.gmra.mxu0 %v4386
        %v4439 = vpop.f32.mrf.mxu0
        %v4440 = vadd.f32 0.0, %v4439
        %v4441 = vpop.f32.mrf.mxu0
        %v4442 = vadd.f32 0.0, %v4441
        %4443 = vmatmul.bf16.gmra.mxu0 %v4389
        %v4444 = vpop.f32.mrf.mxu0
        %v4445 = vadd.f32 0.0, %v4444
        %v4446 = vpop.f32.mrf.mxu0
        %v4447 = vadd.f32 0.0, %v4446
        %4448 = vdwg.mxu0
        %4449 = vmatpush.bf16.msra.mxu0 0
        %4450 = vmatpush.bf16.msra.mxu0 0
        %4451 = vmatpush.bf16.msra.mxu0 0
        %4452 = vmatpush.bf16.msra.mxu0 0
        %4453 = vmatpush.bf16.msra.mxu0 %v4361
        %4454 = vmatpush.bf16.msra.mxu0 %v4357
        %4455 = vmatpush.bf16.msra.mxu0 %v4353
        %4456 = vmatpush.bf16.msra.mxu0 %v4349
        %4457 = vmatmul.bf16.gmra.mxu0 %v4380
        %v4458 = vpop.f32.mrf.mxu0
        %v4459 = vadd.f32 0.0, %v4458
        %v4460 = vpop.f32.mrf.mxu0
        %v4461 = vadd.f32 0.0, %v4460
        %4462 = vmatmul.bf16.gmra.mxu0 %v4383
        %v4463 = vpop.f32.mrf.mxu0
        %v4464 = vadd.f32 0.0, %v4463
        %v4465 = vpop.f32.mrf.mxu0
        %v4466 = vadd.f32 0.0, %v4465
        %4467 = vmatmul.bf16.gmra.mxu0 %v4386
        %v4468 = vpop.f32.mrf.mxu0
        %v4469 = vadd.f32 0.0, %v4468
        %v4470 = vpop.f32.mrf.mxu0
        %v4471 = vadd.f32 0.0, %v4470
        %4472 = vmatmul.bf16.gmra.mxu0 %v4389
        %v4473 = vpop.f32.mrf.mxu0
        %v4474 = vadd.f32 0.0, %v4473
        %v4475 = vpop.f32.mrf.mxu0
        %v4476 = vadd.f32 0.0, %v4475
        %4477 = vdwg.mxu0
        %4478 = vmatpush.bf16.msra.mxu0 0
        %4479 = vmatpush.bf16.msra.mxu0 0
        %4480 = vmatpush.bf16.msra.mxu0 0
        %4481 = vmatpush.bf16.msra.mxu0 0
        %4482 = vmatpush.bf16.msra.mxu0 %v4362
        %4483 = vmatpush.bf16.msra.mxu0 %v4358
        %4484 = vmatpush.bf16.msra.mxu0 %v4354
        %4485 = vmatpush.bf16.msra.mxu0 %v4350
        %4486 = vmatmul.bf16.gmra.mxu0 %v4380
        %v4487 = vpop.f32.mrf.mxu0
        %v4488 = vadd.f32 0.0, %v4487
        %v4489 = vpop.f32.mrf.mxu0
        %v4490 = vadd.f32 0.0, %v4489
        %4491 = vmatmul.bf16.gmra.mxu0 %v4383
        %v4492 = vpop.f32.mrf.mxu0
        %v4493 = vadd.f32 0.0, %v4492
        %v4494 = vpop.f32.mrf.mxu0
        %v4495 = vadd.f32 0.0, %v4494
        %4496 = vmatmul.bf16.gmra.mxu0 %v4386
        %v4497 = vpop.f32.mrf.mxu0
        %v4498 = vadd.f32 0.0, %v4497
        %v4499 = vpop.f32.mrf.mxu0
        %v4500 = vadd.f32 0.0, %v4499
        %4501 = vmatmul.bf16.gmra.mxu0 %v4389
        %v4502 = vpop.f32.mrf.mxu0
        %v4503 = vadd.f32 0.0, %v4502
        %v4504 = vpop.f32.mrf.mxu0
        %v4505 = vadd.f32 0.0, %v4504
        %4506 = vdwg.mxu0
        %v4507 = vadd.f32 %v4134, %v4401
        %v4508 = vadd.f32 %v4135, %v4430
        %v4509 = vadd.f32 %v4136, %v4459
        %v4510 = vadd.f32 %v4137, %v4488
        %v4511 = vadd.f32 %v4138, %v4403
        %v4512 = vadd.f32 %v4139, %v4432
        %v4513 = vadd.f32 %v4140, %v4461
        %v4514 = vadd.f32 %v4141, %v4490
        %v4515 = vadd.f32 %v4142, %v4406
        %v4516 = vadd.f32 %v4143, %v4435
        %v4517 = vadd.f32 %v4144, %v4464
        %v4518 = vadd.f32 %v4145, %v4493
        %v4519 = vadd.f32 %v4146, %v4408
        %v4520 = vadd.f32 %v4147, %v4437
        %v4521 = vadd.f32 %v4148, %v4466
        %v4522 = vadd.f32 %v4149, %v4495
        %v4523 = vadd.f32 %v4150, %v4411
        %v4524 = vadd.f32 %v4151, %v4440
        %v4525 = vadd.f32 %v4152, %v4469
        %v4526 = vadd.f32 %v4153, %v4498
        %v4527 = vadd.f32 %v4154, %v4413
        %v4528 = vadd.f32 %v4155, %v4442
        %v4529 = vadd.f32 %v4156, %v4471
        %v4530 = vadd.f32 %v4157, %v4500
        %v4531 = vadd.f32 %v4158, %v4416
        %v4532 = vadd.f32 %v4159, %v4445
        %v4533 = vadd.f32 %v4160, %v4474
        %v4534 = vadd.f32 %v4161, %v4503
        %v4535 = vadd.f32 %v4162, %v4418
        %v4536 = vadd.f32 %v4163, %v4447
        %v4537 = vadd.f32 %v4164, %v4476
        %v4538 = vadd.f32 %v4165, %v4505
        %v4539 = vpack.c.bf16 %v2088, %v2088
        %v4540 = vpack.c.bf16 %v2094, %v2094
        %v4541 = vpack.c.bf16 %v2100, %v2100
        %v4542 = vpack.c.bf16 %v2106, %v2106
        %v4543 = vpack.c.bf16 %v2112, %v2112
        %v4544 = vpack.c.bf16 %v2118, %v2118
        %v4545 = vpack.c.bf16 %v2124, %v2124
        %v4546 = vpack.c.bf16 %v2130, %v2130
        %s4547 = scalar_lea.vmem %s3, 640
        %v4548 = vld [vmem:[%s4547] sm:$0xff]
        %v4549 = vld [vmem:[%s4547 + $0x8] sm:$0xff]
        %v4550 = vld [vmem:[%s4547 + $0x10] sm:$0xff]
        %v4551 = vld [vmem:[%s4547 + $0x18] sm:$0xff]
        %v4552 = vld [vmem:[%s4547 + $0x20] sm:$0xff]
        %v4553 = vld [vmem:[%s4547 + $0x28] sm:$0xff]
        %v4554 = vld [vmem:[%s4547 + $0x30] sm:$0xff]
        %v4555 = vld [vmem:[%s4547 + $0x38] sm:$0xff]
        %v4556 = vld [vmem:[%s4547 + $0x40] sm:$0xff]
        %v4557 = vld [vmem:[%s4547 + $0x48] sm:$0xff]
        %v4558 = vld [vmem:[%s4547 + $0x50] sm:$0xff]
        %v4559 = vld [vmem:[%s4547 + $0x58] sm:$0xff]
        %v4560 = vld [vmem:[%s4547 + $0x60] sm:$0xff]
        %v4561 = vld [vmem:[%s4547 + $0x68] sm:$0xff]
        %v4562 = vld [vmem:[%s4547 + $0x70] sm:$0xff]
        %v4563 = vld [vmem:[%s4547 + $0x78] sm:$0xff]
        %v4572 = vunpack.c.l.b16 %v4539
        %v4573 = vunpack.c.l.b16 %v4540
        %v4574 = vunpack.c.l.b16 %v4541
        %v4575 = vunpack.c.l.b16 %v4542
        %v4576 = vunpack.c.l.b16 %v4543
        %v4577 = vunpack.c.l.b16 %v4544
        %v4578 = vunpack.c.l.b16 %v4545
        %v4579 = vunpack.c.l.b16 %v4546
        %v4580 = vsel %vm2598, %v4185, %v3747
        %v4581 = vsel %vm2601, %v4187, %v4580
        %v4582 = vsel %vm2604, %v4189, %v4581
        %v4583 = vsel %vm2607, %v4191, %v4582
        %v4584 = vsel %vm2610, %v4193, %v4583
        %v4585 = vsel %vm2613, %v4195, %v4584
        %v4586 = vrot.slane %v4572, 1
        %v4587 = vsel %vm2616, %v4586, %v4585
        %v4588 = vsel %vm2598, %v4199, %v3755
        %v4589 = vsel %vm2601, %v4201, %v4588
        %v4590 = vsel %vm2604, %v4203, %v4589
        %v4591 = vsel %vm2607, %v4205, %v4590
        %v4592 = vsel %vm2610, %v4207, %v4591
        %v4593 = vsel %vm2613, %v4209, %v4592
        %v4594 = vrot.slane %v4573, 1
        %v4595 = vsel %vm2616, %v4594, %v4593
        %v4596 = vsel %vm2598, %v4213, %v3763
        %v4597 = vsel %vm2601, %v4215, %v4596
        %v4598 = vsel %vm2604, %v4217, %v4597
        %v4599 = vsel %vm2607, %v4219, %v4598
        %v4600 = vsel %vm2610, %v4221, %v4599
        %v4601 = vsel %vm2613, %v4223, %v4600
        %v4602 = vrot.slane %v4574, 1
        %v4603 = vsel %vm2616, %v4602, %v4601
        %v4604 = vsel %vm2598, %v4227, %v3771
        %v4605 = vsel %vm2601, %v4229, %v4604
        %v4606 = vsel %vm2604, %v4231, %v4605
        %v4607 = vsel %vm2607, %v4233, %v4606
        %v4608 = vsel %vm2610, %v4235, %v4607
        %v4609 = vsel %vm2613, %v4237, %v4608
        %v4610 = vrot.slane %v4575, 1
        %v4611 = vsel %vm2616, %v4610, %v4609
        %v4612 = vsel %vm2598, %v4241, %v3779
        %v4613 = vsel %vm2601, %v4243, %v4612
        %v4614 = vsel %vm2604, %v4245, %v4613
        %v4615 = vsel %vm2607, %v4247, %v4614
        %v4616 = vsel %vm2610, %v4249, %v4615
        %v4617 = vsel %vm2613, %v4251, %v4616
        %v4618 = vrot.slane %v4576, 1
        %v4619 = vsel %vm2616, %v4618, %v4617
        %v4620 = vsel %vm2598, %v4255, %v3787
        %v4621 = vsel %vm2601, %v4257, %v4620
        %v4622 = vsel %vm2604, %v4259, %v4621
        %v4623 = vsel %vm2607, %v4261, %v4622
        %v4624 = vsel %vm2610, %v4263, %v4623
        %v4625 = vsel %vm2613, %v4265, %v4624
        %v4626 = vrot.slane %v4577, 1
        %v4627 = vsel %vm2616, %v4626, %v4625
        %v4628 = vsel %vm2598, %v4269, %v3795
        %v4629 = vsel %vm2601, %v4271, %v4628
        %v4630 = vsel %vm2604, %v4273, %v4629
        %v4631 = vsel %vm2607, %v4275, %v4630
        %v4632 = vsel %vm2610, %v4277, %v4631
        %v4633 = vsel %vm2613, %v4279, %v4632
        %v4634 = vrot.slane %v4578, 1
        %v4635 = vsel %vm2616, %v4634, %v4633
        %v4636 = vsel %vm2598, %v4283, %v3803
        %v4637 = vsel %vm2601, %v4285, %v4636
        %v4638 = vsel %vm2604, %v4287, %v4637
        %v4639 = vsel %vm2607, %v4289, %v4638
        %v4640 = vsel %vm2610, %v4291, %v4639
        %v4641 = vsel %vm2613, %v4293, %v4640
        %v4642 = vrot.slane %v4579, 1
        %v4643 = vsel %vm2616, %v4642, %v4641
        %v4644 = vpack.c.b16 %v4595, %v4587
        %v4645 = vpack.c.b16 %v4611, %v4603
        %v4646 = vpack.c.b16 %v4627, %v4619
        %v4647 = vpack.c.b16 %v4643, %v4635
        %v4664 = vunpack.c.l.b16 %v4548
        %v4665 = vunpack.c.h.b16 %v4548
        %v4666 = vunpack.c.l.b16 %v4549
        %v4667 = vunpack.c.h.b16 %v4549
        %v4668 = vunpack.c.l.b16 %v4550
        %v4669 = vunpack.c.h.b16 %v4550
        %v4670 = vunpack.c.l.b16 %v4551
        %v4671 = vunpack.c.h.b16 %v4551
        %v4672 = vunpack.c.l.b16 %v4552
        %v4673 = vunpack.c.h.b16 %v4552
        %v4674 = vunpack.c.l.b16 %v4553
        %v4675 = vunpack.c.h.b16 %v4553
        %v4676 = vunpack.c.l.b16 %v4554
        %v4677 = vunpack.c.h.b16 %v4554
        %v4678 = vunpack.c.l.b16 %v4555
        %v4679 = vunpack.c.h.b16 %v4555
        %v4680 = vunpack.c.l.b16 %v4556
        %v4681 = vunpack.c.h.b16 %v4556
        %v4682 = vunpack.c.l.b16 %v4557
        %v4683 = vunpack.c.h.b16 %v4557
        %v4684 = vunpack.c.l.b16 %v4558
        %v4685 = vunpack.c.h.b16 %v4558
        %v4686 = vunpack.c.l.b16 %v4559
        %v4687 = vunpack.c.h.b16 %v4559
        %v4688 = vunpack.c.l.b16 %v4560
        %v4689 = vunpack.c.h.b16 %v4560
        %v4690 = vunpack.c.l.b16 %v4561
        %v4691 = vunpack.c.h.b16 %v4561
        %v4692 = vunpack.c.l.b16 %v4562
        %v4693 = vunpack.c.h.b16 %v4562
        %v4694 = vunpack.c.l.b16 %v4563
        %v4695 = vunpack.c.h.b16 %v4563
        %v4696 = vpack.c.b16 %v4668, %v4664
        %v4697 = vpack.c.b16 %v4669, %v4665
        %v4698 = vpack.c.b16 %v4670, %v4666
        %v4699 = vpack.c.b16 %v4671, %v4667
        %v4700 = vpack.c.b16 %v4676, %v4672
        %v4701 = vpack.c.b16 %v4677, %v4673
        %v4702 = vpack.c.b16 %v4678, %v4674
        %v4703 = vpack.c.b16 %v4679, %v4675
        %v4704 = vpack.c.b16 %v4684, %v4680
        %v4705 = vpack.c.b16 %v4685, %v4681
        %v4706 = vpack.c.b16 %v4686, %v4682
        %v4707 = vpack.c.b16 %v4687, %v4683
        %v4708 = vpack.c.b16 %v4692, %v4688
        %v4709 = vpack.c.b16 %v4693, %v4689
        %v4710 = vpack.c.b16 %v4694, %v4690
        %v4711 = vpack.c.b16 %v4695, %v4691
        %v4729 = vsel %vm1994, %v4644, 0
        %v4732 = vsel %vm1994, %v4645, 0
        %v4735 = vsel %vm1994, %v4646, 0
        %v4738 = vsel %vm1994, %v4647, 0
        %4740 = vmatpush.bf16.msra.mxu0 0
        %4741 = vmatpush.bf16.msra.mxu0 0
        %4742 = vmatpush.bf16.msra.mxu0 0
        %4743 = vmatpush.bf16.msra.mxu0 0
        %4744 = vmatpush.bf16.msra.mxu0 %v4708
        %4745 = vmatpush.bf16.msra.mxu0 %v4704
        %4746 = vmatpush.bf16.msra.mxu0 %v4700
        %4747 = vmatpush.bf16.msra.mxu0 %v4696
        %4748 = vmatmul.bf16.gmra.mxu0 %v4729
        %v4749 = vpop.f32.mrf.mxu0
        %v4750 = vadd.f32 0.0, %v4749
        %v4751 = vpop.f32.mrf.mxu0
        %v4752 = vadd.f32 0.0, %v4751
        %4753 = vmatmul.bf16.gmra.mxu0 %v4732
        %v4754 = vpop.f32.mrf.mxu0
        %v4755 = vadd.f32 0.0, %v4754
        %v4756 = vpop.f32.mrf.mxu0
        %v4757 = vadd.f32 0.0, %v4756
        %4758 = vmatmul.bf16.gmra.mxu0 %v4735
        %v4759 = vpop.f32.mrf.mxu0
        %v4760 = vadd.f32 0.0, %v4759
        %v4761 = vpop.f32.mrf.mxu0
        %v4762 = vadd.f32 0.0, %v4761
        %4763 = vmatmul.bf16.gmra.mxu0 %v4738
        %v4764 = vpop.f32.mrf.mxu0
        %v4765 = vadd.f32 0.0, %v4764
        %v4766 = vpop.f32.mrf.mxu0
        %v4767 = vadd.f32 0.0, %v4766
        %4768 = vdwg.mxu0
        %4769 = vmatpush.bf16.msra.mxu0 0
        %4770 = vmatpush.bf16.msra.mxu0 0
        %4771 = vmatpush.bf16.msra.mxu0 0
        %4772 = vmatpush.bf16.msra.mxu0 0
        %4773 = vmatpush.bf16.msra.mxu0 %v4709
        %4774 = vmatpush.bf16.msra.mxu0 %v4705
        %4775 = vmatpush.bf16.msra.mxu0 %v4701
        %4776 = vmatpush.bf16.msra.mxu0 %v4697
        %4777 = vmatmul.bf16.gmra.mxu0 %v4729
        %v4778 = vpop.f32.mrf.mxu0
        %v4779 = vadd.f32 0.0, %v4778
        %v4780 = vpop.f32.mrf.mxu0
        %v4781 = vadd.f32 0.0, %v4780
        %4782 = vmatmul.bf16.gmra.mxu0 %v4732
        %v4783 = vpop.f32.mrf.mxu0
        %v4784 = vadd.f32 0.0, %v4783
        %v4785 = vpop.f32.mrf.mxu0
        %v4786 = vadd.f32 0.0, %v4785
        %4787 = vmatmul.bf16.gmra.mxu0 %v4735
        %v4788 = vpop.f32.mrf.mxu0
        %v4789 = vadd.f32 0.0, %v4788
        %v4790 = vpop.f32.mrf.mxu0
        %v4791 = vadd.f32 0.0, %v4790
        %4792 = vmatmul.bf16.gmra.mxu0 %v4738
        %v4793 = vpop.f32.mrf.mxu0
        %v4794 = vadd.f32 0.0, %v4793
        %v4795 = vpop.f32.mrf.mxu0
        %v4796 = vadd.f32 0.0, %v4795
        %4797 = vdwg.mxu0
        %4798 = vmatpush.bf16.msra.mxu0 0
        %4799 = vmatpush.bf16.msra.mxu0 0
        %4800 = vmatpush.bf16.msra.mxu0 0
        %4801 = vmatpush.bf16.msra.mxu0 0
        %4802 = vmatpush.bf16.msra.mxu0 %v4710
        %4803 = vmatpush.bf16.msra.mxu0 %v4706
        %4804 = vmatpush.bf16.msra.mxu0 %v4702
        %4805 = vmatpush.bf16.msra.mxu0 %v4698
        %4806 = vmatmul.bf16.gmra.mxu0 %v4729
        %v4807 = vpop.f32.mrf.mxu0
        %v4808 = vadd.f32 0.0, %v4807
        %v4809 = vpop.f32.mrf.mxu0
        %v4810 = vadd.f32 0.0, %v4809
        %4811 = vmatmul.bf16.gmra.mxu0 %v4732
        %v4812 = vpop.f32.mrf.mxu0
        %v4813 = vadd.f32 0.0, %v4812
        %v4814 = vpop.f32.mrf.mxu0
        %v4815 = vadd.f32 0.0, %v4814
        %4816 = vmatmul.bf16.gmra.mxu0 %v4735
        %v4817 = vpop.f32.mrf.mxu0
        %v4818 = vadd.f32 0.0, %v4817
        %v4819 = vpop.f32.mrf.mxu0
        %v4820 = vadd.f32 0.0, %v4819
        %4821 = vmatmul.bf16.gmra.mxu0 %v4738
        %v4822 = vpop.f32.mrf.mxu0
        %v4823 = vadd.f32 0.0, %v4822
        %v4824 = vpop.f32.mrf.mxu0
        %v4825 = vadd.f32 0.0, %v4824
        %4826 = vdwg.mxu0
        %4827 = vmatpush.bf16.msra.mxu0 0
        %4828 = vmatpush.bf16.msra.mxu0 0
        %4829 = vmatpush.bf16.msra.mxu0 0
        %4830 = vmatpush.bf16.msra.mxu0 0
        %4831 = vmatpush.bf16.msra.mxu0 %v4711
        %4832 = vmatpush.bf16.msra.mxu0 %v4707
        %4833 = vmatpush.bf16.msra.mxu0 %v4703
        %4834 = vmatpush.bf16.msra.mxu0 %v4699
        %4835 = vmatmul.bf16.gmra.mxu0 %v4729
        %v4836 = vpop.f32.mrf.mxu0
        %v4837 = vadd.f32 0.0, %v4836
        %v4838 = vpop.f32.mrf.mxu0
        %v4839 = vadd.f32 0.0, %v4838
        %4840 = vmatmul.bf16.gmra.mxu0 %v4732
        %v4841 = vpop.f32.mrf.mxu0
        %v4842 = vadd.f32 0.0, %v4841
        %v4843 = vpop.f32.mrf.mxu0
        %v4844 = vadd.f32 0.0, %v4843
        %4845 = vmatmul.bf16.gmra.mxu0 %v4735
        %v4846 = vpop.f32.mrf.mxu0
        %v4847 = vadd.f32 0.0, %v4846
        %v4848 = vpop.f32.mrf.mxu0
        %v4849 = vadd.f32 0.0, %v4848
        %4850 = vmatmul.bf16.gmra.mxu0 %v4738
        %v4851 = vpop.f32.mrf.mxu0
        %v4852 = vadd.f32 0.0, %v4851
        %v4853 = vpop.f32.mrf.mxu0
        %v4854 = vadd.f32 0.0, %v4853
        %4855 = vdwg.mxu0
        %v4856 = vadd.f32 %v4507, %v4750
        %v4857 = vadd.f32 %v4508, %v4779
        %v4858 = vadd.f32 %v4509, %v4808
        %v4859 = vadd.f32 %v4510, %v4837
        %v4860 = vadd.f32 %v4511, %v4752
        %v4861 = vadd.f32 %v4512, %v4781
        %v4862 = vadd.f32 %v4513, %v4810
        %v4863 = vadd.f32 %v4514, %v4839
        %v4864 = vadd.f32 %v4515, %v4755
        %v4865 = vadd.f32 %v4516, %v4784
        %v4866 = vadd.f32 %v4517, %v4813
        %v4867 = vadd.f32 %v4518, %v4842
        %v4868 = vadd.f32 %v4519, %v4757
        %v4869 = vadd.f32 %v4520, %v4786
        %v4870 = vadd.f32 %v4521, %v4815
        %v4871 = vadd.f32 %v4522, %v4844
        %v4872 = vadd.f32 %v4523, %v4760
        %v4873 = vadd.f32 %v4524, %v4789
        %v4874 = vadd.f32 %v4525, %v4818
        %v4875 = vadd.f32 %v4526, %v4847
        %v4876 = vadd.f32 %v4527, %v4762
        %v4877 = vadd.f32 %v4528, %v4791
        %v4878 = vadd.f32 %v4529, %v4820
        %v4879 = vadd.f32 %v4530, %v4849
        %v4880 = vadd.f32 %v4531, %v4765
        %v4881 = vadd.f32 %v4532, %v4794
        %v4882 = vadd.f32 %v4533, %v4823
        %v4883 = vadd.f32 %v4534, %v4852
        %v4884 = vadd.f32 %v4535, %v4767
        %v4885 = vadd.f32 %v4536, %v4796
        %v4886 = vadd.f32 %v4537, %v4825
        %v4887 = vadd.f32 %v4538, %v4854
        %v4888 = vpack.c.bf16 %v2131, %v2131
        %v4889 = vpack.c.bf16 %v2200, %v2200
        %v4890 = vpack.c.bf16 %v2201, %v2201
        %v4891 = vpack.c.bf16 %v2202, %v2202
        %v4892 = vpack.c.bf16 %v2132, %v2132
        %v4893 = vpack.c.bf16 %v2203, %v2203
        %v4894 = vpack.c.bf16 %v2204, %v2204
        %v4895 = vpack.c.bf16 %v2205, %v2205
        %s4896 = scalar_lea.vmem %s3, 768
        %v4897 = vld [vmem:[%s4896] sm:$0xff]
        %v4898 = vld [vmem:[%s4896 + $0x8] sm:$0xff]
        %v4899 = vld [vmem:[%s4896 + $0x10] sm:$0xff]
        %v4900 = vld [vmem:[%s4896 + $0x18] sm:$0xff]
        %v4901 = vld [vmem:[%s4896 + $0x20] sm:$0xff]
        %v4902 = vld [vmem:[%s4896 + $0x28] sm:$0xff]
        %v4903 = vld [vmem:[%s4896 + $0x30] sm:$0xff]
        %v4904 = vld [vmem:[%s4896 + $0x38] sm:$0xff]
        %v4905 = vld [vmem:[%s4896 + $0x40] sm:$0xff]
        %v4906 = vld [vmem:[%s4896 + $0x48] sm:$0xff]
        %v4907 = vld [vmem:[%s4896 + $0x50] sm:$0xff]
        %v4908 = vld [vmem:[%s4896 + $0x58] sm:$0xff]
        %v4909 = vld [vmem:[%s4896 + $0x60] sm:$0xff]
        %v4910 = vld [vmem:[%s4896 + $0x68] sm:$0xff]
        %v4911 = vld [vmem:[%s4896 + $0x70] sm:$0xff]
        %v4912 = vld [vmem:[%s4896 + $0x78] sm:$0xff]
        %v4921 = vunpack.c.l.b16 %v4888
        %v4922 = vunpack.c.l.b16 %v4889
        %v4923 = vunpack.c.l.b16 %v4890
        %v4924 = vunpack.c.l.b16 %v4891
        %v4925 = vunpack.c.l.b16 %v4892
        %v4926 = vunpack.c.l.b16 %v4893
        %v4927 = vunpack.c.l.b16 %v4894
        %v4928 = vunpack.c.l.b16 %v4895
        %v4929 = vrot.slane %v4922, 7
        %v4930 = vsel %vm2598, %v4929, %v4921
        %v4931 = vrot.slane %v4923, 6
        %v4932 = vsel %vm2601, %v4931, %v4930
        %v4933 = vrot.slane %v4924, 5
        %v4934 = vsel %vm2604, %v4933, %v4932
        %v4935 = vrot.slane %v4925, 4
        %v4936 = vsel %vm2607, %v4935, %v4934
        %v4937 = vrot.slane %v4926, 3
        %v4938 = vsel %vm2610, %v4937, %v4936
        %v4939 = vrot.slane %v4927, 2
        %v4940 = vsel %vm2613, %v4939, %v4938
        %v4941 = vrot.slane %v4928, 1
        %v4942 = vsel %vm2616, %v4941, %v4940
        %v4943 = vpack.c.b16 %v2969, %v2955
        %v4944 = vpack.c.b16 %v2997, %v2983
        %v4945 = vpack.c.b16 %v3025, %v3011
        %v4946 = vpack.c.b16 %v4942, %v3039
        %v4963 = vunpack.c.l.b16 %v4897
        %v4964 = vunpack.c.h.b16 %v4897
        %v4965 = vunpack.c.l.b16 %v4898
        %v4966 = vunpack.c.h.b16 %v4898
        %v4967 = vunpack.c.l.b16 %v4899
        %v4968 = vunpack.c.h.b16 %v4899
        %v4969 = vunpack.c.l.b16 %v4900
        %v4970 = vunpack.c.h.b16 %v4900
        %v4971 = vunpack.c.l.b16 %v4901
        %v4972 = vunpack.c.h.b16 %v4901
        %v4973 = vunpack.c.l.b16 %v4902
        %v4974 = vunpack.c.h.b16 %v4902
        %v4975 = vunpack.c.l.b16 %v4903
        %v4976 = vunpack.c.h.b16 %v4903
        %v4977 = vunpack.c.l.b16 %v4904
        %v4978 = vunpack.c.h.b16 %v4904
        %v4979 = vunpack.c.l.b16 %v4905
        %v4980 = vunpack.c.h.b16 %v4905
        %v4981 = vunpack.c.l.b16 %v4906
        %v4982 = vunpack.c.h.b16 %v4906
        %v4983 = vunpack.c.l.b16 %v4907
        %v4984 = vunpack.c.h.b16 %v4907
        %v4985 = vunpack.c.l.b16 %v4908
        %v4986 = vunpack.c.h.b16 %v4908
        %v4987 = vunpack.c.l.b16 %v4909
        %v4988 = vunpack.c.h.b16 %v4909
        %v4989 = vunpack.c.l.b16 %v4910
        %v4990 = vunpack.c.h.b16 %v4910
        %v4991 = vunpack.c.l.b16 %v4911
        %v4992 = vunpack.c.h.b16 %v4911
        %v4993 = vunpack.c.l.b16 %v4912
        %v4994 = vunpack.c.h.b16 %v4912
        %v4995 = vpack.c.b16 %v4967, %v4963
        %v4996 = vpack.c.b16 %v4968, %v4964
        %v4997 = vpack.c.b16 %v4969, %v4965
        %v4998 = vpack.c.b16 %v4970, %v4966
        %v4999 = vpack.c.b16 %v4975, %v4971
        %v5000 = vpack.c.b16 %v4976, %v4972
        %v5001 = vpack.c.b16 %v4977, %v4973
        %v5002 = vpack.c.b16 %v4978, %v4974
        %v5003 = vpack.c.b16 %v4983, %v4979
        %v5004 = vpack.c.b16 %v4984, %v4980
        %v5005 = vpack.c.b16 %v4985, %v4981
        %v5006 = vpack.c.b16 %v4986, %v4982
        %v5007 = vpack.c.b16 %v4991, %v4987
        %v5008 = vpack.c.b16 %v4992, %v4988
        %v5009 = vpack.c.b16 %v4993, %v4989
        %v5010 = vpack.c.b16 %v4994, %v4990
        %v5028 = vsel %vm1994, %v4943, 0
        %v5031 = vsel %vm1994, %v4944, 0
        %v5034 = vsel %vm1994, %v4945, 0
        %v5037 = vsel %vm1994, %v4946, 0
        %5039 = vmatpush.bf16.msra.mxu0 0
        %5040 = vmatpush.bf16.msra.mxu0 0
        %5041 = vmatpush.bf16.msra.mxu0 0
        %5042 = vmatpush.bf16.msra.mxu0 0
        %5043 = vmatpush.bf16.msra.mxu0 %v5007
        %5044 = vmatpush.bf16.msra.mxu0 %v5003
        %5045 = vmatpush.bf16.msra.mxu0 %v4999
        %5046 = vmatpush.bf16.msra.mxu0 %v4995
        %5047 = vmatmul.bf16.gmra.mxu0 %v5028
        %v5048 = vpop.f32.mrf.mxu0
        %v5049 = vadd.f32 0.0, %v5048
        %v5050 = vpop.f32.mrf.mxu0
        %v5051 = vadd.f32 0.0, %v5050
        %5052 = vmatmul.bf16.gmra.mxu0 %v5031
        %v5053 = vpop.f32.mrf.mxu0
        %v5054 = vadd.f32 0.0, %v5053
        %v5055 = vpop.f32.mrf.mxu0
        %v5056 = vadd.f32 0.0, %v5055
        %5057 = vmatmul.bf16.gmra.mxu0 %v5034
        %v5058 = vpop.f32.mrf.mxu0
        %v5059 = vadd.f32 0.0, %v5058
        %v5060 = vpop.f32.mrf.mxu0
        %v5061 = vadd.f32 0.0, %v5060
        %5062 = vmatmul.bf16.gmra.mxu0 %v5037
        %v5063 = vpop.f32.mrf.mxu0
        %v5064 = vadd.f32 0.0, %v5063
        %v5065 = vpop.f32.mrf.mxu0
        %v5066 = vadd.f32 0.0, %v5065
        %5067 = vdwg.mxu0
        %5068 = vmatpush.bf16.msra.mxu0 0
        %5069 = vmatpush.bf16.msra.mxu0 0
        %5070 = vmatpush.bf16.msra.mxu0 0
        %5071 = vmatpush.bf16.msra.mxu0 0
        %5072 = vmatpush.bf16.msra.mxu0 %v5008
        %5073 = vmatpush.bf16.msra.mxu0 %v5004
        %5074 = vmatpush.bf16.msra.mxu0 %v5000
        %5075 = vmatpush.bf16.msra.mxu0 %v4996
        %5076 = vmatmul.bf16.gmra.mxu0 %v5028
        %v5077 = vpop.f32.mrf.mxu0
        %v5078 = vadd.f32 0.0, %v5077
        %v5079 = vpop.f32.mrf.mxu0
        %v5080 = vadd.f32 0.0, %v5079
        %5081 = vmatmul.bf16.gmra.mxu0 %v5031
        %v5082 = vpop.f32.mrf.mxu0
        %v5083 = vadd.f32 0.0, %v5082
        %v5084 = vpop.f32.mrf.mxu0
        %v5085 = vadd.f32 0.0, %v5084
        %5086 = vmatmul.bf16.gmra.mxu0 %v5034
        %v5087 = vpop.f32.mrf.mxu0
        %v5088 = vadd.f32 0.0, %v5087
        %v5089 = vpop.f32.mrf.mxu0
        %v5090 = vadd.f32 0.0, %v5089
        %5091 = vmatmul.bf16.gmra.mxu0 %v5037
        %v5092 = vpop.f32.mrf.mxu0
        %v5093 = vadd.f32 0.0, %v5092
        %v5094 = vpop.f32.mrf.mxu0
        %v5095 = vadd.f32 0.0, %v5094
        %5096 = vdwg.mxu0
        %5097 = vmatpush.bf16.msra.mxu0 0
        %5098 = vmatpush.bf16.msra.mxu0 0
        %5099 = vmatpush.bf16.msra.mxu0 0
        %5100 = vmatpush.bf16.msra.mxu0 0
        %5101 = vmatpush.bf16.msra.mxu0 %v5009
        %5102 = vmatpush.bf16.msra.mxu0 %v5005
        %5103 = vmatpush.bf16.msra.mxu0 %v5001
        %5104 = vmatpush.bf16.msra.mxu0 %v4997
        %5105 = vmatmul.bf16.gmra.mxu0 %v5028
        %v5106 = vpop.f32.mrf.mxu0
        %v5107 = vadd.f32 0.0, %v5106
        %v5108 = vpop.f32.mrf.mxu0
        %v5109 = vadd.f32 0.0, %v5108
        %5110 = vmatmul.bf16.gmra.mxu0 %v5031
        %v5111 = vpop.f32.mrf.mxu0
        %v5112 = vadd.f32 0.0, %v5111
        %v5113 = vpop.f32.mrf.mxu0
        %v5114 = vadd.f32 0.0, %v5113
        %5115 = vmatmul.bf16.gmra.mxu0 %v5034
        %v5116 = vpop.f32.mrf.mxu0
        %v5117 = vadd.f32 0.0, %v5116
        %v5118 = vpop.f32.mrf.mxu0
        %v5119 = vadd.f32 0.0, %v5118
        %5120 = vmatmul.bf16.gmra.mxu0 %v5037
        %v5121 = vpop.f32.mrf.mxu0
        %v5122 = vadd.f32 0.0, %v5121
        %v5123 = vpop.f32.mrf.mxu0
        %v5124 = vadd.f32 0.0, %v5123
        %5125 = vdwg.mxu0
        %5126 = vmatpush.bf16.msra.mxu0 0
        %5127 = vmatpush.bf16.msra.mxu0 0
        %5128 = vmatpush.bf16.msra.mxu0 0
        %5129 = vmatpush.bf16.msra.mxu0 0
        %5130 = vmatpush.bf16.msra.mxu0 %v5010
        %5131 = vmatpush.bf16.msra.mxu0 %v5006
        %5132 = vmatpush.bf16.msra.mxu0 %v5002
        %5133 = vmatpush.bf16.msra.mxu0 %v4998
        %5134 = vmatmul.bf16.gmra.mxu0 %v5028
        %v5135 = vpop.f32.mrf.mxu0
        %v5136 = vadd.f32 0.0, %v5135
        %v5137 = vpop.f32.mrf.mxu0
        %v5138 = vadd.f32 0.0, %v5137
        %5139 = vmatmul.bf16.gmra.mxu0 %v5031
        %v5140 = vpop.f32.mrf.mxu0
        %v5141 = vadd.f32 0.0, %v5140
        %v5142 = vpop.f32.mrf.mxu0
        %v5143 = vadd.f32 0.0, %v5142
        %5144 = vmatmul.bf16.gmra.mxu0 %v5034
        %v5145 = vpop.f32.mrf.mxu0
        %v5146 = vadd.f32 0.0, %v5145
        %v5147 = vpop.f32.mrf.mxu0
        %v5148 = vadd.f32 0.0, %v5147
        %5149 = vmatmul.bf16.gmra.mxu0 %v5037
        %v5150 = vpop.f32.mrf.mxu0
        %v5151 = vadd.f32 0.0, %v5150
        %v5152 = vpop.f32.mrf.mxu0
        %v5153 = vadd.f32 0.0, %v5152
        %5154 = vdwg.mxu0
        %v5155 = vadd.f32 %v4856, %v5049
        %v5156 = vadd.f32 %v4857, %v5078
        %v5157 = vadd.f32 %v4858, %v5107
        %v5158 = vadd.f32 %v4859, %v5136
        %v5159 = vadd.f32 %v4860, %v5051
        %v5160 = vadd.f32 %v4861, %v5080
        %v5161 = vadd.f32 %v4862, %v5109
        %v5162 = vadd.f32 %v4863, %v5138
        %v5163 = vadd.f32 %v4864, %v5054
        %v5164 = vadd.f32 %v4865, %v5083
        %v5165 = vadd.f32 %v4866, %v5112
        %v5166 = vadd.f32 %v4867, %v5141
        %v5167 = vadd.f32 %v4868, %v5056
        %v5168 = vadd.f32 %v4869, %v5085
        %v5169 = vadd.f32 %v4870, %v5114
        %v5170 = vadd.f32 %v4871, %v5143
        %v5171 = vadd.f32 %v4872, %v5059
        %v5172 = vadd.f32 %v4873, %v5088
        %v5173 = vadd.f32 %v4874, %v5117
        %v5174 = vadd.f32 %v4875, %v5146
        %v5175 = vadd.f32 %v4876, %v5061
        %v5176 = vadd.f32 %v4877, %v5090
        %v5177 = vadd.f32 %v4878, %v5119
        %v5178 = vadd.f32 %v4879, %v5148
        %v5179 = vadd.f32 %v4880, %v5064
        %v5180 = vadd.f32 %v4881, %v5093
        %v5181 = vadd.f32 %v4882, %v5122
        %v5182 = vadd.f32 %v4883, %v5151
        %v5183 = vadd.f32 %v4884, %v5066
        %v5184 = vadd.f32 %v4885, %v5095
        %v5185 = vadd.f32 %v4886, %v5124
        %v5186 = vadd.f32 %v4887, %v5153
        %s5187 = scalar_lea.vmem %s3, 896
        %v5188 = vld [vmem:[%s5187] sm:$0xff]
        %v5189 = vld [vmem:[%s5187 + $0x8] sm:$0xff]
        %v5190 = vld [vmem:[%s5187 + $0x10] sm:$0xff]
        %v5191 = vld [vmem:[%s5187 + $0x18] sm:$0xff]
        %v5192 = vld [vmem:[%s5187 + $0x20] sm:$0xff]
        %v5193 = vld [vmem:[%s5187 + $0x28] sm:$0xff]
        %v5194 = vld [vmem:[%s5187 + $0x30] sm:$0xff]
        %v5195 = vld [vmem:[%s5187 + $0x38] sm:$0xff]
        %v5196 = vld [vmem:[%s5187 + $0x40] sm:$0xff]
        %v5197 = vld [vmem:[%s5187 + $0x48] sm:$0xff]
        %v5198 = vld [vmem:[%s5187 + $0x50] sm:$0xff]
        %v5199 = vld [vmem:[%s5187 + $0x58] sm:$0xff]
        %v5200 = vld [vmem:[%s5187 + $0x60] sm:$0xff]
        %v5201 = vld [vmem:[%s5187 + $0x68] sm:$0xff]
        %v5202 = vld [vmem:[%s5187 + $0x70] sm:$0xff]
        %v5203 = vld [vmem:[%s5187 + $0x78] sm:$0xff]
        %v5204 = vrot.slane %v4921, 1
        %v5205 = vsel %vm2598, %v4922, %v5204
        %v5206 = vrot.slane %v4923, 7
        %v5207 = vsel %vm2601, %v5206, %v5205
        %v5208 = vrot.slane %v4924, 6
        %v5209 = vsel %vm2604, %v5208, %v5207
        %v5210 = vrot.slane %v4925, 5
        %v5211 = vsel %vm2607, %v5210, %v5209
        %v5212 = vrot.slane %v4926, 4
        %v5213 = vsel %vm2610, %v5212, %v5211
        %v5214 = vrot.slane %v4927, 3
        %v5215 = vsel %vm2613, %v5214, %v5213
        %v5216 = vrot.slane %v4928, 2
        %v5217 = vsel %vm2616, %v5216, %v5215
        %v5218 = vpack.c.b16 %v2645, %v2631
        %v5219 = vpack.c.b16 %v2673, %v2659
        %v5220 = vpack.c.b16 %v2701, %v2687
        %v5221 = vpack.c.b16 %v5217, %v2715
        %v5238 = vunpack.c.l.b16 %v5188
        %v5239 = vunpack.c.h.b16 %v5188
        %v5240 = vunpack.c.l.b16 %v5189
        %v5241 = vunpack.c.h.b16 %v5189
        %v5242 = vunpack.c.l.b16 %v5190
        %v5243 = vunpack.c.h.b16 %v5190
        %v5244 = vunpack.c.l.b16 %v5191
        %v5245 = vunpack.c.h.b16 %v5191
        %v5246 = vunpack.c.l.b16 %v5192
        %v5247 = vunpack.c.h.b16 %v5192
        %v5248 = vunpack.c.l.b16 %v5193
        %v5249 = vunpack.c.h.b16 %v5193
        %v5250 = vunpack.c.l.b16 %v5194
        %v5251 = vunpack.c.h.b16 %v5194
        %v5252 = vunpack.c.l.b16 %v5195
        %v5253 = vunpack.c.h.b16 %v5195
        %v5254 = vunpack.c.l.b16 %v5196
        %v5255 = vunpack.c.h.b16 %v5196
        %v5256 = vunpack.c.l.b16 %v5197
        %v5257 = vunpack.c.h.b16 %v5197
        %v5258 = vunpack.c.l.b16 %v5198
        %v5259 = vunpack.c.h.b16 %v5198
        %v5260 = vunpack.c.l.b16 %v5199
        %v5261 = vunpack.c.h.b16 %v5199
        %v5262 = vunpack.c.l.b16 %v5200
        %v5263 = vunpack.c.h.b16 %v5200
        %v5264 = vunpack.c.l.b16 %v5201
        %v5265 = vunpack.c.h.b16 %v5201
        %v5266 = vunpack.c.l.b16 %v5202
        %v5267 = vunpack.c.h.b16 %v5202
        %v5268 = vunpack.c.l.b16 %v5203
        %v5269 = vunpack.c.h.b16 %v5203
        %v5270 = vpack.c.b16 %v5242, %v5238
        %v5271 = vpack.c.b16 %v5243, %v5239
        %v5272 = vpack.c.b16 %v5244, %v5240
        %v5273 = vpack.c.b16 %v5245, %v5241
        %v5274 = vpack.c.b16 %v5250, %v5246
        %v5275 = vpack.c.b16 %v5251, %v5247
        %v5276 = vpack.c.b16 %v5252, %v5248
        %v5277 = vpack.c.b16 %v5253, %v5249
        %v5278 = vpack.c.b16 %v5258, %v5254
        %v5279 = vpack.c.b16 %v5259, %v5255
        %v5280 = vpack.c.b16 %v5260, %v5256
        %v5281 = vpack.c.b16 %v5261, %v5257
        %v5282 = vpack.c.b16 %v5266, %v5262
        %v5283 = vpack.c.b16 %v5267, %v5263
        %v5284 = vpack.c.b16 %v5268, %v5264
        %v5285 = vpack.c.b16 %v5269, %v5265
        %v5303 = vsel %vm1994, %v5218, 0
        %v5306 = vsel %vm1994, %v5219, 0
        %v5309 = vsel %vm1994, %v5220, 0
        %v5312 = vsel %vm1994, %v5221, 0
        %5314 = vmatpush.bf16.msra.mxu0 0
        %5315 = vmatpush.bf16.msra.mxu0 0
        %5316 = vmatpush.bf16.msra.mxu0 0
        %5317 = vmatpush.bf16.msra.mxu0 0
        %5318 = vmatpush.bf16.msra.mxu0 %v5282
        %5319 = vmatpush.bf16.msra.mxu0 %v5278
        %5320 = vmatpush.bf16.msra.mxu0 %v5274
        %5321 = vmatpush.bf16.msra.mxu0 %v5270
        %5322 = vmatmul.bf16.gmra.mxu0 %v5303
        %v5323 = vpop.f32.mrf.mxu0
        %v5324 = vadd.f32 0.0, %v5323
        %v5325 = vpop.f32.mrf.mxu0
        %v5326 = vadd.f32 0.0, %v5325
        %5327 = vmatmul.bf16.gmra.mxu0 %v5306
        %v5328 = vpop.f32.mrf.mxu0
        %v5329 = vadd.f32 0.0, %v5328
        %v5330 = vpop.f32.mrf.mxu0
        %v5331 = vadd.f32 0.0, %v5330
        %5332 = vmatmul.bf16.gmra.mxu0 %v5309
        %v5333 = vpop.f32.mrf.mxu0
        %v5334 = vadd.f32 0.0, %v5333
        %v5335 = vpop.f32.mrf.mxu0
        %v5336 = vadd.f32 0.0, %v5335
        %5337 = vmatmul.bf16.gmra.mxu0 %v5312
        %v5338 = vpop.f32.mrf.mxu0
        %v5339 = vadd.f32 0.0, %v5338
        %v5340 = vpop.f32.mrf.mxu0
        %v5341 = vadd.f32 0.0, %v5340
        %5342 = vdwg.mxu0
        %5343 = vmatpush.bf16.msra.mxu0 0
        %5344 = vmatpush.bf16.msra.mxu0 0
        %5345 = vmatpush.bf16.msra.mxu0 0
        %5346 = vmatpush.bf16.msra.mxu0 0
        %5347 = vmatpush.bf16.msra.mxu0 %v5283
        %5348 = vmatpush.bf16.msra.mxu0 %v5279
        %5349 = vmatpush.bf16.msra.mxu0 %v5275
        %5350 = vmatpush.bf16.msra.mxu0 %v5271
        %5351 = vmatmul.bf16.gmra.mxu0 %v5303
        %v5352 = vpop.f32.mrf.mxu0
        %v5353 = vadd.f32 0.0, %v5352
        %v5354 = vpop.f32.mrf.mxu0
        %v5355 = vadd.f32 0.0, %v5354
        %5356 = vmatmul.bf16.gmra.mxu0 %v5306
        %v5357 = vpop.f32.mrf.mxu0
        %v5358 = vadd.f32 0.0, %v5357
        %v5359 = vpop.f32.mrf.mxu0
        %v5360 = vadd.f32 0.0, %v5359
        %5361 = vmatmul.bf16.gmra.mxu0 %v5309
        %v5362 = vpop.f32.mrf.mxu0
        %v5363 = vadd.f32 0.0, %v5362
        %v5364 = vpop.f32.mrf.mxu0
        %v5365 = vadd.f32 0.0, %v5364
        %5366 = vmatmul.bf16.gmra.mxu0 %v5312
        %v5367 = vpop.f32.mrf.mxu0
        %v5368 = vadd.f32 0.0, %v5367
        %v5369 = vpop.f32.mrf.mxu0
        %v5370 = vadd.f32 0.0, %v5369
        %5371 = vdwg.mxu0
        %5372 = vmatpush.bf16.msra.mxu0 0
        %5373 = vmatpush.bf16.msra.mxu0 0
        %5374 = vmatpush.bf16.msra.mxu0 0
        %5375 = vmatpush.bf16.msra.mxu0 0
        %5376 = vmatpush.bf16.msra.mxu0 %v5284
        %5377 = vmatpush.bf16.msra.mxu0 %v5280
        %5378 = vmatpush.bf16.msra.mxu0 %v5276
        %5379 = vmatpush.bf16.msra.mxu0 %v5272
        %5380 = vmatmul.bf16.gmra.mxu0 %v5303
        %v5381 = vpop.f32.mrf.mxu0
        %v5382 = vadd.f32 0.0, %v5381
        %v5383 = vpop.f32.mrf.mxu0
        %v5384 = vadd.f32 0.0, %v5383
        %5385 = vmatmul.bf16.gmra.mxu0 %v5306
        %v5386 = vpop.f32.mrf.mxu0
        %v5387 = vadd.f32 0.0, %v5386
        %v5388 = vpop.f32.mrf.mxu0
        %v5389 = vadd.f32 0.0, %v5388
        %5390 = vmatmul.bf16.gmra.mxu0 %v5309
        %v5391 = vpop.f32.mrf.mxu0
        %v5392 = vadd.f32 0.0, %v5391
        %v5393 = vpop.f32.mrf.mxu0
        %v5394 = vadd.f32 0.0, %v5393
        %5395 = vmatmul.bf16.gmra.mxu0 %v5312
        %v5396 = vpop.f32.mrf.mxu0
        %v5397 = vadd.f32 0.0, %v5396
        %v5398 = vpop.f32.mrf.mxu0
        %v5399 = vadd.f32 0.0, %v5398
        %5400 = vdwg.mxu0
        %5401 = vmatpush.bf16.msra.mxu0 0
        %5402 = vmatpush.bf16.msra.mxu0 0
        %5403 = vmatpush.bf16.msra.mxu0 0
        %5404 = vmatpush.bf16.msra.mxu0 0
        %5405 = vmatpush.bf16.msra.mxu0 %v5285
        %5406 = vmatpush.bf16.msra.mxu0 %v5281
        %5407 = vmatpush.bf16.msra.mxu0 %v5277
        %5408 = vmatpush.bf16.msra.mxu0 %v5273
        %5409 = vmatmul.bf16.gmra.mxu0 %v5303
        %v5410 = vpop.f32.mrf.mxu0
        %v5411 = vadd.f32 0.0, %v5410
        %v5412 = vpop.f32.mrf.mxu0
        %v5413 = vadd.f32 0.0, %v5412
        %5414 = vmatmul.bf16.gmra.mxu0 %v5306
        %v5415 = vpop.f32.mrf.mxu0
        %v5416 = vadd.f32 0.0, %v5415
        %v5417 = vpop.f32.mrf.mxu0
        %v5418 = vadd.f32 0.0, %v5417
        %5419 = vmatmul.bf16.gmra.mxu0 %v5309
        %v5420 = vpop.f32.mrf.mxu0
        %v5421 = vadd.f32 0.0, %v5420
        %v5422 = vpop.f32.mrf.mxu0
        %v5423 = vadd.f32 0.0, %v5422
        %5424 = vmatmul.bf16.gmra.mxu0 %v5312
        %v5425 = vpop.f32.mrf.mxu0
        %v5426 = vadd.f32 0.0, %v5425
        %v5427 = vpop.f32.mrf.mxu0
        %v5428 = vadd.f32 0.0, %v5427
        %5429 = vdwg.mxu0
        %v5430 = vadd.f32 %v5155, %v5324
        %v5431 = vadd.f32 %v5156, %v5353
        %v5432 = vadd.f32 %v5157, %v5382
        %v5433 = vadd.f32 %v5158, %v5411
        %v5434 = vadd.f32 %v5159, %v5326
        %v5435 = vadd.f32 %v5160, %v5355
        %v5436 = vadd.f32 %v5161, %v5384
        %v5437 = vadd.f32 %v5162, %v5413
        %v5438 = vadd.f32 %v5163, %v5329
        %v5439 = vadd.f32 %v5164, %v5358
        %v5440 = vadd.f32 %v5165, %v5387
        %v5441 = vadd.f32 %v5166, %v5416
        %v5442 = vadd.f32 %v5167, %v5331
        %v5443 = vadd.f32 %v5168, %v5360
        %v5444 = vadd.f32 %v5169, %v5389
        %v5445 = vadd.f32 %v5170, %v5418
        %v5446 = vadd.f32 %v5171, %v5334
        %v5447 = vadd.f32 %v5172, %v5363
        %v5448 = vadd.f32 %v5173, %v5392
        %v5449 = vadd.f32 %v5174, %v5421
        %v5450 = vadd.f32 %v5175, %v5336
        %v5451 = vadd.f32 %v5176, %v5365
        %v5452 = vadd.f32 %v5177, %v5394
        %v5453 = vadd.f32 %v5178, %v5423
        %v5454 = vadd.f32 %v5179, %v5339
        %v5455 = vadd.f32 %v5180, %v5368
        %v5456 = vadd.f32 %v5181, %v5397
        %v5457 = vadd.f32 %v5182, %v5426
        %v5458 = vadd.f32 %v5183, %v5341
        %v5459 = vadd.f32 %v5184, %v5370
        %v5460 = vadd.f32 %v5185, %v5399
        %v5461 = vadd.f32 %v5186, %v5428
        %v5462 = vpack.c.bf16 %v2133, %v2133
        %s5463 = scalar_lea.vmem %s3, 1024
        %v5464 = vld [vmem:[%s5463] sm:$0xff]
        %v5465 = vld [vmem:[%s5463 + $0x8] sm:$0xff]
        %v5466 = vld [vmem:[%s5463 + $0x10] sm:$0xff]
        %v5467 = vld [vmem:[%s5463 + $0x18] sm:$0xff]
        %v5468 = vld [vmem:[%s5463 + $0x20] sm:$0xff]
        %v5469 = vld [vmem:[%s5463 + $0x28] sm:$0xff]
        %v5470 = vld [vmem:[%s5463 + $0x30] sm:$0xff]
        %v5471 = vld [vmem:[%s5463 + $0x38] sm:$0xff]
        %v5472 = vld [vmem:[%s5463 + $0x40] sm:$0xff]
        %v5473 = vld [vmem:[%s5463 + $0x48] sm:$0xff]
        %v5474 = vld [vmem:[%s5463 + $0x50] sm:$0xff]
        %v5475 = vld [vmem:[%s5463 + $0x58] sm:$0xff]
        %v5476 = vld [vmem:[%s5463 + $0x60] sm:$0xff]
        %v5477 = vld [vmem:[%s5463 + $0x68] sm:$0xff]
        %v5478 = vld [vmem:[%s5463 + $0x70] sm:$0xff]
        %v5479 = vld [vmem:[%s5463 + $0x78] sm:$0xff]
        %v5481 = vunpack.c.l.b16 %v5462
        %v5482 = vsel %vm2598, %v5206, %v4922
        %v5483 = vsel %vm2601, %v5208, %v5482
        %v5484 = vsel %vm2604, %v5210, %v5483
        %v5485 = vsel %vm2607, %v5212, %v5484
        %v5486 = vsel %vm2610, %v5214, %v5485
        %v5487 = vsel %vm2613, %v5216, %v5486
        %v5488 = vrot.slane %v5481, 1
        %v5489 = vsel %vm2616, %v5488, %v5487
        %v5490 = vpack.c.b16 %v3316, %v3308
        %v5491 = vpack.c.b16 %v3332, %v3324
        %v5492 = vpack.c.b16 %v3348, %v3340
        %v5493 = vpack.c.b16 %v5489, %v3356
        %v5510 = vunpack.c.l.b16 %v5464
        %v5511 = vunpack.c.h.b16 %v5464
        %v5512 = vunpack.c.l.b16 %v5465
        %v5513 = vunpack.c.h.b16 %v5465
        %v5514 = vunpack.c.l.b16 %v5466
        %v5515 = vunpack.c.h.b16 %v5466
        %v5516 = vunpack.c.l.b16 %v5467
        %v5517 = vunpack.c.h.b16 %v5467
        %v5518 = vunpack.c.l.b16 %v5468
        %v5519 = vunpack.c.h.b16 %v5468
        %v5520 = vunpack.c.l.b16 %v5469
        %v5521 = vunpack.c.h.b16 %v5469
        %v5522 = vunpack.c.l.b16 %v5470
        %v5523 = vunpack.c.h.b16 %v5470
        %v5524 = vunpack.c.l.b16 %v5471
        %v5525 = vunpack.c.h.b16 %v5471
        %v5526 = vunpack.c.l.b16 %v5472
        %v5527 = vunpack.c.h.b16 %v5472
        %v5528 = vunpack.c.l.b16 %v5473
        %v5529 = vunpack.c.h.b16 %v5473
        %v5530 = vunpack.c.l.b16 %v5474
        %v5531 = vunpack.c.h.b16 %v5474
        %v5532 = vunpack.c.l.b16 %v5475
        %v5533 = vunpack.c.h.b16 %v5475
        %v5534 = vunpack.c.l.b16 %v5476
        %v5535 = vunpack.c.h.b16 %v5476
        %v5536 = vunpack.c.l.b16 %v5477
        %v5537 = vunpack.c.h.b16 %v5477
        %v5538 = vunpack.c.l.b16 %v5478
        %v5539 = vunpack.c.h.b16 %v5478
        %v5540 = vunpack.c.l.b16 %v5479
        %v5541 = vunpack.c.h.b16 %v5479
        %v5542 = vpack.c.b16 %v5514, %v5510
        %v5543 = vpack.c.b16 %v5515, %v5511
        %v5544 = vpack.c.b16 %v5516, %v5512
        %v5545 = vpack.c.b16 %v5517, %v5513
        %v5546 = vpack.c.b16 %v5522, %v5518
        %v5547 = vpack.c.b16 %v5523, %v5519
        %v5548 = vpack.c.b16 %v5524, %v5520
        %v5549 = vpack.c.b16 %v5525, %v5521
        %v5550 = vpack.c.b16 %v5530, %v5526
        %v5551 = vpack.c.b16 %v5531, %v5527
        %v5552 = vpack.c.b16 %v5532, %v5528
        %v5553 = vpack.c.b16 %v5533, %v5529
        %v5554 = vpack.c.b16 %v5538, %v5534
        %v5555 = vpack.c.b16 %v5539, %v5535
        %v5556 = vpack.c.b16 %v5540, %v5536
        %v5557 = vpack.c.b16 %v5541, %v5537
        %v5575 = vsel %vm1994, %v5490, 0
        %v5578 = vsel %vm1994, %v5491, 0
        %v5581 = vsel %vm1994, %v5492, 0
        %v5584 = vsel %vm1994, %v5493, 0
        %5586 = vmatpush.bf16.msra.mxu0 0
        %5587 = vmatpush.bf16.msra.mxu0 0
        %5588 = vmatpush.bf16.msra.mxu0 0
        %5589 = vmatpush.bf16.msra.mxu0 0
        %5590 = vmatpush.bf16.msra.mxu0 %v5554
        %5591 = vmatpush.bf16.msra.mxu0 %v5550
        %5592 = vmatpush.bf16.msra.mxu0 %v5546
        %5593 = vmatpush.bf16.msra.mxu0 %v5542
        %5594 = vmatmul.bf16.gmra.mxu0 %v5575
        %v5595 = vpop.f32.mrf.mxu0
        %v5596 = vadd.f32 0.0, %v5595
        %v5597 = vpop.f32.mrf.mxu0
        %v5598 = vadd.f32 0.0, %v5597
        %5599 = vmatmul.bf16.gmra.mxu0 %v5578
        %v5600 = vpop.f32.mrf.mxu0
        %v5601 = vadd.f32 0.0, %v5600
        %v5602 = vpop.f32.mrf.mxu0
        %v5603 = vadd.f32 0.0, %v5602
        %5604 = vmatmul.bf16.gmra.mxu0 %v5581
        %v5605 = vpop.f32.mrf.mxu0
        %v5606 = vadd.f32 0.0, %v5605
        %v5607 = vpop.f32.mrf.mxu0
        %v5608 = vadd.f32 0.0, %v5607
        %5609 = vmatmul.bf16.gmra.mxu0 %v5584
        %v5610 = vpop.f32.mrf.mxu0
        %v5611 = vadd.f32 0.0, %v5610
        %v5612 = vpop.f32.mrf.mxu0
        %v5613 = vadd.f32 0.0, %v5612
        %5614 = vdwg.mxu0
        %5615 = vmatpush.bf16.msra.mxu0 0
        %5616 = vmatpush.bf16.msra.mxu0 0
        %5617 = vmatpush.bf16.msra.mxu0 0
        %5618 = vmatpush.bf16.msra.mxu0 0
        %5619 = vmatpush.bf16.msra.mxu0 %v5555
        %5620 = vmatpush.bf16.msra.mxu0 %v5551
        %5621 = vmatpush.bf16.msra.mxu0 %v5547
        %5622 = vmatpush.bf16.msra.mxu0 %v5543
        %5623 = vmatmul.bf16.gmra.mxu0 %v5575
        %v5624 = vpop.f32.mrf.mxu0
        %v5625 = vadd.f32 0.0, %v5624
        %v5626 = vpop.f32.mrf.mxu0
        %v5627 = vadd.f32 0.0, %v5626
        %5628 = vmatmul.bf16.gmra.mxu0 %v5578
        %v5629 = vpop.f32.mrf.mxu0
        %v5630 = vadd.f32 0.0, %v5629
        %v5631 = vpop.f32.mrf.mxu0
        %v5632 = vadd.f32 0.0, %v5631
        %5633 = vmatmul.bf16.gmra.mxu0 %v5581
        %v5634 = vpop.f32.mrf.mxu0
        %v5635 = vadd.f32 0.0, %v5634
        %v5636 = vpop.f32.mrf.mxu0
        %v5637 = vadd.f32 0.0, %v5636
        %5638 = vmatmul.bf16.gmra.mxu0 %v5584
        %v5639 = vpop.f32.mrf.mxu0
        %v5640 = vadd.f32 0.0, %v5639
        %v5641 = vpop.f32.mrf.mxu0
        %v5642 = vadd.f32 0.0, %v5641
        %5643 = vdwg.mxu0
        %5644 = vmatpush.bf16.msra.mxu0 0
        %5645 = vmatpush.bf16.msra.mxu0 0
        %5646 = vmatpush.bf16.msra.mxu0 0
        %5647 = vmatpush.bf16.msra.mxu0 0
        %5648 = vmatpush.bf16.msra.mxu0 %v5556
        %5649 = vmatpush.bf16.msra.mxu0 %v5552
        %5650 = vmatpush.bf16.msra.mxu0 %v5548
        %5651 = vmatpush.bf16.msra.mxu0 %v5544
        %5652 = vmatmul.bf16.gmra.mxu0 %v5575
        %v5653 = vpop.f32.mrf.mxu0
        %v5654 = vadd.f32 0.0, %v5653
        %v5655 = vpop.f32.mrf.mxu0
        %v5656 = vadd.f32 0.0, %v5655
        %5657 = vmatmul.bf16.gmra.mxu0 %v5578
        %v5658 = vpop.f32.mrf.mxu0
        %v5659 = vadd.f32 0.0, %v5658
        %v5660 = vpop.f32.mrf.mxu0
        %v5661 = vadd.f32 0.0, %v5660
        %5662 = vmatmul.bf16.gmra.mxu0 %v5581
        %v5663 = vpop.f32.mrf.mxu0
        %v5664 = vadd.f32 0.0, %v5663
        %v5665 = vpop.f32.mrf.mxu0
        %v5666 = vadd.f32 0.0, %v5665
        %5667 = vmatmul.bf16.gmra.mxu0 %v5584
        %v5668 = vpop.f32.mrf.mxu0
        %v5669 = vadd.f32 0.0, %v5668
        %v5670 = vpop.f32.mrf.mxu0
        %v5671 = vadd.f32 0.0, %v5670
        %5672 = vdwg.mxu0
        %5673 = vmatpush.bf16.msra.mxu0 0
        %5674 = vmatpush.bf16.msra.mxu0 0
        %5675 = vmatpush.bf16.msra.mxu0 0
        %5676 = vmatpush.bf16.msra.mxu0 0
        %5677 = vmatpush.bf16.msra.mxu0 %v5557
        %5678 = vmatpush.bf16.msra.mxu0 %v5553
        %5679 = vmatpush.bf16.msra.mxu0 %v5549
        %5680 = vmatpush.bf16.msra.mxu0 %v5545
        %5681 = vmatmul.bf16.gmra.mxu0 %v5575
        %v5682 = vpop.f32.mrf.mxu0
        %v5683 = vadd.f32 0.0, %v5682
        %v5684 = vpop.f32.mrf.mxu0
        %v5685 = vadd.f32 0.0, %v5684
        %5686 = vmatmul.bf16.gmra.mxu0 %v5578
        %v5687 = vpop.f32.mrf.mxu0
        %v5688 = vadd.f32 0.0, %v5687
        %v5689 = vpop.f32.mrf.mxu0
        %v5690 = vadd.f32 0.0, %v5689
        %5691 = vmatmul.bf16.gmra.mxu0 %v5581
        %v5692 = vpop.f32.mrf.mxu0
        %v5693 = vadd.f32 0.0, %v5692
        %v5694 = vpop.f32.mrf.mxu0
        %v5695 = vadd.f32 0.0, %v5694
        %5696 = vmatmul.bf16.gmra.mxu0 %v5584
        %v5697 = vpop.f32.mrf.mxu0
        %v5698 = vadd.f32 0.0, %v5697
        %v5699 = vpop.f32.mrf.mxu0
        %v5700 = vadd.f32 0.0, %v5699
        %5701 = vdwg.mxu0
        %v5702 = vadd.f32 %v5430, %v5596
        %v5703 = vadd.f32 %v5431, %v5625
        %v5704 = vadd.f32 %v5432, %v5654
        %v5705 = vadd.f32 %v5433, %v5683
        %v5706 = vadd.f32 %v5434, %v5598
        %v5707 = vadd.f32 %v5435, %v5627
        %v5708 = vadd.f32 %v5436, %v5656
        %v5709 = vadd.f32 %v5437, %v5685
        %v5710 = vadd.f32 %v5438, %v5601
        %v5711 = vadd.f32 %v5439, %v5630
        %v5712 = vadd.f32 %v5440, %v5659
        %v5713 = vadd.f32 %v5441, %v5688
        %v5714 = vadd.f32 %v5442, %v5603
        %v5715 = vadd.f32 %v5443, %v5632
        %v5716 = vadd.f32 %v5444, %v5661
        %v5717 = vadd.f32 %v5445, %v5690
        %v5718 = vadd.f32 %v5446, %v5606
        %v5719 = vadd.f32 %v5447, %v5635
        %v5720 = vadd.f32 %v5448, %v5664
        %v5721 = vadd.f32 %v5449, %v5693
        %v5722 = vadd.f32 %v5450, %v5608
        %v5723 = vadd.f32 %v5451, %v5637
        %v5724 = vadd.f32 %v5452, %v5666
        %v5725 = vadd.f32 %v5453, %v5695
        %v5726 = vadd.f32 %v5454, %v5611
        %v5727 = vadd.f32 %v5455, %v5640
        %v5728 = vadd.f32 %v5456, %v5669
        %v5729 = vadd.f32 %v5457, %v5698
        %v5730 = vadd.f32 %v5458, %v5613
        %v5731 = vadd.f32 %v5459, %v5642
        %v5732 = vadd.f32 %v5460, %v5671
        %v5733 = vadd.f32 %v5461, %v5700
        %v5734 = vld [vmem:[%s4] sm:$0xf]
        %v5736 = vperm.slane %v5734, 0
        %v5737 = vperm.slane %v5734, 1
        %v5738 = vperm.slane %v5734, 2
        %v5739 = vperm.slane %v5734, 3
        %v5744 = vadd.f32 %v5702, %v5736
        %v5745 = vadd.f32 %v5703, %v5737
        %v5746 = vadd.f32 %v5704, %v5738
        %v5747 = vadd.f32 %v5705, %v5739
        %v5748 = vadd.f32 %v5706, %v5736
        %v5749 = vadd.f32 %v5707, %v5737
        %v5750 = vadd.f32 %v5708, %v5738
        %v5751 = vadd.f32 %v5709, %v5739
        %v5752 = vadd.f32 %v5710, %v5736
        %v5753 = vadd.f32 %v5711, %v5737
        %v5754 = vadd.f32 %v5712, %v5738
        %v5755 = vadd.f32 %v5713, %v5739
        %v5756 = vadd.f32 %v5714, %v5736
        %v5757 = vadd.f32 %v5715, %v5737
        %v5758 = vadd.f32 %v5716, %v5738
        %v5759 = vadd.f32 %v5717, %v5739
        %v5760 = vadd.f32 %v5718, %v5736
        %v5761 = vadd.f32 %v5719, %v5737
        %v5762 = vadd.f32 %v5720, %v5738
        %v5763 = vadd.f32 %v5721, %v5739
        %v5764 = vadd.f32 %v5722, %v5736
        %v5765 = vadd.f32 %v5723, %v5737
        %v5766 = vadd.f32 %v5724, %v5738
        %v5767 = vadd.f32 %v5725, %v5739
        %v5768 = vadd.f32 %v5726, %v5736
        %v5769 = vadd.f32 %v5727, %v5737
        %v5770 = vadd.f32 %v5728, %v5738
        %v5771 = vadd.f32 %v5729, %v5739
        %v5772 = vadd.f32 %v5730, %v5736
        %v5773 = vadd.f32 %v5731, %v5737
        %v5774 = vadd.f32 %v5732, %v5738
        %v5775 = vadd.f32 %v5733, %v5739
        %v5776 = vmax.f32 %v5744, 0.0
        %v5777 = vmax.f32 %v5745, 0.0
        %v5778 = vmax.f32 %v5746, 0.0
        %v5779 = vmax.f32 %v5747, 0.0
        %v5780 = vmax.f32 %v5748, 0.0
        %v5781 = vmax.f32 %v5749, 0.0
        %v5782 = vmax.f32 %v5750, 0.0
        %v5783 = vmax.f32 %v5751, 0.0
        %v5784 = vmax.f32 %v5752, 0.0
        %v5785 = vmax.f32 %v5753, 0.0
        %v5786 = vmax.f32 %v5754, 0.0
        %v5787 = vmax.f32 %v5755, 0.0
        %v5788 = vmax.f32 %v5756, 0.0
        %v5789 = vmax.f32 %v5757, 0.0
        %v5790 = vmax.f32 %v5758, 0.0
        %v5791 = vmax.f32 %v5759, 0.0
        %v5792 = vmax.f32 %v5760, 0.0
        %v5793 = vmax.f32 %v5761, 0.0
        %v5794 = vmax.f32 %v5762, 0.0
        %v5795 = vmax.f32 %v5763, 0.0
        %v5796 = vmax.f32 %v5764, 0.0
        %v5797 = vmax.f32 %v5765, 0.0
        %v5798 = vmax.f32 %v5766, 0.0
        %v5799 = vmax.f32 %v5767, 0.0
        %v5800 = vmax.f32 %v5768, 0.0
        %v5801 = vmax.f32 %v5769, 0.0
        %v5802 = vmax.f32 %v5770, 0.0
        %v5803 = vmax.f32 %v5771, 0.0
        %v5804 = vmax.f32 %v5772, 0.0
        %v5805 = vmax.f32 %v5773, 0.0
        %v5806 = vmax.f32 %v5774, 0.0
        %v5807 = vmax.f32 %v5775, 0.0
        %v5808 = vadd.f32 %v5776, %v5780
        %v5809 = vadd.f32 %v5808, %v5784
        %v5810 = vadd.f32 %v5809, %v5788
        %v5811 = vadd.f32 %v5810, %v5792
        %v5812 = vadd.f32 %v5811, %v5796
        %v5813 = vadd.f32 %v5812, %v5800
        %v5814 = vadd.f32 %v5813, %v5804
        %v5815 = vrot.slane %v5814, 4
        %v5816 = vadd.f32 %v5814, %v5815
        %v5817 = vrot.slane %v5816, 2
        %v5818 = vadd.f32 %v5816, %v5817
        %v5819 = vrot.slane %v5818, 1
        %v5820 = vadd.f32 %v5818, %v5819
        %v5821 = vadd.f32 %v5777, %v5781
        %v5822 = vadd.f32 %v5821, %v5785
        %v5823 = vadd.f32 %v5822, %v5789
        %v5824 = vadd.f32 %v5823, %v5793
        %v5825 = vadd.f32 %v5824, %v5797
        %v5826 = vadd.f32 %v5825, %v5801
        %v5827 = vadd.f32 %v5826, %v5805
        %v5828 = vrot.slane %v5827, 4
        %v5829 = vadd.f32 %v5827, %v5828
        %v5830 = vrot.slane %v5829, 2
        %v5831 = vadd.f32 %v5829, %v5830
        %v5832 = vrot.slane %v5831, 1
        %v5833 = vadd.f32 %v5831, %v5832
        %v5834 = vadd.f32 %v5778, %v5782
        %v5835 = vadd.f32 %v5834, %v5786
        %v5836 = vadd.f32 %v5835, %v5790
        %v5837 = vadd.f32 %v5836, %v5794
        %v5838 = vadd.f32 %v5837, %v5798
        %v5839 = vadd.f32 %v5838, %v5802
        %v5840 = vadd.f32 %v5839, %v5806
        %v5841 = vrot.slane %v5840, 4
        %v5842 = vadd.f32 %v5840, %v5841
        %v5843 = vrot.slane %v5842, 2
        %v5844 = vadd.f32 %v5842, %v5843
        %v5845 = vrot.slane %v5844, 1
        %v5846 = vadd.f32 %v5844, %v5845
        %v5847 = vadd.f32 %v5779, %v5783
        %v5848 = vadd.f32 %v5847, %v5787
        %v5849 = vadd.f32 %v5848, %v5791
        %v5850 = vadd.f32 %v5849, %v5795
        %v5851 = vadd.f32 %v5850, %v5799
        %v5852 = vadd.f32 %v5851, %v5803
        %v5853 = vadd.f32 %v5852, %v5807
        %v5854 = vrot.slane %v5853, 4
        %v5855 = vadd.f32 %v5853, %v5854
        %v5856 = vrot.slane %v5855, 2
        %v5857 = vadd.f32 %v5855, %v5856
        %v5858 = vrot.slane %v5857, 1
        %v5859 = vadd.f32 %v5857, %v5858
        %v5860 = vmul.f32 %v5820, 0.015625
        %v5861 = vmul.f32 %v5833, 0.015625
        %v5862 = vmul.f32 %v5846, 0.015625
        %v5863 = vmul.f32 %v5859, 0.015625
        %v5864 = vpack.c.bf16 %v5860, %v5860
        %v5865 = vpack.c.bf16 %v5861, %v5861
        %v5866 = vpack.c.bf16 %v5862, %v5862
        %v5867 = vpack.c.bf16 %v5863, %v5863
        %v5868 = vld [vmem:[%s5] sm:$0xf]
        %v5869 = vld [vmem:[%s5 + $0x4] sm:$0xf]
        %v5870 = vld [vmem:[%s5 + $0x8] sm:$0xf]
        %v5871 = vld [vmem:[%s5 + $0xc] sm:$0xf]
        %v5872 = vld [vmem:[%s5 + $0x10] sm:$0xf]
        %v5873 = vld [vmem:[%s5 + $0x14] sm:$0xf]
        %v5874 = vld [vmem:[%s5 + $0x18] sm:$0xf]
        %v5875 = vld [vmem:[%s5 + $0x1c] sm:$0xf]
        %v5876 = vld [vmem:[%s5 + $0x20] sm:$0xf]
        %v5877 = vld [vmem:[%s5 + $0x24] sm:$0xf]
        %v5878 = vld [vmem:[%s5 + $0x28] sm:$0xf]
        %v5879 = vld [vmem:[%s5 + $0x2c] sm:$0xf]
        %v5880 = vld [vmem:[%s5 + $0x30] sm:$0xf]
        %v5881 = vld [vmem:[%s5 + $0x34] sm:$0xf]
        %v5882 = vld [vmem:[%s5 + $0x38] sm:$0xf]
        %v5883 = vld [vmem:[%s5 + $0x3c] sm:$0xf]
        %v5884 = vld [vmem:[%s5 + $0x40] sm:$0xf]
        %v5885 = vld [vmem:[%s5 + $0x44] sm:$0xf]
        %v5886 = vld [vmem:[%s5 + $0x48] sm:$0xf]
        %v5887 = vld [vmem:[%s5 + $0x4c] sm:$0xf]
        %v5888 = vld [vmem:[%s5 + $0x50] sm:$0xf]
        %v5889 = vld [vmem:[%s5 + $0x54] sm:$0xf]
        %v5890 = vld [vmem:[%s5 + $0x58] sm:$0xf]
        %v5891 = vld [vmem:[%s5 + $0x5c] sm:$0xf]
        %v5892 = vld [vmem:[%s5 + $0x60] sm:$0xf]
        %v5893 = vld [vmem:[%s5 + $0x64] sm:$0xf]
        %v5894 = vld [vmem:[%s5 + $0x68] sm:$0xf]
        %v5895 = vld [vmem:[%s5 + $0x6c] sm:$0xf]
        %v5896 = vld [vmem:[%s5 + $0x70] sm:$0xf]
        %v5897 = vld [vmem:[%s5 + $0x74] sm:$0xf]
        %v5898 = vld [vmem:[%s5 + $0x78] sm:$0xf]
        %v5899 = vld [vmem:[%s5 + $0x7c] sm:$0xf]
        %v5900 = vld [vmem:[%s5 + $0x80] sm:$0xf]
        %v5901 = vld [vmem:[%s5 + $0x84] sm:$0xf]
        %v5902 = vld [vmem:[%s5 + $0x88] sm:$0xf]
        %v5903 = vld [vmem:[%s5 + $0x8c] sm:$0xf]
        %v5904 = vld [vmem:[%s5 + $0x90] sm:$0xf]
        %v5905 = vld [vmem:[%s5 + $0x94] sm:$0xf]
        %v5906 = vld [vmem:[%s5 + $0x98] sm:$0xf]
        %v5907 = vld [vmem:[%s5 + $0x9c] sm:$0xf]
        %v5908 = vld [vmem:[%s5 + $0xa0] sm:$0xf]
        %v5909 = vld [vmem:[%s5 + $0xa4] sm:$0xf]
        %v5910 = vld [vmem:[%s5 + $0xa8] sm:$0xf]
        %v5911 = vld [vmem:[%s5 + $0xac] sm:$0xf]
        %v5912 = vld [vmem:[%s5 + $0xb0] sm:$0xf]
        %v5913 = vld [vmem:[%s5 + $0xb4] sm:$0xf]
        %v5914 = vld [vmem:[%s5 + $0xb8] sm:$0xf]
        %v5915 = vld [vmem:[%s5 + $0xbc] sm:$0xf]
        %v5916 = vld [vmem:[%s5 + $0xc0] sm:$0xf]
        %v5917 = vld [vmem:[%s5 + $0xc4] sm:$0xf]
        %v5918 = vld [vmem:[%s5 + $0xc8] sm:$0xf]
        %v5919 = vld [vmem:[%s5 + $0xcc] sm:$0xf]
        %v5920 = vld [vmem:[%s5 + $0xd0] sm:$0xf]
        %v5921 = vld [vmem:[%s5 + $0xd4] sm:$0xf]
        %v5922 = vld [vmem:[%s5 + $0xd8] sm:$0xf]
        %v5923 = vld [vmem:[%s5 + $0xdc] sm:$0xf]
        %v5924 = vld [vmem:[%s5 + $0xe0] sm:$0xf]
        %v5925 = vld [vmem:[%s5 + $0xe4] sm:$0xf]
        %v5926 = vld [vmem:[%s5 + $0xe8] sm:$0xf]
        %v5927 = vld [vmem:[%s5 + $0xec] sm:$0xf]
        %v5928 = vld [vmem:[%s5 + $0xf0] sm:$0xf]
        %v5929 = vld [vmem:[%s5 + $0xf4] sm:$0xf]
        %v5930 = vld [vmem:[%s5 + $0xf8] sm:$0xf]
        %v5931 = vld [vmem:[%s5 + $0xfc] sm:$0xf]
        %v5932 = vld [vmem:[%s6] sm:$0x1]
        %v5997 = vunpack.c.l.b16 %v5868
        %v5998 = vunpack.c.l.b16 %v5869
        %v5999 = vunpack.c.l.b16 %v5870
        %v6000 = vunpack.c.l.b16 %v5871
        %v6001 = vunpack.c.l.b16 %v5872
        %v6002 = vunpack.c.l.b16 %v5873
        %v6003 = vunpack.c.l.b16 %v5874
        %v6004 = vunpack.c.l.b16 %v5875
        %v6005 = vunpack.c.l.b16 %v5876
        %v6006 = vunpack.c.l.b16 %v5877
        %v6007 = vunpack.c.l.b16 %v5878
        %v6008 = vunpack.c.l.b16 %v5879
        %v6009 = vunpack.c.l.b16 %v5880
        %v6010 = vunpack.c.l.b16 %v5881
        %v6011 = vunpack.c.l.b16 %v5882
        %v6012 = vunpack.c.l.b16 %v5883
        %v6013 = vunpack.c.l.b16 %v5884
        %v6014 = vunpack.c.l.b16 %v5885
        %v6015 = vunpack.c.l.b16 %v5886
        %v6016 = vunpack.c.l.b16 %v5887
        %v6017 = vunpack.c.l.b16 %v5888
        %v6018 = vunpack.c.l.b16 %v5889
        %v6019 = vunpack.c.l.b16 %v5890
        %v6020 = vunpack.c.l.b16 %v5891
        %v6021 = vunpack.c.l.b16 %v5892
        %v6022 = vunpack.c.l.b16 %v5893
        %v6023 = vunpack.c.l.b16 %v5894
        %v6024 = vunpack.c.l.b16 %v5895
        %v6025 = vunpack.c.l.b16 %v5896
        %v6026 = vunpack.c.l.b16 %v5897
        %v6027 = vunpack.c.l.b16 %v5898
        %v6028 = vunpack.c.l.b16 %v5899
        %v6029 = vunpack.c.l.b16 %v5900
        %v6030 = vunpack.c.l.b16 %v5901
        %v6031 = vunpack.c.l.b16 %v5902
        %v6032 = vunpack.c.l.b16 %v5903
        %v6033 = vunpack.c.l.b16 %v5904
        %v6034 = vunpack.c.l.b16 %v5905
        %v6035 = vunpack.c.l.b16 %v5906
        %v6036 = vunpack.c.l.b16 %v5907
        %v6037 = vunpack.c.l.b16 %v5908
        %v6038 = vunpack.c.l.b16 %v5909
        %v6039 = vunpack.c.l.b16 %v5910
        %v6040 = vunpack.c.l.b16 %v5911
        %v6041 = vunpack.c.l.b16 %v5912
        %v6042 = vunpack.c.l.b16 %v5913
        %v6043 = vunpack.c.l.b16 %v5914
        %v6044 = vunpack.c.l.b16 %v5915
        %v6045 = vunpack.c.l.b16 %v5916
        %v6046 = vunpack.c.l.b16 %v5917
        %v6047 = vunpack.c.l.b16 %v5918
        %v6048 = vunpack.c.l.b16 %v5919
        %v6049 = vunpack.c.l.b16 %v5920
        %v6050 = vunpack.c.l.b16 %v5921
        %v6051 = vunpack.c.l.b16 %v5922
        %v6052 = vunpack.c.l.b16 %v5923
        %v6053 = vunpack.c.l.b16 %v5924
        %v6054 = vunpack.c.l.b16 %v5925
        %v6055 = vunpack.c.l.b16 %v5926
        %v6056 = vunpack.c.l.b16 %v5927
        %v6057 = vunpack.c.l.b16 %v5928
        %v6058 = vunpack.c.l.b16 %v5929
        %v6059 = vunpack.c.l.b16 %v5930
        %v6060 = vunpack.c.l.b16 %v5931
        %v6061 = vpack.c.b16 %v5998, %v5997
        %v6062 = vpack.c.b16 %v6000, %v5999
        %v6063 = vpack.c.b16 %v6002, %v6001
        %v6064 = vpack.c.b16 %v6004, %v6003
        %v6065 = vpack.c.b16 %v6006, %v6005
        %v6066 = vpack.c.b16 %v6008, %v6007
        %v6067 = vpack.c.b16 %v6010, %v6009
        %v6068 = vpack.c.b16 %v6012, %v6011
        %v6069 = vpack.c.b16 %v6014, %v6013
        %v6070 = vpack.c.b16 %v6016, %v6015
        %v6071 = vpack.c.b16 %v6018, %v6017
        %v6072 = vpack.c.b16 %v6020, %v6019
        %v6073 = vpack.c.b16 %v6022, %v6021
        %v6074 = vpack.c.b16 %v6024, %v6023
        %v6075 = vpack.c.b16 %v6026, %v6025
        %v6076 = vpack.c.b16 %v6028, %v6027
        %v6077 = vpack.c.b16 %v6030, %v6029
        %v6078 = vpack.c.b16 %v6032, %v6031
        %v6079 = vpack.c.b16 %v6034, %v6033
        %v6080 = vpack.c.b16 %v6036, %v6035
        %v6081 = vpack.c.b16 %v6038, %v6037
        %v6082 = vpack.c.b16 %v6040, %v6039
        %v6083 = vpack.c.b16 %v6042, %v6041
        %v6084 = vpack.c.b16 %v6044, %v6043
        %v6085 = vpack.c.b16 %v6046, %v6045
        %v6086 = vpack.c.b16 %v6048, %v6047
        %v6087 = vpack.c.b16 %v6050, %v6049
        %v6088 = vpack.c.b16 %v6052, %v6051
        %v6089 = vpack.c.b16 %v6054, %v6053
        %v6090 = vpack.c.b16 %v6056, %v6055
        %v6091 = vpack.c.b16 %v6058, %v6057
        %v6092 = vpack.c.b16 %v6060, %v6059
        %6125 = vmatpush.bf16.msra.mxu0 %v6068
        %6126 = vmatpush.bf16.msra.mxu0 %v6067
        %6127 = vmatpush.bf16.msra.mxu0 %v6066
        %6128 = vmatpush.bf16.msra.mxu0 %v6065
        %6129 = vmatpush.bf16.msra.mxu0 %v6064
        %6130 = vmatpush.bf16.msra.mxu0 %v6063
        %6131 = vmatpush.bf16.msra.mxu0 %v6062
        %6132 = vmatpush.bf16.msra.mxu0 %v6061
        %6133 = vmatmul.bf16.gmra.mxu0 %v5864
        %v6134 = vpop.f32.mrf.mxu0
        %v6135 = vadd.f32 %v5932, %v6134
        %v6136 = vpop.f32.mrf.mxu0
        %6137 = vdwg.mxu0
        %6138 = vmatpush.bf16.msra.mxu0 %v6076
        %6139 = vmatpush.bf16.msra.mxu0 %v6075
        %6140 = vmatpush.bf16.msra.mxu0 %v6074
        %6141 = vmatpush.bf16.msra.mxu0 %v6073
        %6142 = vmatpush.bf16.msra.mxu0 %v6072
        %6143 = vmatpush.bf16.msra.mxu0 %v6071
        %6144 = vmatpush.bf16.msra.mxu0 %v6070
        %6145 = vmatpush.bf16.msra.mxu0 %v6069
        %6146 = vmatmul.bf16.gmra.mxu0 %v5865
        %v6147 = vpop.f32.mrf.mxu0
        %v6148 = vadd.f32 %v6135, %v6147
        %v6149 = vpop.f32.mrf.mxu0
        %6150 = vdwg.mxu0
        %6151 = vmatpush.bf16.msra.mxu0 %v6084
        %6152 = vmatpush.bf16.msra.mxu0 %v6083
        %6153 = vmatpush.bf16.msra.mxu0 %v6082
        %6154 = vmatpush.bf16.msra.mxu0 %v6081
        %6155 = vmatpush.bf16.msra.mxu0 %v6080
        %6156 = vmatpush.bf16.msra.mxu0 %v6079
        %6157 = vmatpush.bf16.msra.mxu0 %v6078
        %6158 = vmatpush.bf16.msra.mxu0 %v6077
        %6159 = vmatmul.bf16.gmra.mxu0 %v5866
        %v6160 = vpop.f32.mrf.mxu0
        %v6161 = vadd.f32 %v6148, %v6160
        %v6162 = vpop.f32.mrf.mxu0
        %6163 = vdwg.mxu0
        %6164 = vmatpush.bf16.msra.mxu0 %v6092
        %6165 = vmatpush.bf16.msra.mxu0 %v6091
        %6166 = vmatpush.bf16.msra.mxu0 %v6090
        %6167 = vmatpush.bf16.msra.mxu0 %v6089
        %6168 = vmatpush.bf16.msra.mxu0 %v6088
        %6169 = vmatpush.bf16.msra.mxu0 %v6087
        %6170 = vmatpush.bf16.msra.mxu0 %v6086
        %6171 = vmatpush.bf16.msra.mxu0 %v6085
        %6172 = vmatmul.bf16.gmra.mxu0 %v5867
        %v6173 = vpop.f32.mrf.mxu0
        %v6174 = vadd.f32 %v6161, %v6173
        %v6175 = vpop.f32.mrf.mxu0
        %6176 = vdwg.mxu0
        %6177 = vst [vmem:[%s270] sm:$0x1] %v6174
        %s6178 = sand.u32 %s181, 1
        %s6179 = scalar_lea.sflag [#allocation4], %s6178
        %s6180 = sand.u32 %s181, 1
        %s6181 = scalar_lea.vmem [#allocation3], %s6180
        // Predicated region
        $region49: #{wideresnet_forward.1} parent=47 // pred_check
          %p6182 = pneg %p191
        $region50: #{wideresnet_forward.1} parent=47 // pred_check_branch
          %6184 = sbr.rel (%p6182) target = $region52
        $region51: #{wideresnet_forward.1} parent=47 // pred_region
          %6186 = vsyncadd %s6179, 0
          %s6187 = scalar_lea.hbm %s7, %s21
          %s6189 = sshll.u32 %s6181, 4
          %s6190 = int_to_ptr.vmem [resolvable:$true] %s6189
          %s6191 = sshll.u32 %s6187, 4
          %s6192 = int_to_ptr.hbm [resolvable:$true] %s6191
          %6194 = dma.vmem_to_hbm [thread:$0]  %s6190, 16, %s6192, %s6179
        $region52: #{wideresnet_forward.1} parent=47 // pred_fallthru
          _
      $region48: #{wideresnet_forward.1} parent=5 // pred_fallthru
        _
      %p6195 = scmp.le.s32.totalorder 2, %s16
      // Predicated region
      $region53: #{wideresnet_forward.1} parent=5 // pred_check
        %p6196 = pneg %p6195
      $region54: #{wideresnet_forward.1} parent=5 // pred_check_branch
        %6198 = sbr.rel (%p6196) target = $region56
      $region55: #{wideresnet_forward.1} parent=5 // pred_region
        %s6199 = ssub.s32 %s16, 2
        // Predicated region
        $region57: #{wideresnet_forward.1} parent=55 // pred_check
          %p6200 = pneg %p197
        $region58: #{wideresnet_forward.1} parent=55 // pred_check_branch
          %6202 = sbr.rel (%p6200) target = $region60
        $region59: #{wideresnet_forward.1} parent=55 // pred_region
          %s6203 = sand.u32 %s182, 1
          %s6204 = scalar_lea.sflag [#allocation4], %s6203
          %s6205 = sand.u32 %s182, 1
          %s6206 = scalar_lea.vmem [#allocation3], %s6205
          %6208 = dma.done %s6204, 16
        $region60: #{wideresnet_forward.1} parent=55 // pred_fallthru
          _
      $region56: #{wideresnet_forward.1} parent=5 // pred_fallthru
        _
    $region6: #{wideresnet_forward.1} parent=1 // loop_footer
      %s20 = sadd.s32 1, %s16
    $region7: #{wideresnet_forward.1} parent=1 // loop_footer_branch
      %15 = sbr.rel target = $region3
    $region8: #{wideresnet_forward.1} parent=1 // loop_exit
      _
    %6209 = vsyncpa [#allocation4], 1
    %s6210 = scalar_lea.sflag [#allocation4], 1
    %6211 = vsyncpa %s6210, 1

</llo_original>
